<compile_context>
chip_gen: v7x
topology: tpu7x:2x2x1
jax: 0.10.0
libtpu: 0.0.40
codegen_flags: <defaults>
</compile_context>

<pallas_src>
import jax
import jax.numpy as jnp
from jax.experimental import pallas as pl
from jax.experimental.pallas import tpu as pltpu

E_NODES = 8      # node axis, fixed by adj (8x8)
T_TIME = 100     # time axis, fixed by reshape(..., 100)
KSIZE = 6
DILATION = 9
PAD = 45         # dilation * (kernel_size - 1); chomped => causal conv
BN_EPS = 1e-5


# -----------------------------------------------------------------------------
# In-kernel helpers
# -----------------------------------------------------------------------------
def _shift_right(v, d):
    """Causal right-shift by d along the last (time/lane) axis, zero fill."""
    if d == 0:
        return v
    zeros = jnp.zeros(v.shape[:-1] + (d,), v.dtype)
    return jnp.concatenate([zeros, v[..., : v.shape[-1] - d]], axis=-1)


def _conv_relu(h, w_ref, b_ref, c, slab):
    """Weight-normed causal dilated Conv1d + chomp + ReLU (dropout: eval mode).

    h     : list of `c` slabs, each (GB, E, T) with time on lanes.
    w_ref : SMEM (c*c*KSIZE,) = flattened PyTorch (out, in, k) conv weight.
    b_ref : SMEM (c,) bias.
    """
    acc = [jnp.zeros(slab, jnp.float32) for _ in range(c)]
    for i in range(c):                        # input channel
        for j in range(KSIZE):                # tap
            d = PAD - j * DILATION            # causal shift: 45, 36, ..., 0
            s = _shift_right(h[i], d)         # built once, reused for all o
            for o in range(c):                # output channel
                acc[o] = acc[o] + w_ref[(o * c + i) * KSIZE + j] * s
    return [jnp.maximum(acc[o] + b_ref[o], 0.0) for o in range(c)]


# -----------------------------------------------------------------------------
# Fused STCB kernel: residual Linear + GNN Linear(+BN2) + ReLU + TCN(+BN1) + add
#   x block : (GB, C_in, E, T)   out block : (GB, C_out, E, T)
# -----------------------------------------------------------------------------
def _stcb_kernel(x_ref, wr_ref, br_ref, wg_ref, bg_ref,
                 w1_ref, b1_ref, w2_ref, b2_ref, bn1s_ref, bn1o_ref,
                 out_ref):
    gb, c_in = x_ref.shape[0], x_ref.shape[1]
    c_out, e, t = out_ref.shape[1], out_ref.shape[2], out_ref.shape[3]
    slab = (gb, e, t)

    # ---- spatial part: residual Linear + (GNN Linear, BN2 folded) + ReLU ----
    x = [x_ref[:, i, :, :] for i in range(c_in)]          # (GB, E, T) slabs
    h = []
    for o in range(c_out):
        r = jnp.zeros(slab, jnp.float32)
        g = jnp.zeros(slab, jnp.float32)
        for i in range(c_in):
            r = r + wr_ref[o * c_in + i] * x[i]
            g = g + wg_ref[o * c_in + i] * x[i]
        r = r + br_ref[o]
        g = g + bg_ref[o]                                  # BN2(eval) folded in
        out_ref[:, o, :, :] = r                            # stash residual (VMEM)
        h.append(jnp.maximum(r + g, 0.0))

    # ---- temporal part: 2x (causal dilated conv + chomp + ReLU), then BN1 ---
    h1 = _conv_relu(h, w1_ref, b1_ref, c_out, slab)
    h2 = _conv_relu(h1, w2_ref, b2_ref, c_out, slab)

    # BatchNorm1d (eval affine, post-ReLU so not foldable) + final residual add
    for o in range(c_out):
        y = h2[o] * bn1s_ref[o] + bn1o_ref[o]
        out_ref[:, o, :, :] = out_ref[:, o, :, :] + y


# -----------------------------------------------------------------------------
# Wrapper
# -----------------------------------------------------------------------------
def _pick_gb(b):
    """Batches per grid step.

    Prefer the largest group that (a) divides B, (b) keeps the block small
    (<= 32 batches ~= 1.6 MiB double-buffered -> safe under every VMEM budget),
    and (c) leaves >= 2 grid steps so v7x can shard the grid over both TCs.
    """
    divs = [g for g in range(1, min(b, 32) + 1) if b % g == 0]
    two_step = [g for g in divs if b // g >= 2]
    return max(two_step) if two_step else max(divs)


def stcb_forward(x, p):
    b, c_in, e, t = x.shape
    c_out = p["wr"].shape[0]
    assert t == T_TIME, "STCB hard-codes reshape(..., 100): T must be 100"

    gb = _pick_gb(b)

    # Fold eval-mode BatchNorm2d into the GNN Linear (both affine, pre-ReLU).
    wg_eff = p["wg"] * p["bn2_scale"][:, None]
    bg_eff = p["bg"] * p["bn2_scale"] + p["bn2_offset"]

    smem = pl.BlockSpec(memory_space=pltpu.MemorySpace.SMEM)
    blk_in = pl.BlockSpec((gb, c_in, e, t), lambda i: (i, 0, 0, 0))
    blk_out = pl.BlockSpec((gb, c_out, e, t), lambda i: (i, 0, 0, 0))

    return pl.pallas_call(
        _stcb_kernel,
        out_shape=jax.ShapeDtypeStruct((b, c_out, e, t), jnp.float32),
        grid=(b // gb,),
        in_specs=[blk_in] + [smem] * 10,
        out_specs=blk_out,
        compiler_params=pltpu.CompilerParams(
            dimension_semantics=("parallel",)),   # megacore split on v7x
    )(x,
      p["wr"].reshape(-1), p["br"],
      wg_eff.reshape(-1), bg_eff,
      p["w1"].reshape(-1), p["b1"],
      p["w2"].reshape(-1), p["b2"],
      p["bn1_scale"], p["bn1_offset"])


# -----------------------------------------------------------------------------
# Deterministic parameter construction (synthetic; no checkpoint loading)
# -----------------------------------------------------------------------------
def init_params(key, c_in, c_out):
    ks = jax.random.split(key, 8)
    wg = 0.1 * jax.random.normal(ks[0], (c_out, c_in), jnp.float32)   # GNN Linear
    bg = 0.1 * jax.random.normal(ks[1], (c_out,), jnp.float32)
    wr = 0.1 * jax.random.normal(ks[2], (c_out, c_in), jnp.float32)   # residual Linear
    br = 0.1 * jax.random.normal(ks[3], (c_out,), jnp.float32)

    # weight_norm(Conv1d): w = g * v / ||v|| over dims (1,2); g is initialised
    # to ||v|| by PyTorch, so the effective weight equals v at init.
    def weight_norm(v):
        nrm = jnp.sqrt(jnp.sum(v * v, axis=(1, 2), keepdims=True))
        return nrm * v / nrm

    v1 = 0.1 * jax.random.normal(ks[4], (c_out, c_out, KSIZE), jnp.float32)
    b1 = 0.1 * jax.random.normal(ks[5], (c_out,), jnp.float32)
    v2 = 0.1 * jax.random.normal(ks[6], (c_out, c_out, KSIZE), jnp.float32)
    b2 = 0.1 * jax.random.normal(ks[7], (c_out,), jnp.float32)

    # BatchNorm2d (GNN) / BatchNorm1d (TCN) in eval mode with fresh stats:
    # gamma=1, beta=0, running_mean=0, running_var=1  ->  y = x / sqrt(1+eps)
    def bn_affine():
        gamma = jnp.ones((c_out,), jnp.float32)
        beta = jnp.zeros((c_out,), jnp.float32)
        rmean = jnp.zeros((c_out,), jnp.float32)
        rvar = jnp.ones((c_out,), jnp.float32)
        scale = gamma / jnp.sqrt(rvar + BN_EPS)
        offset = beta - rmean * scale
        return scale, offset

    bn2_scale, bn2_offset = bn_affine()   # GNN.batch  (BatchNorm2d)
    bn1_scale, bn1_offset = bn_affine()   # TCN.batch  (BatchNorm1d)

    return {"wg": wg, "bg": bg, "wr": wr, "br": br,
            "w1": weight_norm(v1), "b1": b1, "w2": weight_norm(v2), "b2": b2,
            "bn2_scale": bn2_scale, "bn2_offset": bn2_offset,
            "bn1_scale": bn1_scale, "bn1_offset": bn1_offset}


# -----------------------------------------------------------------------------
# Pure-JAX reference (mirrors the PyTorch graph, eval mode) for validation
# -----------------------------------------------------------------------------
def stcb_reference(x, p):
    b, c_in, e, t = x.shape
    c_out = p["wg"].shape[0]
    xt = jnp.transpose(x, (0, 3, 2, 1))                       # (B,T,E,Cin)
    residual = xt @ p["wr"].T + p["br"]
    residual = jnp.transpose(residual, (0, 3, 2, 1))          # (B,Cout,E,T)

    g = xt @ p["wg"].T + p["bg"]
    g = jnp.transpose(g, (0, 3, 2, 1))
    g = g * p["bn2_scale"][None, :, None, None] + p["bn2_offset"][None, :, None, None]

    h = jnp.maximum(residual + g, 0.0)
    h = jnp.transpose(h, (0, 2, 1, 3)).reshape(b * e, c_out, t)

    def causal_conv(z, w, bias):
        zp = jnp.pad(z, ((0, 0), (0, 0), (PAD, 0)))
        out = jnp.broadcast_to(bias[None, :, None], (z.shape[0], c_out, t))
        for j in range(KSIZE):
            out = out + jnp.einsum("nit,oi->not",
                                   zp[:, :, j * DILATION:j * DILATION + t],
                                   w[:, :, j])
        return out

    y = jnp.maximum(causal_conv(h, p["w1"], p["b1"]), 0.0)
    y = jnp.maximum(causal_conv(y, p["w2"], p["b2"]), 0.0)
    y = y * p["bn1_scale"][None, :, None] + p["bn1_offset"][None, :, None]
    y = jnp.transpose(y.reshape(b, e, c_out, t), (0, 2, 1, 3))
    return residual + y


if __name__ == "__main__":
    B, C_IN, C_OUT = 8, 4, 4
    key = jax.random.PRNGKey(0)
    kx, kp = jax.random.split(key)
    params = init_params(kp, C_IN, C_OUT)
    x = jax.random.normal(kx, (B, C_IN, E_NODES, T_TIME), jnp.float32)

    out = jax.block_until_ready(jax.jit(stcb_forward)(x, params))
    ref = jax.block_until_ready(stcb_reference(x, params))

    assert out.shape == (B, C_OUT, E_NODES, T_TIME), out.shape
    assert bool(jnp.all(jnp.isfinite(out)))
    err = float(jnp.max(jnp.abs(out - ref)))
    assert err < 2e-2, f"max abs err vs reference: {err}"
    print("KERNEL_OK")
</pallas_src>

<mosaic_0001>
module attributes {stable_mosaic.version = 11 : i64} {
  func.func @_stcb_kernel(%arg0: i32, %arg1: memref<4x4x8x100xf32, #tpu.memory_space<vmem>>, %arg2: memref<16xf32, #tpu.memory_space<smem>>, %arg3: memref<4xf32, #tpu.memory_space<smem>>, %arg4: memref<16xf32, #tpu.memory_space<smem>>, %arg5: memref<4xf32, #tpu.memory_space<smem>>, %arg6: memref<96xf32, #tpu.memory_space<smem>>, %arg7: memref<4xf32, #tpu.memory_space<smem>>, %arg8: memref<96xf32, #tpu.memory_space<smem>>, %arg9: memref<4xf32, #tpu.memory_space<smem>>, %arg10: memref<4xf32, #tpu.memory_space<smem>>, %arg11: memref<4xf32, #tpu.memory_space<smem>>, %arg12: memref<4x4x8x100xf32, #tpu.memory_space<vmem>>) attributes {dimension_semantics = [#tpu.dimension_semantics<parallel>], iteration_bounds = array<i64: 2>, scalar_prefetch = 0 : i64, scratch_operands = 0 : i64, tpu.core_type = #tpu.core_type<tc>, window_params = [{transform_indices = @transform_0, window_bounds = array<i64: 4, 4, 8, 100>}, {transform_indices = @transform_1, window_bounds = array<i64: 16>}, {transform_indices = @transform_2, window_bounds = array<i64: 4>}, {transform_indices = @transform_3, window_bounds = array<i64: 16>}, {transform_indices = @transform_4, window_bounds = array<i64: 4>}, {transform_indices = @transform_5, window_bounds = array<i64: 96>}, {transform_indices = @transform_6, window_bounds = array<i64: 4>}, {transform_indices = @transform_7, window_bounds = array<i64: 96>}, {transform_indices = @transform_8, window_bounds = array<i64: 4>}, {transform_indices = @transform_9, window_bounds = array<i64: 4>}, {transform_indices = @transform_10, window_bounds = array<i64: 4>}, {transform_indices = @transform_11, window_bounds = array<i64: 4, 4, 8, 100>}]} {
    %c0 = arith.constant 0 : index
    %c0_0 = arith.constant 0 : index
    %c0_1 = arith.constant 0 : index
    %c0_2 = arith.constant 0 : index
    %0 = vector.load %arg1[%c0, %c0_0, %c0_1, %c0_2] : memref<4x4x8x100xf32, #tpu.memory_space<vmem>>, vector<4x1x8x100xf32>
    %1 = vector.shape_cast %0 : vector<4x1x8x100xf32> to vector<4x8x100xf32>
    %c0_3 = arith.constant 0 : index
    %c1 = arith.constant 1 : index
    %c0_4 = arith.constant 0 : index
    %c0_5 = arith.constant 0 : index
    %2 = vector.load %arg1[%c0_3, %c1, %c0_4, %c0_5] : memref<4x4x8x100xf32, #tpu.memory_space<vmem>>, vector<4x1x8x100xf32>
    %3 = vector.shape_cast %2 : vector<4x1x8x100xf32> to vector<4x8x100xf32>
    %c0_6 = arith.constant 0 : index
    %c2 = arith.constant 2 : index
    %c0_7 = arith.constant 0 : index
    %c0_8 = arith.constant 0 : index
    %4 = vector.load %arg1[%c0_6, %c2, %c0_7, %c0_8] : memref<4x4x8x100xf32, #tpu.memory_space<vmem>>, vector<4x1x8x100xf32>
    %5 = vector.shape_cast %4 : vector<4x1x8x100xf32> to vector<4x8x100xf32>
    %c0_9 = arith.constant 0 : index
    %c3 = arith.constant 3 : index
    %c0_10 = arith.constant 0 : index
    %c0_11 = arith.constant 0 : index
    %6 = vector.load %arg1[%c0_9, %c3, %c0_10, %c0_11] : memref<4x4x8x100xf32, #tpu.memory_space<vmem>>, vector<4x1x8x100xf32>
    %7 = vector.shape_cast %6 : vector<4x1x8x100xf32> to vector<4x8x100xf32>
    %cst = arith.constant 0.000000e+00 : f32
    %8 = vector.broadcast %cst : f32 to vector<4x8x100xf32>
    %cst_12 = arith.constant 0.000000e+00 : f32
    %9 = vector.broadcast %cst_12 : f32 to vector<4x8x100xf32>
    %c0_13 = arith.constant 0 : index
    %10 = memref.load %arg2[%c0_13] : memref<16xf32, #tpu.memory_space<smem>>
    %11 = vector.broadcast %10 : f32 to vector<4x8x100xf32>
    %12 = arith.mulf %11, %1 : vector<4x8x100xf32>
    %13 = arith.addf %8, %12 : vector<4x8x100xf32>
    %c0_14 = arith.constant 0 : index
    %14 = memref.load %arg4[%c0_14] : memref<16xf32, #tpu.memory_space<smem>>
    %15 = vector.broadcast %14 : f32 to vector<4x8x100xf32>
    %16 = arith.mulf %15, %1 : vector<4x8x100xf32>
    %17 = arith.addf %9, %16 : vector<4x8x100xf32>
    %c1_15 = arith.constant 1 : index
    %18 = memref.load %arg2[%c1_15] : memref<16xf32, #tpu.memory_space<smem>>
    %19 = vector.broadcast %18 : f32 to vector<4x8x100xf32>
    %20 = arith.mulf %19, %3 : vector<4x8x100xf32>
    %21 = arith.addf %13, %20 : vector<4x8x100xf32>
    %c1_16 = arith.constant 1 : index
    %22 = memref.load %arg4[%c1_16] : memref<16xf32, #tpu.memory_space<smem>>
    %23 = vector.broadcast %22 : f32 to vector<4x8x100xf32>
    %24 = arith.mulf %23, %3 : vector<4x8x100xf32>
    %25 = arith.addf %17, %24 : vector<4x8x100xf32>
    %c2_17 = arith.constant 2 : index
    %26 = memref.load %arg2[%c2_17] : memref<16xf32, #tpu.memory_space<smem>>
    %27 = vector.broadcast %26 : f32 to vector<4x8x100xf32>
    %28 = arith.mulf %27, %5 : vector<4x8x100xf32>
    %29 = arith.addf %21, %28 : vector<4x8x100xf32>
    %c2_18 = arith.constant 2 : index
    %30 = memref.load %arg4[%c2_18] : memref<16xf32, #tpu.memory_space<smem>>
    %31 = vector.broadcast %30 : f32 to vector<4x8x100xf32>
    %32 = arith.mulf %31, %5 : vector<4x8x100xf32>
    %33 = arith.addf %25, %32 : vector<4x8x100xf32>
    %c3_19 = arith.constant 3 : index
    %34 = memref.load %arg2[%c3_19] : memref<16xf32, #tpu.memory_space<smem>>
    %35 = vector.broadcast %34 : f32 to vector<4x8x100xf32>
    %36 = arith.mulf %35, %7 : vector<4x8x100xf32>
    %37 = arith.addf %29, %36 : vector<4x8x100xf32>
    %c3_20 = arith.constant 3 : index
    %38 = memref.load %arg4[%c3_20] : memref<16xf32, #tpu.memory_space<smem>>
    %39 = vector.broadcast %38 : f32 to vector<4x8x100xf32>
    %40 = arith.mulf %39, %7 : vector<4x8x100xf32>
    %41 = arith.addf %33, %40 : vector<4x8x100xf32>
    %c0_21 = arith.constant 0 : index
    %42 = memref.load %arg3[%c0_21] : memref<4xf32, #tpu.memory_space<smem>>
    %43 = vector.broadcast %42 : f32 to vector<4x8x100xf32>
    %44 = arith.addf %37, %43 : vector<4x8x100xf32>
    %c0_22 = arith.constant 0 : index
    %45 = memref.load %arg5[%c0_22] : memref<4xf32, #tpu.memory_space<smem>>
    %46 = vector.broadcast %45 : f32 to vector<4x8x100xf32>
    %47 = arith.addf %41, %46 : vector<4x8x100xf32>
    %c0_23 = arith.constant 0 : index
    %c0_24 = arith.constant 0 : index
    %c0_25 = arith.constant 0 : index
    %c0_26 = arith.constant 0 : index
    %48 = vector.load %arg12[%c0_23, %c0_24, %c0_25, %c0_26] : memref<4x4x8x100xf32, #tpu.memory_space<vmem>>, vector<4x1x8x100xf32>
    %49 = vector.shape_cast %48 : vector<4x1x8x100xf32> to vector<4x8x100xf32>
    %50 = vector.shape_cast %44 : vector<4x8x100xf32> to vector<4x1x8x100xf32>
    tpu.vector_store %arg12[%c0_23, %c0_24, %c0_25, %c0_26], %50 {strides = array<i32>} : memref<4x4x8x100xf32, #tpu.memory_space<vmem>>, vector<4x1x8x100xf32>,
    %51 = arith.addf %44, %47 : vector<4x8x100xf32>
    %cst_27 = arith.constant 0.000000e+00 : f32
    %52 = vector.broadcast %cst_27 : f32 to vector<4x8x100xf32>
    %53 = arith.maximumf %51, %52 : vector<4x8x100xf32>
    %cst_28 = arith.constant 0.000000e+00 : f32
    %54 = vector.broadcast %cst_28 : f32 to vector<4x8x100xf32>
    %cst_29 = arith.constant 0.000000e+00 : f32
    %55 = vector.broadcast %cst_29 : f32 to vector<4x8x100xf32>
    %c4 = arith.constant 4 : index
    %56 = memref.load %arg2[%c4] : memref<16xf32, #tpu.memory_space<smem>>
    %57 = vector.broadcast %56 : f32 to vector<4x8x100xf32>
    %58 = arith.mulf %57, %1 : vector<4x8x100xf32>
    %59 = arith.addf %54, %58 : vector<4x8x100xf32>
    %c4_30 = arith.constant 4 : index
    %60 = memref.load %arg4[%c4_30] : memref<16xf32, #tpu.memory_space<smem>>
    %61 = vector.broadcast %60 : f32 to vector<4x8x100xf32>
    %62 = arith.mulf %61, %1 : vector<4x8x100xf32>
    %63 = arith.addf %55, %62 : vector<4x8x100xf32>
    %c5 = arith.constant 5 : index
    %64 = memref.load %arg2[%c5] : memref<16xf32, #tpu.memory_space<smem>>
    %65 = vector.broadcast %64 : f32 to vector<4x8x100xf32>
    %66 = arith.mulf %65, %3 : vector<4x8x100xf32>
    %67 = arith.addf %59, %66 : vector<4x8x100xf32>
    %c5_31 = arith.constant 5 : index
    %68 = memref.load %arg4[%c5_31] : memref<16xf32, #tpu.memory_space<smem>>
    %69 = vector.broadcast %68 : f32 to vector<4x8x100xf32>
    %70 = arith.mulf %69, %3 : vector<4x8x100xf32>
    %71 = arith.addf %63, %70 : vector<4x8x100xf32>
    %c6 = arith.constant 6 : index
    %72 = memref.load %arg2[%c6] : memref<16xf32, #tpu.memory_space<smem>>
    %73 = vector.broadcast %72 : f32 to vector<4x8x100xf32>
    %74 = arith.mulf %73, %5 : vector<4x8x100xf32>
    %75 = arith.addf %67, %74 : vector<4x8x100xf32>
    %c6_32 = arith.constant 6 : index
    %76 = memref.load %arg4[%c6_32] : memref<16xf32, #tpu.memory_space<smem>>
    %77 = vector.broadcast %76 : f32 to vector<4x8x100xf32>
    %78 = arith.mulf %77, %5 : vector<4x8x100xf32>
    %79 = arith.addf %71, %78 : vector<4x8x100xf32>
    %c7 = arith.constant 7 : index
    %80 = memref.load %arg2[%c7] : memref<16xf32, #tpu.memory_space<smem>>
    %81 = vector.broadcast %80 : f32 to vector<4x8x100xf32>
    %82 = arith.mulf %81, %7 : vector<4x8x100xf32>
    %83 = arith.addf %75, %82 : vector<4x8x100xf32>
    %c7_33 = arith.constant 7 : index
    %84 = memref.load %arg4[%c7_33] : memref<16xf32, #tpu.memory_space<smem>>
    %85 = vector.broadcast %84 : f32 to vector<4x8x100xf32>
    %86 = arith.mulf %85, %7 : vector<4x8x100xf32>
    %87 = arith.addf %79, %86 : vector<4x8x100xf32>
    %c1_34 = arith.constant 1 : index
    %88 = memref.load %arg3[%c1_34] : memref<4xf32, #tpu.memory_space<smem>>
    %89 = vector.broadcast %88 : f32 to vector<4x8x100xf32>
    %90 = arith.addf %83, %89 : vector<4x8x100xf32>
    %c1_35 = arith.constant 1 : index
    %91 = memref.load %arg5[%c1_35] : memref<4xf32, #tpu.memory_space<smem>>
    %92 = vector.broadcast %91 : f32 to vector<4x8x100xf32>
    %93 = arith.addf %87, %92 : vector<4x8x100xf32>
    %c0_36 = arith.constant 0 : index
    %c1_37 = arith.constant 1 : index
    %c0_38 = arith.constant 0 : index
    %c0_39 = arith.constant 0 : index
    %94 = vector.load %arg12[%c0_36, %c1_37, %c0_38, %c0_39] : memref<4x4x8x100xf32, #tpu.memory_space<vmem>>, vector<4x1x8x100xf32>
    %95 = vector.shape_cast %94 : vector<4x1x8x100xf32> to vector<4x8x100xf32>
    %96 = vector.shape_cast %90 : vector<4x8x100xf32> to vector<4x1x8x100xf32>
    tpu.vector_store %arg12[%c0_36, %c1_37, %c0_38, %c0_39], %96 {strides = array<i32>} : memref<4x4x8x100xf32, #tpu.memory_space<vmem>>, vector<4x1x8x100xf32>,
    %97 = arith.addf %90, %93 : vector<4x8x100xf32>
    %cst_40 = arith.constant 0.000000e+00 : f32
    %98 = vector.broadcast %cst_40 : f32 to vector<4x8x100xf32>
    %99 = arith.maximumf %97, %98 : vector<4x8x100xf32>
    %cst_41 = arith.constant 0.000000e+00 : f32
    %100 = vector.broadcast %cst_41 : f32 to vector<4x8x100xf32>
    %cst_42 = arith.constant 0.000000e+00 : f32
    %101 = vector.broadcast %cst_42 : f32 to vector<4x8x100xf32>
    %c8 = arith.constant 8 : index
    %102 = memref.load %arg2[%c8] : memref<16xf32, #tpu.memory_space<smem>>
    %103 = vector.broadcast %102 : f32 to vector<4x8x100xf32>
    %104 = arith.mulf %103, %1 : vector<4x8x100xf32>
    %105 = arith.addf %100, %104 : vector<4x8x100xf32>
    %c8_43 = arith.constant 8 : index
    %106 = memref.load %arg4[%c8_43] : memref<16xf32, #tpu.memory_space<smem>>
    %107 = vector.broadcast %106 : f32 to vector<4x8x100xf32>
    %108 = arith.mulf %107, %1 : vector<4x8x100xf32>
    %109 = arith.addf %101, %108 : vector<4x8x100xf32>
    %c9 = arith.constant 9 : index
    %110 = memref.load %arg2[%c9] : memref<16xf32, #tpu.memory_space<smem>>
    %111 = vector.broadcast %110 : f32 to vector<4x8x100xf32>
    %112 = arith.mulf %111, %3 : vector<4x8x100xf32>
    %113 = arith.addf %105, %112 : vector<4x8x100xf32>
    %c9_44 = arith.constant 9 : index
    %114 = memref.load %arg4[%c9_44] : memref<16xf32, #tpu.memory_space<smem>>
    %115 = vector.broadcast %114 : f32 to vector<4x8x100xf32>
    %116 = arith.mulf %115, %3 : vector<4x8x100xf32>
    %117 = arith.addf %109, %116 : vector<4x8x100xf32>
    %c10 = arith.constant 10 : index
    %118 = memref.load %arg2[%c10] : memref<16xf32, #tpu.memory_space<smem>>
    %119 = vector.broadcast %118 : f32 to vector<4x8x100xf32>
    %120 = arith.mulf %119, %5 : vector<4x8x100xf32>
    %121 = arith.addf %113, %120 : vector<4x8x100xf32>
    %c10_45 = arith.constant 10 : index
    %122 = memref.load %arg4[%c10_45] : memref<16xf32, #tpu.memory_space<smem>>
    %123 = vector.broadcast %122 : f32 to vector<4x8x100xf32>
    %124 = arith.mulf %123, %5 : vector<4x8x100xf32>
    %125 = arith.addf %117, %124 : vector<4x8x100xf32>
    %c11 = arith.constant 11 : index
    %126 = memref.load %arg2[%c11] : memref<16xf32, #tpu.memory_space<smem>>
    %127 = vector.broadcast %126 : f32 to vector<4x8x100xf32>
    %128 = arith.mulf %127, %7 : vector<4x8x100xf32>
    %129 = arith.addf %121, %128 : vector<4x8x100xf32>
    %c11_46 = arith.constant 11 : index
    %130 = memref.load %arg4[%c11_46] : memref<16xf32, #tpu.memory_space<smem>>
    %131 = vector.broadcast %130 : f32 to vector<4x8x100xf32>
    %132 = arith.mulf %131, %7 : vector<4x8x100xf32>
    %133 = arith.addf %125, %132 : vector<4x8x100xf32>
    %c2_47 = arith.constant 2 : index
    %134 = memref.load %arg3[%c2_47] : memref<4xf32, #tpu.memory_space<smem>>
    %135 = vector.broadcast %134 : f32 to vector<4x8x100xf32>
    %136 = arith.addf %129, %135 : vector<4x8x100xf32>
    %c2_48 = arith.constant 2 : index
    %137 = memref.load %arg5[%c2_48] : memref<4xf32, #tpu.memory_space<smem>>
    %138 = vector.broadcast %137 : f32 to vector<4x8x100xf32>
    %139 = arith.addf %133, %138 : vector<4x8x100xf32>
    %c0_49 = arith.constant 0 : index
    %c2_50 = arith.constant 2 : index
    %c0_51 = arith.constant 0 : index
    %c0_52 = arith.constant 0 : index
    %140 = vector.load %arg12[%c0_49, %c2_50, %c0_51, %c0_52] : memref<4x4x8x100xf32, #tpu.memory_space<vmem>>, vector<4x1x8x100xf32>
    %141 = vector.shape_cast %140 : vector<4x1x8x100xf32> to vector<4x8x100xf32>
    %142 = vector.shape_cast %136 : vector<4x8x100xf32> to vector<4x1x8x100xf32>
    tpu.vector_store %arg12[%c0_49, %c2_50, %c0_51, %c0_52], %142 {strides = array<i32>} : memref<4x4x8x100xf32, #tpu.memory_space<vmem>>, vector<4x1x8x100xf32>,
    %143 = arith.addf %136, %139 : vector<4x8x100xf32>
    %cst_53 = arith.constant 0.000000e+00 : f32
    %144 = vector.broadcast %cst_53 : f32 to vector<4x8x100xf32>
    %145 = arith.maximumf %143, %144 : vector<4x8x100xf32>
    %cst_54 = arith.constant 0.000000e+00 : f32
    %146 = vector.broadcast %cst_54 : f32 to vector<4x8x100xf32>
    %cst_55 = arith.constant 0.000000e+00 : f32
    %147 = vector.broadcast %cst_55 : f32 to vector<4x8x100xf32>
    %c12 = arith.constant 12 : index
    %148 = memref.load %arg2[%c12] : memref<16xf32, #tpu.memory_space<smem>>
    %149 = vector.broadcast %148 : f32 to vector<4x8x100xf32>
    %150 = arith.mulf %149, %1 : vector<4x8x100xf32>
    %151 = arith.addf %146, %150 : vector<4x8x100xf32>
    %c12_56 = arith.constant 12 : index
    %152 = memref.load %arg4[%c12_56] : memref<16xf32, #tpu.memory_space<smem>>
    %153 = vector.broadcast %152 : f32 to vector<4x8x100xf32>
    %154 = arith.mulf %153, %1 : vector<4x8x100xf32>
    %155 = arith.addf %147, %154 : vector<4x8x100xf32>
    %c13 = arith.constant 13 : index
    %156 = memref.load %arg2[%c13] : memref<16xf32, #tpu.memory_space<smem>>
    %157 = vector.broadcast %156 : f32 to vector<4x8x100xf32>
    %158 = arith.mulf %157, %3 : vector<4x8x100xf32>
    %159 = arith.addf %151, %158 : vector<4x8x100xf32>
    %c13_57 = arith.constant 13 : index
    %160 = memref.load %arg4[%c13_57] : memref<16xf32, #tpu.memory_space<smem>>
    %161 = vector.broadcast %160 : f32 to vector<4x8x100xf32>
    %162 = arith.mulf %161, %3 : vector<4x8x100xf32>
    %163 = arith.addf %155, %162 : vector<4x8x100xf32>
    %c14 = arith.constant 14 : index
    %164 = memref.load %arg2[%c14] : memref<16xf32, #tpu.memory_space<smem>>
    %165 = vector.broadcast %164 : f32 to vector<4x8x100xf32>
    %166 = arith.mulf %165, %5 : vector<4x8x100xf32>
    %167 = arith.addf %159, %166 : vector<4x8x100xf32>
    %c14_58 = arith.constant 14 : index
    %168 = memref.load %arg4[%c14_58] : memref<16xf32, #tpu.memory_space<smem>>
    %169 = vector.broadcast %168 : f32 to vector<4x8x100xf32>
    %170 = arith.mulf %169, %5 : vector<4x8x100xf32>
    %171 = arith.addf %163, %170 : vector<4x8x100xf32>
    %c15 = arith.constant 15 : index
    %172 = memref.load %arg2[%c15] : memref<16xf32, #tpu.memory_space<smem>>
    %173 = vector.broadcast %172 : f32 to vector<4x8x100xf32>
    %174 = arith.mulf %173, %7 : vector<4x8x100xf32>
    %175 = arith.addf %167, %174 : vector<4x8x100xf32>
    %c15_59 = arith.constant 15 : index
    %176 = memref.load %arg4[%c15_59] : memref<16xf32, #tpu.memory_space<smem>>
    %177 = vector.broadcast %176 : f32 to vector<4x8x100xf32>
    %178 = arith.mulf %177, %7 : vector<4x8x100xf32>
    %179 = arith.addf %171, %178 : vector<4x8x100xf32>
    %c3_60 = arith.constant 3 : index
    %180 = memref.load %arg3[%c3_60] : memref<4xf32, #tpu.memory_space<smem>>
    %181 = vector.broadcast %180 : f32 to vector<4x8x100xf32>
    %182 = arith.addf %175, %181 : vector<4x8x100xf32>
    %c3_61 = arith.constant 3 : index
    %183 = memref.load %arg5[%c3_61] : memref<4xf32, #tpu.memory_space<smem>>
    %184 = vector.broadcast %183 : f32 to vector<4x8x100xf32>
    %185 = arith.addf %179, %184 : vector<4x8x100xf32>
    %c0_62 = arith.constant 0 : index
    %c3_63 = arith.constant 3 : index
    %c0_64 = arith.constant 0 : index
    %c0_65 = arith.constant 0 : index
    %186 = vector.load %arg12[%c0_62, %c3_63, %c0_64, %c0_65] : memref<4x4x8x100xf32, #tpu.memory_space<vmem>>, vector<4x1x8x100xf32>
    %187 = vector.shape_cast %186 : vector<4x1x8x100xf32> to vector<4x8x100xf32>
    %188 = vector.shape_cast %182 : vector<4x8x100xf32> to vector<4x1x8x100xf32>
    tpu.vector_store %arg12[%c0_62, %c3_63, %c0_64, %c0_65], %188 {strides = array<i32>} : memref<4x4x8x100xf32, #tpu.memory_space<vmem>>, vector<4x1x8x100xf32>,
    %189 = arith.addf %182, %185 : vector<4x8x100xf32>
    %cst_66 = arith.constant 0.000000e+00 : f32
    %190 = vector.broadcast %cst_66 : f32 to vector<4x8x100xf32>
    %191 = arith.maximumf %189, %190 : vector<4x8x100xf32>
    %cst_67 = arith.constant 0.000000e+00 : f32
    %192 = vector.broadcast %cst_67 : f32 to vector<4x8x100xf32>
    %cst_68 = arith.constant 0.000000e+00 : f32
    %193 = vector.broadcast %cst_68 : f32 to vector<4x8x100xf32>
    %cst_69 = arith.constant 0.000000e+00 : f32
    %194 = vector.broadcast %cst_69 : f32 to vector<4x8x100xf32>
    %cst_70 = arith.constant 0.000000e+00 : f32
    %195 = vector.broadcast %cst_70 : f32 to vector<4x8x100xf32>
    %cst_71 = arith.constant 0.000000e+00 : f32
    %196 = vector.broadcast %cst_71 : f32 to vector<4x8x45xf32>
    %197 = vector.extract_strided_slice %53 {offsets = [0, 0, 0], sizes = [4, 8, 55], strides = [1, 1, 1]} : vector<4x8x100xf32> to vector<4x8x55xf32>
    %198 = tpu.concatenate %196, %197 in 2 : vector<4x8x45xf32>, vector<4x8x55xf32> -> vector<4x8x100xf32>
    %c0_72 = arith.constant 0 : index
    %199 = memref.load %arg6[%c0_72] : memref<96xf32, #tpu.memory_space<smem>>
    %200 = vector.broadcast %199 : f32 to vector<4x8x100xf32>
    %201 = arith.mulf %200, %198 : vector<4x8x100xf32>
    %202 = arith.addf %192, %201 : vector<4x8x100xf32>
    %c24 = arith.constant 24 : index
    %203 = memref.load %arg6[%c24] : memref<96xf32, #tpu.memory_space<smem>>
    %204 = vector.broadcast %203 : f32 to vector<4x8x100xf32>
    %205 = arith.mulf %204, %198 : vector<4x8x100xf32>
    %206 = arith.addf %193, %205 : vector<4x8x100xf32>
    %c48 = arith.constant 48 : index
    %207 = memref.load %arg6[%c48] : memref<96xf32, #tpu.memory_space<smem>>
    %208 = vector.broadcast %207 : f32 to vector<4x8x100xf32>
    %209 = arith.mulf %208, %198 : vector<4x8x100xf32>
    %210 = arith.addf %194, %209 : vector<4x8x100xf32>
    %c72 = arith.constant 72 : index
    %211 = memref.load %arg6[%c72] : memref<96xf32, #tpu.memory_space<smem>>
    %212 = vector.broadcast %211 : f32 to vector<4x8x100xf32>
    %213 = arith.mulf %212, %198 : vector<4x8x100xf32>
    %214 = arith.addf %195, %213 : vector<4x8x100xf32>
    %cst_73 = arith.constant 0.000000e+00 : f32
    %215 = vector.broadcast %cst_73 : f32 to vector<4x8x36xf32>
    %216 = vector.extract_strided_slice %53 {offsets = [0, 0, 0], sizes = [4, 8, 64], strides = [1, 1, 1]} : vector<4x8x100xf32> to vector<4x8x64xf32>
    %217 = tpu.concatenate %215, %216 in 2 : vector<4x8x36xf32>, vector<4x8x64xf32> -> vector<4x8x100xf32>
    %c1_74 = arith.constant 1 : index
    %218 = memref.load %arg6[%c1_74] : memref<96xf32, #tpu.memory_space<smem>>
    %219 = vector.broadcast %218 : f32 to vector<4x8x100xf32>
    %220 = arith.mulf %219, %217 : vector<4x8x100xf32>
    %221 = arith.addf %202, %220 : vector<4x8x100xf32>
    %c25 = arith.constant 25 : index
    %222 = memref.load %arg6[%c25] : memref<96xf32, #tpu.memory_space<smem>>
    %223 = vector.broadcast %222 : f32 to vector<4x8x100xf32>
    %224 = arith.mulf %223, %217 : vector<4x8x100xf32>
    %225 = arith.addf %206, %224 : vector<4x8x100xf32>
    %c49 = arith.constant 49 : index
    %226 = memref.load %arg6[%c49] : memref<96xf32, #tpu.memory_space<smem>>
    %227 = vector.broadcast %226 : f32 to vector<4x8x100xf32>
    %228 = arith.mulf %227, %217 : vector<4x8x100xf32>
    %229 = arith.addf %210, %228 : vector<4x8x100xf32>
    %c73 = arith.constant 73 : index
    %230 = memref.load %arg6[%c73] : memref<96xf32, #tpu.memory_space<smem>>
    %231 = vector.broadcast %230 : f32 to vector<4x8x100xf32>
    %232 = arith.mulf %231, %217 : vector<4x8x100xf32>
    %233 = arith.addf %214, %232 : vector<4x8x100xf32>
    %cst_75 = arith.constant 0.000000e+00 : f32
    %234 = vector.broadcast %cst_75 : f32 to vector<4x8x27xf32>
    %235 = vector.extract_strided_slice %53 {offsets = [0, 0, 0], sizes = [4, 8, 73], strides = [1, 1, 1]} : vector<4x8x100xf32> to vector<4x8x73xf32>
    %236 = tpu.concatenate %234, %235 in 2 : vector<4x8x27xf32>, vector<4x8x73xf32> -> vector<4x8x100xf32>
    %c2_76 = arith.constant 2 : index
    %237 = memref.load %arg6[%c2_76] : memref<96xf32, #tpu.memory_space<smem>>
    %238 = vector.broadcast %237 : f32 to vector<4x8x100xf32>
    %239 = arith.mulf %238, %236 : vector<4x8x100xf32>
    %240 = arith.addf %221, %239 : vector<4x8x100xf32>
    %c26 = arith.constant 26 : index
    %241 = memref.load %arg6[%c26] : memref<96xf32, #tpu.memory_space<smem>>
    %242 = vector.broadcast %241 : f32 to vector<4x8x100xf32>
    %243 = arith.mulf %242, %236 : vector<4x8x100xf32>
    %244 = arith.addf %225, %243 : vector<4x8x100xf32>
    %c50 = arith.constant 50 : index
    %245 = memref.load %arg6[%c50] : memref<96xf32, #tpu.memory_space<smem>>
    %246 = vector.broadcast %245 : f32 to vector<4x8x100xf32>
    %247 = arith.mulf %246, %236 : vector<4x8x100xf32>
    %248 = arith.addf %229, %247 : vector<4x8x100xf32>
    %c74 = arith.constant 74 : index
    %249 = memref.load %arg6[%c74] : memref<96xf32, #tpu.memory_space<smem>>
    %250 = vector.broadcast %249 : f32 to vector<4x8x100xf32>
    %251 = arith.mulf %250, %236 : vector<4x8x100xf32>
    %252 = arith.addf %233, %251 : vector<4x8x100xf32>
    %cst_77 = arith.constant 0.000000e+00 : f32
    %253 = vector.broadcast %cst_77 : f32 to vector<4x8x18xf32>
    %254 = vector.extract_strided_slice %53 {offsets = [0, 0, 0], sizes = [4, 8, 82], strides = [1, 1, 1]} : vector<4x8x100xf32> to vector<4x8x82xf32>
    %255 = tpu.concatenate %253, %254 in 2 : vector<4x8x18xf32>, vector<4x8x82xf32> -> vector<4x8x100xf32>
    %c3_78 = arith.constant 3 : index
    %256 = memref.load %arg6[%c3_78] : memref<96xf32, #tpu.memory_space<smem>>
    %257 = vector.broadcast %256 : f32 to vector<4x8x100xf32>
    %258 = arith.mulf %257, %255 : vector<4x8x100xf32>
    %259 = arith.addf %240, %258 : vector<4x8x100xf32>
    %c27 = arith.constant 27 : index
    %260 = memref.load %arg6[%c27] : memref<96xf32, #tpu.memory_space<smem>>
    %261 = vector.broadcast %260 : f32 to vector<4x8x100xf32>
    %262 = arith.mulf %261, %255 : vector<4x8x100xf32>
    %263 = arith.addf %244, %262 : vector<4x8x100xf32>
    %c51 = arith.constant 51 : index
    %264 = memref.load %arg6[%c51] : memref<96xf32, #tpu.memory_space<smem>>
    %265 = vector.broadcast %264 : f32 to vector<4x8x100xf32>
    %266 = arith.mulf %265, %255 : vector<4x8x100xf32>
    %267 = arith.addf %248, %266 : vector<4x8x100xf32>
    %c75 = arith.constant 75 : index
    %268 = memref.load %arg6[%c75] : memref<96xf32, #tpu.memory_space<smem>>
    %269 = vector.broadcast %268 : f32 to vector<4x8x100xf32>
    %270 = arith.mulf %269, %255 : vector<4x8x100xf32>
    %271 = arith.addf %252, %270 : vector<4x8x100xf32>
    %cst_79 = arith.constant 0.000000e+00 : f32
    %272 = vector.broadcast %cst_79 : f32 to vector<4x8x9xf32>
    %273 = vector.extract_strided_slice %53 {offsets = [0, 0, 0], sizes = [4, 8, 91], strides = [1, 1, 1]} : vector<4x8x100xf32> to vector<4x8x91xf32>
    %274 = tpu.concatenate %272, %273 in 2 : vector<4x8x9xf32>, vector<4x8x91xf32> -> vector<4x8x100xf32>
    %c4_80 = arith.constant 4 : index
    %275 = memref.load %arg6[%c4_80] : memref<96xf32, #tpu.memory_space<smem>>
    %276 = vector.broadcast %275 : f32 to vector<4x8x100xf32>
    %277 = arith.mulf %276, %274 : vector<4x8x100xf32>
    %278 = arith.addf %259, %277 : vector<4x8x100xf32>
    %c28 = arith.constant 28 : index
    %279 = memref.load %arg6[%c28] : memref<96xf32, #tpu.memory_space<smem>>
    %280 = vector.broadcast %279 : f32 to vector<4x8x100xf32>
    %281 = arith.mulf %280, %274 : vector<4x8x100xf32>
    %282 = arith.addf %263, %281 : vector<4x8x100xf32>
    %c52 = arith.constant 52 : index
    %283 = memref.load %arg6[%c52] : memref<96xf32, #tpu.memory_space<smem>>
    %284 = vector.broadcast %283 : f32 to vector<4x8x100xf32>
    %285 = arith.mulf %284, %274 : vector<4x8x100xf32>
    %286 = arith.addf %267, %285 : vector<4x8x100xf32>
    %c76 = arith.constant 76 : index
    %287 = memref.load %arg6[%c76] : memref<96xf32, #tpu.memory_space<smem>>
    %288 = vector.broadcast %287 : f32 to vector<4x8x100xf32>
    %289 = arith.mulf %288, %274 : vector<4x8x100xf32>
    %290 = arith.addf %271, %289 : vector<4x8x100xf32>
    %c5_81 = arith.constant 5 : index
    %291 = memref.load %arg6[%c5_81] : memref<96xf32, #tpu.memory_space<smem>>
    %292 = vector.broadcast %291 : f32 to vector<4x8x100xf32>
    %293 = arith.mulf %292, %53 : vector<4x8x100xf32>
    %294 = arith.addf %278, %293 : vector<4x8x100xf32>
    %c29 = arith.constant 29 : index
    %295 = memref.load %arg6[%c29] : memref<96xf32, #tpu.memory_space<smem>>
    %296 = vector.broadcast %295 : f32 to vector<4x8x100xf32>
    %297 = arith.mulf %296, %53 : vector<4x8x100xf32>
    %298 = arith.addf %282, %297 : vector<4x8x100xf32>
    %c53 = arith.constant 53 : index
    %299 = memref.load %arg6[%c53] : memref<96xf32, #tpu.memory_space<smem>>
    %300 = vector.broadcast %299 : f32 to vector<4x8x100xf32>
    %301 = arith.mulf %300, %53 : vector<4x8x100xf32>
    %302 = arith.addf %286, %301 : vector<4x8x100xf32>
    %c77 = arith.constant 77 : index
    %303 = memref.load %arg6[%c77] : memref<96xf32, #tpu.memory_space<smem>>
    %304 = vector.broadcast %303 : f32 to vector<4x8x100xf32>
    %305 = arith.mulf %304, %53 : vector<4x8x100xf32>
    %306 = arith.addf %290, %305 : vector<4x8x100xf32>
    %cst_82 = arith.constant 0.000000e+00 : f32
    %307 = vector.broadcast %cst_82 : f32 to vector<4x8x45xf32>
    %308 = vector.extract_strided_slice %99 {offsets = [0, 0, 0], sizes = [4, 8, 55], strides = [1, 1, 1]} : vector<4x8x100xf32> to vector<4x8x55xf32>
    %309 = tpu.concatenate %307, %308 in 2 : vector<4x8x45xf32>, vector<4x8x55xf32> -> vector<4x8x100xf32>
    %c6_83 = arith.constant 6 : index
    %310 = memref.load %arg6[%c6_83] : memref<96xf32, #tpu.memory_space<smem>>
    %311 = vector.broadcast %310 : f32 to vector<4x8x100xf32>
    %312 = arith.mulf %311, %309 : vector<4x8x100xf32>
    %313 = arith.addf %294, %312 : vector<4x8x100xf32>
    %c30 = arith.constant 30 : index
    %314 = memref.load %arg6[%c30] : memref<96xf32, #tpu.memory_space<smem>>
    %315 = vector.broadcast %314 : f32 to vector<4x8x100xf32>
    %316 = arith.mulf %315, %309 : vector<4x8x100xf32>
    %317 = arith.addf %298, %316 : vector<4x8x100xf32>
    %c54 = arith.constant 54 : index
    %318 = memref.load %arg6[%c54] : memref<96xf32, #tpu.memory_space<smem>>
    %319 = vector.broadcast %318 : f32 to vector<4x8x100xf32>
    %320 = arith.mulf %319, %309 : vector<4x8x100xf32>
    %321 = arith.addf %302, %320 : vector<4x8x100xf32>
    %c78 = arith.constant 78 : index
    %322 = memref.load %arg6[%c78] : memref<96xf32, #tpu.memory_space<smem>>
    %323 = vector.broadcast %322 : f32 to vector<4x8x100xf32>
    %324 = arith.mulf %323, %309 : vector<4x8x100xf32>
    %325 = arith.addf %306, %324 : vector<4x8x100xf32>
    %cst_84 = arith.constant 0.000000e+00 : f32
    %326 = vector.broadcast %cst_84 : f32 to vector<4x8x36xf32>
    %327 = vector.extract_strided_slice %99 {offsets = [0, 0, 0], sizes = [4, 8, 64], strides = [1, 1, 1]} : vector<4x8x100xf32> to vector<4x8x64xf32>
    %328 = tpu.concatenate %326, %327 in 2 : vector<4x8x36xf32>, vector<4x8x64xf32> -> vector<4x8x100xf32>
    %c7_85 = arith.constant 7 : index
    %329 = memref.load %arg6[%c7_85] : memref<96xf32, #tpu.memory_space<smem>>
    %330 = vector.broadcast %329 : f32 to vector<4x8x100xf32>
    %331 = arith.mulf %330, %328 : vector<4x8x100xf32>
    %332 = arith.addf %313, %331 : vector<4x8x100xf32>
    %c31 = arith.constant 31 : index
    %333 = memref.load %arg6[%c31] : memref<96xf32, #tpu.memory_space<smem>>
    %334 = vector.broadcast %333 : f32 to vector<4x8x100xf32>
    %335 = arith.mulf %334, %328 : vector<4x8x100xf32>
    %336 = arith.addf %317, %335 : vector<4x8x100xf32>
    %c55 = arith.constant 55 : index
    %337 = memref.load %arg6[%c55] : memref<96xf32, #tpu.memory_space<smem>>
    %338 = vector.broadcast %337 : f32 to vector<4x8x100xf32>
    %339 = arith.mulf %338, %328 : vector<4x8x100xf32>
    %340 = arith.addf %321, %339 : vector<4x8x100xf32>
    %c79 = arith.constant 79 : index
    %341 = memref.load %arg6[%c79] : memref<96xf32, #tpu.memory_space<smem>>
    %342 = vector.broadcast %341 : f32 to vector<4x8x100xf32>
    %343 = arith.mulf %342, %328 : vector<4x8x100xf32>
    %344 = arith.addf %325, %343 : vector<4x8x100xf32>
    %cst_86 = arith.constant 0.000000e+00 : f32
    %345 = vector.broadcast %cst_86 : f32 to vector<4x8x27xf32>
    %346 = vector.extract_strided_slice %99 {offsets = [0, 0, 0], sizes = [4, 8, 73], strides = [1, 1, 1]} : vector<4x8x100xf32> to vector<4x8x73xf32>
    %347 = tpu.concatenate %345, %346 in 2 : vector<4x8x27xf32>, vector<4x8x73xf32> -> vector<4x8x100xf32>
    %c8_87 = arith.constant 8 : index
    %348 = memref.load %arg6[%c8_87] : memref<96xf32, #tpu.memory_space<smem>>
    %349 = vector.broadcast %348 : f32 to vector<4x8x100xf32>
    %350 = arith.mulf %349, %347 : vector<4x8x100xf32>
    %351 = arith.addf %332, %350 : vector<4x8x100xf32>
    %c32 = arith.constant 32 : index
    %352 = memref.load %arg6[%c32] : memref<96xf32, #tpu.memory_space<smem>>
    %353 = vector.broadcast %352 : f32 to vector<4x8x100xf32>
    %354 = arith.mulf %353, %347 : vector<4x8x100xf32>
    %355 = arith.addf %336, %354 : vector<4x8x100xf32>
    %c56 = arith.constant 56 : index
    %356 = memref.load %arg6[%c56] : memref<96xf32, #tpu.memory_space<smem>>
    %357 = vector.broadcast %356 : f32 to vector<4x8x100xf32>
    %358 = arith.mulf %357, %347 : vector<4x8x100xf32>
    %359 = arith.addf %340, %358 : vector<4x8x100xf32>
    %c80 = arith.constant 80 : index
    %360 = memref.load %arg6[%c80] : memref<96xf32, #tpu.memory_space<smem>>
    %361 = vector.broadcast %360 : f32 to vector<4x8x100xf32>
    %362 = arith.mulf %361, %347 : vector<4x8x100xf32>
    %363 = arith.addf %344, %362 : vector<4x8x100xf32>
    %cst_88 = arith.constant 0.000000e+00 : f32
    %364 = vector.broadcast %cst_88 : f32 to vector<4x8x18xf32>
    %365 = vector.extract_strided_slice %99 {offsets = [0, 0, 0], sizes = [4, 8, 82], strides = [1, 1, 1]} : vector<4x8x100xf32> to vector<4x8x82xf32>
    %366 = tpu.concatenate %364, %365 in 2 : vector<4x8x18xf32>, vector<4x8x82xf32> -> vector<4x8x100xf32>
    %c9_89 = arith.constant 9 : index
    %367 = memref.load %arg6[%c9_89] : memref<96xf32, #tpu.memory_space<smem>>
    %368 = vector.broadcast %367 : f32 to vector<4x8x100xf32>
    %369 = arith.mulf %368, %366 : vector<4x8x100xf32>
    %370 = arith.addf %351, %369 : vector<4x8x100xf32>
    %c33 = arith.constant 33 : index
    %371 = memref.load %arg6[%c33] : memref<96xf32, #tpu.memory_space<smem>>
    %372 = vector.broadcast %371 : f32 to vector<4x8x100xf32>
    %373 = arith.mulf %372, %366 : vector<4x8x100xf32>
    %374 = arith.addf %355, %373 : vector<4x8x100xf32>
    %c57 = arith.constant 57 : index
    %375 = memref.load %arg6[%c57] : memref<96xf32, #tpu.memory_space<smem>>
    %376 = vector.broadcast %375 : f32 to vector<4x8x100xf32>
    %377 = arith.mulf %376, %366 : vector<4x8x100xf32>
    %378 = arith.addf %359, %377 : vector<4x8x100xf32>
    %c81 = arith.constant 81 : index
    %379 = memref.load %arg6[%c81] : memref<96xf32, #tpu.memory_space<smem>>
    %380 = vector.broadcast %379 : f32 to vector<4x8x100xf32>
    %381 = arith.mulf %380, %366 : vector<4x8x100xf32>
    %382 = arith.addf %363, %381 : vector<4x8x100xf32>
    %cst_90 = arith.constant 0.000000e+00 : f32
    %383 = vector.broadcast %cst_90 : f32 to vector<4x8x9xf32>
    %384 = vector.extract_strided_slice %99 {offsets = [0, 0, 0], sizes = [4, 8, 91], strides = [1, 1, 1]} : vector<4x8x100xf32> to vector<4x8x91xf32>
    %385 = tpu.concatenate %383, %384 in 2 : vector<4x8x9xf32>, vector<4x8x91xf32> -> vector<4x8x100xf32>
    %c10_91 = arith.constant 10 : index
    %386 = memref.load %arg6[%c10_91] : memref<96xf32, #tpu.memory_space<smem>>
    %387 = vector.broadcast %386 : f32 to vector<4x8x100xf32>
    %388 = arith.mulf %387, %385 : vector<4x8x100xf32>
    %389 = arith.addf %370, %388 : vector<4x8x100xf32>
    %c34 = arith.constant 34 : index
    %390 = memref.load %arg6[%c34] : memref<96xf32, #tpu.memory_space<smem>>
    %391 = vector.broadcast %390 : f32 to vector<4x8x100xf32>
    %392 = arith.mulf %391, %385 : vector<4x8x100xf32>
    %393 = arith.addf %374, %392 : vector<4x8x100xf32>
    %c58 = arith.constant 58 : index
    %394 = memref.load %arg6[%c58] : memref<96xf32, #tpu.memory_space<smem>>
    %395 = vector.broadcast %394 : f32 to vector<4x8x100xf32>
    %396 = arith.mulf %395, %385 : vector<4x8x100xf32>
    %397 = arith.addf %378, %396 : vector<4x8x100xf32>
    %c82 = arith.constant 82 : index
    %398 = memref.load %arg6[%c82] : memref<96xf32, #tpu.memory_space<smem>>
    %399 = vector.broadcast %398 : f32 to vector<4x8x100xf32>
    %400 = arith.mulf %399, %385 : vector<4x8x100xf32>
    %401 = arith.addf %382, %400 : vector<4x8x100xf32>
    %c11_92 = arith.constant 11 : index
    %402 = memref.load %arg6[%c11_92] : memref<96xf32, #tpu.memory_space<smem>>
    %403 = vector.broadcast %402 : f32 to vector<4x8x100xf32>
    %404 = arith.mulf %403, %99 : vector<4x8x100xf32>
    %405 = arith.addf %389, %404 : vector<4x8x100xf32>
    %c35 = arith.constant 35 : index
    %406 = memref.load %arg6[%c35] : memref<96xf32, #tpu.memory_space<smem>>
    %407 = vector.broadcast %406 : f32 to vector<4x8x100xf32>
    %408 = arith.mulf %407, %99 : vector<4x8x100xf32>
    %409 = arith.addf %393, %408 : vector<4x8x100xf32>
    %c59 = arith.constant 59 : index
    %410 = memref.load %arg6[%c59] : memref<96xf32, #tpu.memory_space<smem>>
    %411 = vector.broadcast %410 : f32 to vector<4x8x100xf32>
    %412 = arith.mulf %411, %99 : vector<4x8x100xf32>
    %413 = arith.addf %397, %412 : vector<4x8x100xf32>
    %c83 = arith.constant 83 : index
    %414 = memref.load %arg6[%c83] : memref<96xf32, #tpu.memory_space<smem>>
    %415 = vector.broadcast %414 : f32 to vector<4x8x100xf32>
    %416 = arith.mulf %415, %99 : vector<4x8x100xf32>
    %417 = arith.addf %401, %416 : vector<4x8x100xf32>
    %cst_93 = arith.constant 0.000000e+00 : f32
    %418 = vector.broadcast %cst_93 : f32 to vector<4x8x45xf32>
    %419 = vector.extract_strided_slice %145 {offsets = [0, 0, 0], sizes = [4, 8, 55], strides = [1, 1, 1]} : vector<4x8x100xf32> to vector<4x8x55xf32>
    %420 = tpu.concatenate %418, %419 in 2 : vector<4x8x45xf32>, vector<4x8x55xf32> -> vector<4x8x100xf32>
    %c12_94 = arith.constant 12 : index
    %421 = memref.load %arg6[%c12_94] : memref<96xf32, #tpu.memory_space<smem>>
    %422 = vector.broadcast %421 : f32 to vector<4x8x100xf32>
    %423 = arith.mulf %422, %420 : vector<4x8x100xf32>
    %424 = arith.addf %405, %423 : vector<4x8x100xf32>
    %c36 = arith.constant 36 : index
    %425 = memref.load %arg6[%c36] : memref<96xf32, #tpu.memory_space<smem>>
    %426 = vector.broadcast %425 : f32 to vector<4x8x100xf32>
    %427 = arith.mulf %426, %420 : vector<4x8x100xf32>
    %428 = arith.addf %409, %427 : vector<4x8x100xf32>
    %c60 = arith.constant 60 : index
    %429 = memref.load %arg6[%c60] : memref<96xf32, #tpu.memory_space<smem>>
    %430 = vector.broadcast %429 : f32 to vector<4x8x100xf32>
    %431 = arith.mulf %430, %420 : vector<4x8x100xf32>
    %432 = arith.addf %413, %431 : vector<4x8x100xf32>
    %c84 = arith.constant 84 : index
    %433 = memref.load %arg6[%c84] : memref<96xf32, #tpu.memory_space<smem>>
    %434 = vector.broadcast %433 : f32 to vector<4x8x100xf32>
    %435 = arith.mulf %434, %420 : vector<4x8x100xf32>
    %436 = arith.addf %417, %435 : vector<4x8x100xf32>
    %cst_95 = arith.constant 0.000000e+00 : f32
    %437 = vector.broadcast %cst_95 : f32 to vector<4x8x36xf32>
    %438 = vector.extract_strided_slice %145 {offsets = [0, 0, 0], sizes = [4, 8, 64], strides = [1, 1, 1]} : vector<4x8x100xf32> to vector<4x8x64xf32>
    %439 = tpu.concatenate %437, %438 in 2 : vector<4x8x36xf32>, vector<4x8x64xf32> -> vector<4x8x100xf32>
    %c13_96 = arith.constant 13 : index
    %440 = memref.load %arg6[%c13_96] : memref<96xf32, #tpu.memory_space<smem>>
    %441 = vector.broadcast %440 : f32 to vector<4x8x100xf32>
    %442 = arith.mulf %441, %439 : vector<4x8x100xf32>
    %443 = arith.addf %424, %442 : vector<4x8x100xf32>
    %c37 = arith.constant 37 : index
    %444 = memref.load %arg6[%c37] : memref<96xf32, #tpu.memory_space<smem>>
    %445 = vector.broadcast %444 : f32 to vector<4x8x100xf32>
    %446 = arith.mulf %445, %439 : vector<4x8x100xf32>
    %447 = arith.addf %428, %446 : vector<4x8x100xf32>
    %c61 = arith.constant 61 : index
    %448 = memref.load %arg6[%c61] : memref<96xf32, #tpu.memory_space<smem>>
    %449 = vector.broadcast %448 : f32 to vector<4x8x100xf32>
    %450 = arith.mulf %449, %439 : vector<4x8x100xf32>
    %451 = arith.addf %432, %450 : vector<4x8x100xf32>
    %c85 = arith.constant 85 : index
    %452 = memref.load %arg6[%c85] : memref<96xf32, #tpu.memory_space<smem>>
    %453 = vector.broadcast %452 : f32 to vector<4x8x100xf32>
    %454 = arith.mulf %453, %439 : vector<4x8x100xf32>
    %455 = arith.addf %436, %454 : vector<4x8x100xf32>
    %cst_97 = arith.constant 0.000000e+00 : f32
    %456 = vector.broadcast %cst_97 : f32 to vector<4x8x27xf32>
    %457 = vector.extract_strided_slice %145 {offsets = [0, 0, 0], sizes = [4, 8, 73], strides = [1, 1, 1]} : vector<4x8x100xf32> to vector<4x8x73xf32>
    %458 = tpu.concatenate %456, %457 in 2 : vector<4x8x27xf32>, vector<4x8x73xf32> -> vector<4x8x100xf32>
    %c14_98 = arith.constant 14 : index
    %459 = memref.load %arg6[%c14_98] : memref<96xf32, #tpu.memory_space<smem>>
    %460 = vector.broadcast %459 : f32 to vector<4x8x100xf32>
    %461 = arith.mulf %460, %458 : vector<4x8x100xf32>
    %462 = arith.addf %443, %461 : vector<4x8x100xf32>
    %c38 = arith.constant 38 : index
    %463 = memref.load %arg6[%c38] : memref<96xf32, #tpu.memory_space<smem>>
    %464 = vector.broadcast %463 : f32 to vector<4x8x100xf32>
    %465 = arith.mulf %464, %458 : vector<4x8x100xf32>
    %466 = arith.addf %447, %465 : vector<4x8x100xf32>
    %c62 = arith.constant 62 : index
    %467 = memref.load %arg6[%c62] : memref<96xf32, #tpu.memory_space<smem>>
    %468 = vector.broadcast %467 : f32 to vector<4x8x100xf32>
    %469 = arith.mulf %468, %458 : vector<4x8x100xf32>
    %470 = arith.addf %451, %469 : vector<4x8x100xf32>
    %c86 = arith.constant 86 : index
    %471 = memref.load %arg6[%c86] : memref<96xf32, #tpu.memory_space<smem>>
    %472 = vector.broadcast %471 : f32 to vector<4x8x100xf32>
    %473 = arith.mulf %472, %458 : vector<4x8x100xf32>
    %474 = arith.addf %455, %473 : vector<4x8x100xf32>
    %cst_99 = arith.constant 0.000000e+00 : f32
    %475 = vector.broadcast %cst_99 : f32 to vector<4x8x18xf32>
    %476 = vector.extract_strided_slice %145 {offsets = [0, 0, 0], sizes = [4, 8, 82], strides = [1, 1, 1]} : vector<4x8x100xf32> to vector<4x8x82xf32>
    %477 = tpu.concatenate %475, %476 in 2 : vector<4x8x18xf32>, vector<4x8x82xf32> -> vector<4x8x100xf32>
    %c15_100 = arith.constant 15 : index
    %478 = memref.load %arg6[%c15_100] : memref<96xf32, #tpu.memory_space<smem>>
    %479 = vector.broadcast %478 : f32 to vector<4x8x100xf32>
    %480 = arith.mulf %479, %477 : vector<4x8x100xf32>
    %481 = arith.addf %462, %480 : vector<4x8x100xf32>
    %c39 = arith.constant 39 : index
    %482 = memref.load %arg6[%c39] : memref<96xf32, #tpu.memory_space<smem>>
    %483 = vector.broadcast %482 : f32 to vector<4x8x100xf32>
    %484 = arith.mulf %483, %477 : vector<4x8x100xf32>
    %485 = arith.addf %466, %484 : vector<4x8x100xf32>
    %c63 = arith.constant 63 : index
    %486 = memref.load %arg6[%c63] : memref<96xf32, #tpu.memory_space<smem>>
    %487 = vector.broadcast %486 : f32 to vector<4x8x100xf32>
    %488 = arith.mulf %487, %477 : vector<4x8x100xf32>
    %489 = arith.addf %470, %488 : vector<4x8x100xf32>
    %c87 = arith.constant 87 : index
    %490 = memref.load %arg6[%c87] : memref<96xf32, #tpu.memory_space<smem>>
    %491 = vector.broadcast %490 : f32 to vector<4x8x100xf32>
    %492 = arith.mulf %491, %477 : vector<4x8x100xf32>
    %493 = arith.addf %474, %492 : vector<4x8x100xf32>
    %cst_101 = arith.constant 0.000000e+00 : f32
    %494 = vector.broadcast %cst_101 : f32 to vector<4x8x9xf32>
    %495 = vector.extract_strided_slice %145 {offsets = [0, 0, 0], sizes = [4, 8, 91], strides = [1, 1, 1]} : vector<4x8x100xf32> to vector<4x8x91xf32>
    %496 = tpu.concatenate %494, %495 in 2 : vector<4x8x9xf32>, vector<4x8x91xf32> -> vector<4x8x100xf32>
    %c16 = arith.constant 16 : index
    %497 = memref.load %arg6[%c16] : memref<96xf32, #tpu.memory_space<smem>>
    %498 = vector.broadcast %497 : f32 to vector<4x8x100xf32>
    %499 = arith.mulf %498, %496 : vector<4x8x100xf32>
    %500 = arith.addf %481, %499 : vector<4x8x100xf32>
    %c40 = arith.constant 40 : index
    %501 = memref.load %arg6[%c40] : memref<96xf32, #tpu.memory_space<smem>>
    %502 = vector.broadcast %501 : f32 to vector<4x8x100xf32>
    %503 = arith.mulf %502, %496 : vector<4x8x100xf32>
    %504 = arith.addf %485, %503 : vector<4x8x100xf32>
    %c64 = arith.constant 64 : index
    %505 = memref.load %arg6[%c64] : memref<96xf32, #tpu.memory_space<smem>>
    %506 = vector.broadcast %505 : f32 to vector<4x8x100xf32>
    %507 = arith.mulf %506, %496 : vector<4x8x100xf32>
    %508 = arith.addf %489, %507 : vector<4x8x100xf32>
    %c88 = arith.constant 88 : index
    %509 = memref.load %arg6[%c88] : memref<96xf32, #tpu.memory_space<smem>>
    %510 = vector.broadcast %509 : f32 to vector<4x8x100xf32>
    %511 = arith.mulf %510, %496 : vector<4x8x100xf32>
    %512 = arith.addf %493, %511 : vector<4x8x100xf32>
    %c17 = arith.constant 17 : index
    %513 = memref.load %arg6[%c17] : memref<96xf32, #tpu.memory_space<smem>>
    %514 = vector.broadcast %513 : f32 to vector<4x8x100xf32>
    %515 = arith.mulf %514, %145 : vector<4x8x100xf32>
    %516 = arith.addf %500, %515 : vector<4x8x100xf32>
    %c41 = arith.constant 41 : index
    %517 = memref.load %arg6[%c41] : memref<96xf32, #tpu.memory_space<smem>>
    %518 = vector.broadcast %517 : f32 to vector<4x8x100xf32>
    %519 = arith.mulf %518, %145 : vector<4x8x100xf32>
    %520 = arith.addf %504, %519 : vector<4x8x100xf32>
    %c65 = arith.constant 65 : index
    %521 = memref.load %arg6[%c65] : memref<96xf32, #tpu.memory_space<smem>>
    %522 = vector.broadcast %521 : f32 to vector<4x8x100xf32>
    %523 = arith.mulf %522, %145 : vector<4x8x100xf32>
    %524 = arith.addf %508, %523 : vector<4x8x100xf32>
    %c89 = arith.constant 89 : index
    %525 = memref.load %arg6[%c89] : memref<96xf32, #tpu.memory_space<smem>>
    %526 = vector.broadcast %525 : f32 to vector<4x8x100xf32>
    %527 = arith.mulf %526, %145 : vector<4x8x100xf32>
    %528 = arith.addf %512, %527 : vector<4x8x100xf32>
    %cst_102 = arith.constant 0.000000e+00 : f32
    %529 = vector.broadcast %cst_102 : f32 to vector<4x8x45xf32>
    %530 = vector.extract_strided_slice %191 {offsets = [0, 0, 0], sizes = [4, 8, 55], strides = [1, 1, 1]} : vector<4x8x100xf32> to vector<4x8x55xf32>
    %531 = tpu.concatenate %529, %530 in 2 : vector<4x8x45xf32>, vector<4x8x55xf32> -> vector<4x8x100xf32>
    %c18 = arith.constant 18 : index
    %532 = memref.load %arg6[%c18] : memref<96xf32, #tpu.memory_space<smem>>
    %533 = vector.broadcast %532 : f32 to vector<4x8x100xf32>
    %534 = arith.mulf %533, %531 : vector<4x8x100xf32>
    %535 = arith.addf %516, %534 : vector<4x8x100xf32>
    %c42 = arith.constant 42 : index
    %536 = memref.load %arg6[%c42] : memref<96xf32, #tpu.memory_space<smem>>
    %537 = vector.broadcast %536 : f32 to vector<4x8x100xf32>
    %538 = arith.mulf %537, %531 : vector<4x8x100xf32>
    %539 = arith.addf %520, %538 : vector<4x8x100xf32>
    %c66 = arith.constant 66 : index
    %540 = memref.load %arg6[%c66] : memref<96xf32, #tpu.memory_space<smem>>
    %541 = vector.broadcast %540 : f32 to vector<4x8x100xf32>
    %542 = arith.mulf %541, %531 : vector<4x8x100xf32>
    %543 = arith.addf %524, %542 : vector<4x8x100xf32>
    %c90 = arith.constant 90 : index
    %544 = memref.load %arg6[%c90] : memref<96xf32, #tpu.memory_space<smem>>
    %545 = vector.broadcast %544 : f32 to vector<4x8x100xf32>
    %546 = arith.mulf %545, %531 : vector<4x8x100xf32>
    %547 = arith.addf %528, %546 : vector<4x8x100xf32>
    %cst_103 = arith.constant 0.000000e+00 : f32
    %548 = vector.broadcast %cst_103 : f32 to vector<4x8x36xf32>
    %549 = vector.extract_strided_slice %191 {offsets = [0, 0, 0], sizes = [4, 8, 64], strides = [1, 1, 1]} : vector<4x8x100xf32> to vector<4x8x64xf32>
    %550 = tpu.concatenate %548, %549 in 2 : vector<4x8x36xf32>, vector<4x8x64xf32> -> vector<4x8x100xf32>
    %c19 = arith.constant 19 : index
    %551 = memref.load %arg6[%c19] : memref<96xf32, #tpu.memory_space<smem>>
    %552 = vector.broadcast %551 : f32 to vector<4x8x100xf32>
    %553 = arith.mulf %552, %550 : vector<4x8x100xf32>
    %554 = arith.addf %535, %553 : vector<4x8x100xf32>
    %c43 = arith.constant 43 : index
    %555 = memref.load %arg6[%c43] : memref<96xf32, #tpu.memory_space<smem>>
    %556 = vector.broadcast %555 : f32 to vector<4x8x100xf32>
    %557 = arith.mulf %556, %550 : vector<4x8x100xf32>
    %558 = arith.addf %539, %557 : vector<4x8x100xf32>
    %c67 = arith.constant 67 : index
    %559 = memref.load %arg6[%c67] : memref<96xf32, #tpu.memory_space<smem>>
    %560 = vector.broadcast %559 : f32 to vector<4x8x100xf32>
    %561 = arith.mulf %560, %550 : vector<4x8x100xf32>
    %562 = arith.addf %543, %561 : vector<4x8x100xf32>
    %c91 = arith.constant 91 : index
    %563 = memref.load %arg6[%c91] : memref<96xf32, #tpu.memory_space<smem>>
    %564 = vector.broadcast %563 : f32 to vector<4x8x100xf32>
    %565 = arith.mulf %564, %550 : vector<4x8x100xf32>
    %566 = arith.addf %547, %565 : vector<4x8x100xf32>
    %cst_104 = arith.constant 0.000000e+00 : f32
    %567 = vector.broadcast %cst_104 : f32 to vector<4x8x27xf32>
    %568 = vector.extract_strided_slice %191 {offsets = [0, 0, 0], sizes = [4, 8, 73], strides = [1, 1, 1]} : vector<4x8x100xf32> to vector<4x8x73xf32>
    %569 = tpu.concatenate %567, %568 in 2 : vector<4x8x27xf32>, vector<4x8x73xf32> -> vector<4x8x100xf32>
    %c20 = arith.constant 20 : index
    %570 = memref.load %arg6[%c20] : memref<96xf32, #tpu.memory_space<smem>>
    %571 = vector.broadcast %570 : f32 to vector<4x8x100xf32>
    %572 = arith.mulf %571, %569 : vector<4x8x100xf32>
    %573 = arith.addf %554, %572 : vector<4x8x100xf32>
    %c44 = arith.constant 44 : index
    %574 = memref.load %arg6[%c44] : memref<96xf32, #tpu.memory_space<smem>>
    %575 = vector.broadcast %574 : f32 to vector<4x8x100xf32>
    %576 = arith.mulf %575, %569 : vector<4x8x100xf32>
    %577 = arith.addf %558, %576 : vector<4x8x100xf32>
    %c68 = arith.constant 68 : index
    %578 = memref.load %arg6[%c68] : memref<96xf32, #tpu.memory_space<smem>>
    %579 = vector.broadcast %578 : f32 to vector<4x8x100xf32>
    %580 = arith.mulf %579, %569 : vector<4x8x100xf32>
    %581 = arith.addf %562, %580 : vector<4x8x100xf32>
    %c92 = arith.constant 92 : index
    %582 = memref.load %arg6[%c92] : memref<96xf32, #tpu.memory_space<smem>>
    %583 = vector.broadcast %582 : f32 to vector<4x8x100xf32>
    %584 = arith.mulf %583, %569 : vector<4x8x100xf32>
    %585 = arith.addf %566, %584 : vector<4x8x100xf32>
    %cst_105 = arith.constant 0.000000e+00 : f32
    %586 = vector.broadcast %cst_105 : f32 to vector<4x8x18xf32>
    %587 = vector.extract_strided_slice %191 {offsets = [0, 0, 0], sizes = [4, 8, 82], strides = [1, 1, 1]} : vector<4x8x100xf32> to vector<4x8x82xf32>
    %588 = tpu.concatenate %586, %587 in 2 : vector<4x8x18xf32>, vector<4x8x82xf32> -> vector<4x8x100xf32>
    %c21 = arith.constant 21 : index
    %589 = memref.load %arg6[%c21] : memref<96xf32, #tpu.memory_space<smem>>
    %590 = vector.broadcast %589 : f32 to vector<4x8x100xf32>
    %591 = arith.mulf %590, %588 : vector<4x8x100xf32>
    %592 = arith.addf %573, %591 : vector<4x8x100xf32>
    %c45 = arith.constant 45 : index
    %593 = memref.load %arg6[%c45] : memref<96xf32, #tpu.memory_space<smem>>
    %594 = vector.broadcast %593 : f32 to vector<4x8x100xf32>
    %595 = arith.mulf %594, %588 : vector<4x8x100xf32>
    %596 = arith.addf %577, %595 : vector<4x8x100xf32>
    %c69 = arith.constant 69 : index
    %597 = memref.load %arg6[%c69] : memref<96xf32, #tpu.memory_space<smem>>
    %598 = vector.broadcast %597 : f32 to vector<4x8x100xf32>
    %599 = arith.mulf %598, %588 : vector<4x8x100xf32>
    %600 = arith.addf %581, %599 : vector<4x8x100xf32>
    %c93 = arith.constant 93 : index
    %601 = memref.load %arg6[%c93] : memref<96xf32, #tpu.memory_space<smem>>
    %602 = vector.broadcast %601 : f32 to vector<4x8x100xf32>
    %603 = arith.mulf %602, %588 : vector<4x8x100xf32>
    %604 = arith.addf %585, %603 : vector<4x8x100xf32>
    %cst_106 = arith.constant 0.000000e+00 : f32
    %605 = vector.broadcast %cst_106 : f32 to vector<4x8x9xf32>
    %606 = vector.extract_strided_slice %191 {offsets = [0, 0, 0], sizes = [4, 8, 91], strides = [1, 1, 1]} : vector<4x8x100xf32> to vector<4x8x91xf32>
    %607 = tpu.concatenate %605, %606 in 2 : vector<4x8x9xf32>, vector<4x8x91xf32> -> vector<4x8x100xf32>
    %c22 = arith.constant 22 : index
    %608 = memref.load %arg6[%c22] : memref<96xf32, #tpu.memory_space<smem>>
    %609 = vector.broadcast %608 : f32 to vector<4x8x100xf32>
    %610 = arith.mulf %609, %607 : vector<4x8x100xf32>
    %611 = arith.addf %592, %610 : vector<4x8x100xf32>
    %c46 = arith.constant 46 : index
    %612 = memref.load %arg6[%c46] : memref<96xf32, #tpu.memory_space<smem>>
    %613 = vector.broadcast %612 : f32 to vector<4x8x100xf32>
    %614 = arith.mulf %613, %607 : vector<4x8x100xf32>
    %615 = arith.addf %596, %614 : vector<4x8x100xf32>
    %c70 = arith.constant 70 : index
    %616 = memref.load %arg6[%c70] : memref<96xf32, #tpu.memory_space<smem>>
    %617 = vector.broadcast %616 : f32 to vector<4x8x100xf32>
    %618 = arith.mulf %617, %607 : vector<4x8x100xf32>
    %619 = arith.addf %600, %618 : vector<4x8x100xf32>
    %c94 = arith.constant 94 : index
    %620 = memref.load %arg6[%c94] : memref<96xf32, #tpu.memory_space<smem>>
    %621 = vector.broadcast %620 : f32 to vector<4x8x100xf32>
    %622 = arith.mulf %621, %607 : vector<4x8x100xf32>
    %623 = arith.addf %604, %622 : vector<4x8x100xf32>
    %c23 = arith.constant 23 : index
    %624 = memref.load %arg6[%c23] : memref<96xf32, #tpu.memory_space<smem>>
    %625 = vector.broadcast %624 : f32 to vector<4x8x100xf32>
    %626 = arith.mulf %625, %191 : vector<4x8x100xf32>
    %627 = arith.addf %611, %626 : vector<4x8x100xf32>
    %c47 = arith.constant 47 : index
    %628 = memref.load %arg6[%c47] : memref<96xf32, #tpu.memory_space<smem>>
    %629 = vector.broadcast %628 : f32 to vector<4x8x100xf32>
    %630 = arith.mulf %629, %191 : vector<4x8x100xf32>
    %631 = arith.addf %615, %630 : vector<4x8x100xf32>
    %c71 = arith.constant 71 : index
    %632 = memref.load %arg6[%c71] : memref<96xf32, #tpu.memory_space<smem>>
    %633 = vector.broadcast %632 : f32 to vector<4x8x100xf32>
    %634 = arith.mulf %633, %191 : vector<4x8x100xf32>
    %635 = arith.addf %619, %634 : vector<4x8x100xf32>
    %c95 = arith.constant 95 : index
    %636 = memref.load %arg6[%c95] : memref<96xf32, #tpu.memory_space<smem>>
    %637 = vector.broadcast %636 : f32 to vector<4x8x100xf32>
    %638 = arith.mulf %637, %191 : vector<4x8x100xf32>
    %639 = arith.addf %623, %638 : vector<4x8x100xf32>
    %c0_107 = arith.constant 0 : index
    %640 = memref.load %arg7[%c0_107] : memref<4xf32, #tpu.memory_space<smem>>
    %641 = vector.broadcast %640 : f32 to vector<4x8x100xf32>
    %642 = arith.addf %627, %641 : vector<4x8x100xf32>
    %cst_108 = arith.constant 0.000000e+00 : f32
    %643 = vector.broadcast %cst_108 : f32 to vector<4x8x100xf32>
    %644 = arith.maximumf %642, %643 : vector<4x8x100xf32>
    %c1_109 = arith.constant 1 : index
    %645 = memref.load %arg7[%c1_109] : memref<4xf32, #tpu.memory_space<smem>>
    %646 = vector.broadcast %645 : f32 to vector<4x8x100xf32>
    %647 = arith.addf %631, %646 : vector<4x8x100xf32>
    %cst_110 = arith.constant 0.000000e+00 : f32
    %648 = vector.broadcast %cst_110 : f32 to vector<4x8x100xf32>
    %649 = arith.maximumf %647, %648 : vector<4x8x100xf32>
    %c2_111 = arith.constant 2 : index
    %650 = memref.load %arg7[%c2_111] : memref<4xf32, #tpu.memory_space<smem>>
    %651 = vector.broadcast %650 : f32 to vector<4x8x100xf32>
    %652 = arith.addf %635, %651 : vector<4x8x100xf32>
    %cst_112 = arith.constant 0.000000e+00 : f32
    %653 = vector.broadcast %cst_112 : f32 to vector<4x8x100xf32>
    %654 = arith.maximumf %652, %653 : vector<4x8x100xf32>
    %c3_113 = arith.constant 3 : index
    %655 = memref.load %arg7[%c3_113] : memref<4xf32, #tpu.memory_space<smem>>
    %656 = vector.broadcast %655 : f32 to vector<4x8x100xf32>
    %657 = arith.addf %639, %656 : vector<4x8x100xf32>
    %cst_114 = arith.constant 0.000000e+00 : f32
    %658 = vector.broadcast %cst_114 : f32 to vector<4x8x100xf32>
    %659 = arith.maximumf %657, %658 : vector<4x8x100xf32>
    %cst_115 = arith.constant 0.000000e+00 : f32
    %660 = vector.broadcast %cst_115 : f32 to vector<4x8x100xf32>
    %cst_116 = arith.constant 0.000000e+00 : f32
    %661 = vector.broadcast %cst_116 : f32 to vector<4x8x100xf32>
    %cst_117 = arith.constant 0.000000e+00 : f32
    %662 = vector.broadcast %cst_117 : f32 to vector<4x8x100xf32>
    %cst_118 = arith.constant 0.000000e+00 : f32
    %663 = vector.broadcast %cst_118 : f32 to vector<4x8x100xf32>
    %cst_119 = arith.constant 0.000000e+00 : f32
    %664 = vector.broadcast %cst_119 : f32 to vector<4x8x45xf32>
    %665 = vector.extract_strided_slice %644 {offsets = [0, 0, 0], sizes = [4, 8, 55], strides = [1, 1, 1]} : vector<4x8x100xf32> to vector<4x8x55xf32>
    %666 = tpu.concatenate %664, %665 in 2 : vector<4x8x45xf32>, vector<4x8x55xf32> -> vector<4x8x100xf32>
    %c0_120 = arith.constant 0 : index
    %667 = memref.load %arg8[%c0_120] : memref<96xf32, #tpu.memory_space<smem>>
    %668 = vector.broadcast %667 : f32 to vector<4x8x100xf32>
    %669 = arith.mulf %668, %666 : vector<4x8x100xf32>
    %670 = arith.addf %660, %669 : vector<4x8x100xf32>
    %c24_121 = arith.constant 24 : index
    %671 = memref.load %arg8[%c24_121] : memref<96xf32, #tpu.memory_space<smem>>
    %672 = vector.broadcast %671 : f32 to vector<4x8x100xf32>
    %673 = arith.mulf %672, %666 : vector<4x8x100xf32>
    %674 = arith.addf %661, %673 : vector<4x8x100xf32>
    %c48_122 = arith.constant 48 : index
    %675 = memref.load %arg8[%c48_122] : memref<96xf32, #tpu.memory_space<smem>>
    %676 = vector.broadcast %675 : f32 to vector<4x8x100xf32>
    %677 = arith.mulf %676, %666 : vector<4x8x100xf32>
    %678 = arith.addf %662, %677 : vector<4x8x100xf32>
    %c72_123 = arith.constant 72 : index
    %679 = memref.load %arg8[%c72_123] : memref<96xf32, #tpu.memory_space<smem>>
    %680 = vector.broadcast %679 : f32 to vector<4x8x100xf32>
    %681 = arith.mulf %680, %666 : vector<4x8x100xf32>
    %682 = arith.addf %663, %681 : vector<4x8x100xf32>
    %cst_124 = arith.constant 0.000000e+00 : f32
    %683 = vector.broadcast %cst_124 : f32 to vector<4x8x36xf32>
    %684 = vector.extract_strided_slice %644 {offsets = [0, 0, 0], sizes = [4, 8, 64], strides = [1, 1, 1]} : vector<4x8x100xf32> to vector<4x8x64xf32>
    %685 = tpu.concatenate %683, %684 in 2 : vector<4x8x36xf32>, vector<4x8x64xf32> -> vector<4x8x100xf32>
    %c1_125 = arith.constant 1 : index
    %686 = memref.load %arg8[%c1_125] : memref<96xf32, #tpu.memory_space<smem>>
    %687 = vector.broadcast %686 : f32 to vector<4x8x100xf32>
    %688 = arith.mulf %687, %685 : vector<4x8x100xf32>
    %689 = arith.addf %670, %688 : vector<4x8x100xf32>
    %c25_126 = arith.constant 25 : index
    %690 = memref.load %arg8[%c25_126] : memref<96xf32, #tpu.memory_space<smem>>
    %691 = vector.broadcast %690 : f32 to vector<4x8x100xf32>
    %692 = arith.mulf %691, %685 : vector<4x8x100xf32>
    %693 = arith.addf %674, %692 : vector<4x8x100xf32>
    %c49_127 = arith.constant 49 : index
    %694 = memref.load %arg8[%c49_127] : memref<96xf32, #tpu.memory_space<smem>>
    %695 = vector.broadcast %694 : f32 to vector<4x8x100xf32>
    %696 = arith.mulf %695, %685 : vector<4x8x100xf32>
    %697 = arith.addf %678, %696 : vector<4x8x100xf32>
    %c73_128 = arith.constant 73 : index
    %698 = memref.load %arg8[%c73_128] : memref<96xf32, #tpu.memory_space<smem>>
    %699 = vector.broadcast %698 : f32 to vector<4x8x100xf32>
    %700 = arith.mulf %699, %685 : vector<4x8x100xf32>
    %701 = arith.addf %682, %700 : vector<4x8x100xf32>
    %cst_129 = arith.constant 0.000000e+00 : f32
    %702 = vector.broadcast %cst_129 : f32 to vector<4x8x27xf32>
    %703 = vector.extract_strided_slice %644 {offsets = [0, 0, 0], sizes = [4, 8, 73], strides = [1, 1, 1]} : vector<4x8x100xf32> to vector<4x8x73xf32>
    %704 = tpu.concatenate %702, %703 in 2 : vector<4x8x27xf32>, vector<4x8x73xf32> -> vector<4x8x100xf32>
    %c2_130 = arith.constant 2 : index
    %705 = memref.load %arg8[%c2_130] : memref<96xf32, #tpu.memory_space<smem>>
    %706 = vector.broadcast %705 : f32 to vector<4x8x100xf32>
    %707 = arith.mulf %706, %704 : vector<4x8x100xf32>
    %708 = arith.addf %689, %707 : vector<4x8x100xf32>
    %c26_131 = arith.constant 26 : index
    %709 = memref.load %arg8[%c26_131] : memref<96xf32, #tpu.memory_space<smem>>
    %710 = vector.broadcast %709 : f32 to vector<4x8x100xf32>
    %711 = arith.mulf %710, %704 : vector<4x8x100xf32>
    %712 = arith.addf %693, %711 : vector<4x8x100xf32>
    %c50_132 = arith.constant 50 : index
    %713 = memref.load %arg8[%c50_132] : memref<96xf32, #tpu.memory_space<smem>>
    %714 = vector.broadcast %713 : f32 to vector<4x8x100xf32>
    %715 = arith.mulf %714, %704 : vector<4x8x100xf32>
    %716 = arith.addf %697, %715 : vector<4x8x100xf32>
    %c74_133 = arith.constant 74 : index
    %717 = memref.load %arg8[%c74_133] : memref<96xf32, #tpu.memory_space<smem>>
    %718 = vector.broadcast %717 : f32 to vector<4x8x100xf32>
    %719 = arith.mulf %718, %704 : vector<4x8x100xf32>
    %720 = arith.addf %701, %719 : vector<4x8x100xf32>
    %cst_134 = arith.constant 0.000000e+00 : f32
    %721 = vector.broadcast %cst_134 : f32 to vector<4x8x18xf32>
    %722 = vector.extract_strided_slice %644 {offsets = [0, 0, 0], sizes = [4, 8, 82], strides = [1, 1, 1]} : vector<4x8x100xf32> to vector<4x8x82xf32>
    %723 = tpu.concatenate %721, %722 in 2 : vector<4x8x18xf32>, vector<4x8x82xf32> -> vector<4x8x100xf32>
    %c3_135 = arith.constant 3 : index
    %724 = memref.load %arg8[%c3_135] : memref<96xf32, #tpu.memory_space<smem>>
    %725 = vector.broadcast %724 : f32 to vector<4x8x100xf32>
    %726 = arith.mulf %725, %723 : vector<4x8x100xf32>
    %727 = arith.addf %708, %726 : vector<4x8x100xf32>
    %c27_136 = arith.constant 27 : index
    %728 = memref.load %arg8[%c27_136] : memref<96xf32, #tpu.memory_space<smem>>
    %729 = vector.broadcast %728 : f32 to vector<4x8x100xf32>
    %730 = arith.mulf %729, %723 : vector<4x8x100xf32>
    %731 = arith.addf %712, %730 : vector<4x8x100xf32>
    %c51_137 = arith.constant 51 : index
    %732 = memref.load %arg8[%c51_137] : memref<96xf32, #tpu.memory_space<smem>>
    %733 = vector.broadcast %732 : f32 to vector<4x8x100xf32>
    %734 = arith.mulf %733, %723 : vector<4x8x100xf32>
    %735 = arith.addf %716, %734 : vector<4x8x100xf32>
    %c75_138 = arith.constant 75 : index
    %736 = memref.load %arg8[%c75_138] : memref<96xf32, #tpu.memory_space<smem>>
    %737 = vector.broadcast %736 : f32 to vector<4x8x100xf32>
    %738 = arith.mulf %737, %723 : vector<4x8x100xf32>
    %739 = arith.addf %720, %738 : vector<4x8x100xf32>
    %cst_139 = arith.constant 0.000000e+00 : f32
    %740 = vector.broadcast %cst_139 : f32 to vector<4x8x9xf32>
    %741 = vector.extract_strided_slice %644 {offsets = [0, 0, 0], sizes = [4, 8, 91], strides = [1, 1, 1]} : vector<4x8x100xf32> to vector<4x8x91xf32>
    %742 = tpu.concatenate %740, %741 in 2 : vector<4x8x9xf32>, vector<4x8x91xf32> -> vector<4x8x100xf32>
    %c4_140 = arith.constant 4 : index
    %743 = memref.load %arg8[%c4_140] : memref<96xf32, #tpu.memory_space<smem>>
    %744 = vector.broadcast %743 : f32 to vector<4x8x100xf32>
    %745 = arith.mulf %744, %742 : vector<4x8x100xf32>
    %746 = arith.addf %727, %745 : vector<4x8x100xf32>
    %c28_141 = arith.constant 28 : index
    %747 = memref.load %arg8[%c28_141] : memref<96xf32, #tpu.memory_space<smem>>
    %748 = vector.broadcast %747 : f32 to vector<4x8x100xf32>
    %749 = arith.mulf %748, %742 : vector<4x8x100xf32>
    %750 = arith.addf %731, %749 : vector<4x8x100xf32>
    %c52_142 = arith.constant 52 : index
    %751 = memref.load %arg8[%c52_142] : memref<96xf32, #tpu.memory_space<smem>>
    %752 = vector.broadcast %751 : f32 to vector<4x8x100xf32>
    %753 = arith.mulf %752, %742 : vector<4x8x100xf32>
    %754 = arith.addf %735, %753 : vector<4x8x100xf32>
    %c76_143 = arith.constant 76 : index
    %755 = memref.load %arg8[%c76_143] : memref<96xf32, #tpu.memory_space<smem>>
    %756 = vector.broadcast %755 : f32 to vector<4x8x100xf32>
    %757 = arith.mulf %756, %742 : vector<4x8x100xf32>
    %758 = arith.addf %739, %757 : vector<4x8x100xf32>
    %c5_144 = arith.constant 5 : index
    %759 = memref.load %arg8[%c5_144] : memref<96xf32, #tpu.memory_space<smem>>
    %760 = vector.broadcast %759 : f32 to vector<4x8x100xf32>
    %761 = arith.mulf %760, %644 : vector<4x8x100xf32>
    %762 = arith.addf %746, %761 : vector<4x8x100xf32>
    %c29_145 = arith.constant 29 : index
    %763 = memref.load %arg8[%c29_145] : memref<96xf32, #tpu.memory_space<smem>>
    %764 = vector.broadcast %763 : f32 to vector<4x8x100xf32>
    %765 = arith.mulf %764, %644 : vector<4x8x100xf32>
    %766 = arith.addf %750, %765 : vector<4x8x100xf32>
    %c53_146 = arith.constant 53 : index
    %767 = memref.load %arg8[%c53_146] : memref<96xf32, #tpu.memory_space<smem>>
    %768 = vector.broadcast %767 : f32 to vector<4x8x100xf32>
    %769 = arith.mulf %768, %644 : vector<4x8x100xf32>
    %770 = arith.addf %754, %769 : vector<4x8x100xf32>
    %c77_147 = arith.constant 77 : index
    %771 = memref.load %arg8[%c77_147] : memref<96xf32, #tpu.memory_space<smem>>
    %772 = vector.broadcast %771 : f32 to vector<4x8x100xf32>
    %773 = arith.mulf %772, %644 : vector<4x8x100xf32>
    %774 = arith.addf %758, %773 : vector<4x8x100xf32>
    %cst_148 = arith.constant 0.000000e+00 : f32
    %775 = vector.broadcast %cst_148 : f32 to vector<4x8x45xf32>
    %776 = vector.extract_strided_slice %649 {offsets = [0, 0, 0], sizes = [4, 8, 55], strides = [1, 1, 1]} : vector<4x8x100xf32> to vector<4x8x55xf32>
    %777 = tpu.concatenate %775, %776 in 2 : vector<4x8x45xf32>, vector<4x8x55xf32> -> vector<4x8x100xf32>
    %c6_149 = arith.constant 6 : index
    %778 = memref.load %arg8[%c6_149] : memref<96xf32, #tpu.memory_space<smem>>
    %779 = vector.broadcast %778 : f32 to vector<4x8x100xf32>
    %780 = arith.mulf %779, %777 : vector<4x8x100xf32>
    %781 = arith.addf %762, %780 : vector<4x8x100xf32>
    %c30_150 = arith.constant 30 : index
    %782 = memref.load %arg8[%c30_150] : memref<96xf32, #tpu.memory_space<smem>>
    %783 = vector.broadcast %782 : f32 to vector<4x8x100xf32>
    %784 = arith.mulf %783, %777 : vector<4x8x100xf32>
    %785 = arith.addf %766, %784 : vector<4x8x100xf32>
    %c54_151 = arith.constant 54 : index
    %786 = memref.load %arg8[%c54_151] : memref<96xf32, #tpu.memory_space<smem>>
    %787 = vector.broadcast %786 : f32 to vector<4x8x100xf32>
    %788 = arith.mulf %787, %777 : vector<4x8x100xf32>
    %789 = arith.addf %770, %788 : vector<4x8x100xf32>
    %c78_152 = arith.constant 78 : index
    %790 = memref.load %arg8[%c78_152] : memref<96xf32, #tpu.memory_space<smem>>
    %791 = vector.broadcast %790 : f32 to vector<4x8x100xf32>
    %792 = arith.mulf %791, %777 : vector<4x8x100xf32>
    %793 = arith.addf %774, %792 : vector<4x8x100xf32>
    %cst_153 = arith.constant 0.000000e+00 : f32
    %794 = vector.broadcast %cst_153 : f32 to vector<4x8x36xf32>
    %795 = vector.extract_strided_slice %649 {offsets = [0, 0, 0], sizes = [4, 8, 64], strides = [1, 1, 1]} : vector<4x8x100xf32> to vector<4x8x64xf32>
    %796 = tpu.concatenate %794, %795 in 2 : vector<4x8x36xf32>, vector<4x8x64xf32> -> vector<4x8x100xf32>
    %c7_154 = arith.constant 7 : index
    %797 = memref.load %arg8[%c7_154] : memref<96xf32, #tpu.memory_space<smem>>
    %798 = vector.broadcast %797 : f32 to vector<4x8x100xf32>
    %799 = arith.mulf %798, %796 : vector<4x8x100xf32>
    %800 = arith.addf %781, %799 : vector<4x8x100xf32>
    %c31_155 = arith.constant 31 : index
    %801 = memref.load %arg8[%c31_155] : memref<96xf32, #tpu.memory_space<smem>>
    %802 = vector.broadcast %801 : f32 to vector<4x8x100xf32>
    %803 = arith.mulf %802, %796 : vector<4x8x100xf32>
    %804 = arith.addf %785, %803 : vector<4x8x100xf32>
    %c55_156 = arith.constant 55 : index
    %805 = memref.load %arg8[%c55_156] : memref<96xf32, #tpu.memory_space<smem>>
    %806 = vector.broadcast %805 : f32 to vector<4x8x100xf32>
    %807 = arith.mulf %806, %796 : vector<4x8x100xf32>
    %808 = arith.addf %789, %807 : vector<4x8x100xf32>
    %c79_157 = arith.constant 79 : index
    %809 = memref.load %arg8[%c79_157] : memref<96xf32, #tpu.memory_space<smem>>
    %810 = vector.broadcast %809 : f32 to vector<4x8x100xf32>
    %811 = arith.mulf %810, %796 : vector<4x8x100xf32>
    %812 = arith.addf %793, %811 : vector<4x8x100xf32>
    %cst_158 = arith.constant 0.000000e+00 : f32
    %813 = vector.broadcast %cst_158 : f32 to vector<4x8x27xf32>
    %814 = vector.extract_strided_slice %649 {offsets = [0, 0, 0], sizes = [4, 8, 73], strides = [1, 1, 1]} : vector<4x8x100xf32> to vector<4x8x73xf32>
    %815 = tpu.concatenate %813, %814 in 2 : vector<4x8x27xf32>, vector<4x8x73xf32> -> vector<4x8x100xf32>
    %c8_159 = arith.constant 8 : index
    %816 = memref.load %arg8[%c8_159] : memref<96xf32, #tpu.memory_space<smem>>
    %817 = vector.broadcast %816 : f32 to vector<4x8x100xf32>
    %818 = arith.mulf %817, %815 : vector<4x8x100xf32>
    %819 = arith.addf %800, %818 : vector<4x8x100xf32>
    %c32_160 = arith.constant 32 : index
    %820 = memref.load %arg8[%c32_160] : memref<96xf32, #tpu.memory_space<smem>>
    %821 = vector.broadcast %820 : f32 to vector<4x8x100xf32>
    %822 = arith.mulf %821, %815 : vector<4x8x100xf32>
    %823 = arith.addf %804, %822 : vector<4x8x100xf32>
    %c56_161 = arith.constant 56 : index
    %824 = memref.load %arg8[%c56_161] : memref<96xf32, #tpu.memory_space<smem>>
    %825 = vector.broadcast %824 : f32 to vector<4x8x100xf32>
    %826 = arith.mulf %825, %815 : vector<4x8x100xf32>
    %827 = arith.addf %808, %826 : vector<4x8x100xf32>
    %c80_162 = arith.constant 80 : index
    %828 = memref.load %arg8[%c80_162] : memref<96xf32, #tpu.memory_space<smem>>
    %829 = vector.broadcast %828 : f32 to vector<4x8x100xf32>
    %830 = arith.mulf %829, %815 : vector<4x8x100xf32>
    %831 = arith.addf %812, %830 : vector<4x8x100xf32>
    %cst_163 = arith.constant 0.000000e+00 : f32
    %832 = vector.broadcast %cst_163 : f32 to vector<4x8x18xf32>
    %833 = vector.extract_strided_slice %649 {offsets = [0, 0, 0], sizes = [4, 8, 82], strides = [1, 1, 1]} : vector<4x8x100xf32> to vector<4x8x82xf32>
    %834 = tpu.concatenate %832, %833 in 2 : vector<4x8x18xf32>, vector<4x8x82xf32> -> vector<4x8x100xf32>
    %c9_164 = arith.constant 9 : index
    %835 = memref.load %arg8[%c9_164] : memref<96xf32, #tpu.memory_space<smem>>
    %836 = vector.broadcast %835 : f32 to vector<4x8x100xf32>
    %837 = arith.mulf %836, %834 : vector<4x8x100xf32>
    %838 = arith.addf %819, %837 : vector<4x8x100xf32>
    %c33_165 = arith.constant 33 : index
    %839 = memref.load %arg8[%c33_165] : memref<96xf32, #tpu.memory_space<smem>>
    %840 = vector.broadcast %839 : f32 to vector<4x8x100xf32>
    %841 = arith.mulf %840, %834 : vector<4x8x100xf32>
    %842 = arith.addf %823, %841 : vector<4x8x100xf32>
    %c57_166 = arith.constant 57 : index
    %843 = memref.load %arg8[%c57_166] : memref<96xf32, #tpu.memory_space<smem>>
    %844 = vector.broadcast %843 : f32 to vector<4x8x100xf32>
    %845 = arith.mulf %844, %834 : vector<4x8x100xf32>
    %846 = arith.addf %827, %845 : vector<4x8x100xf32>
    %c81_167 = arith.constant 81 : index
    %847 = memref.load %arg8[%c81_167] : memref<96xf32, #tpu.memory_space<smem>>
    %848 = vector.broadcast %847 : f32 to vector<4x8x100xf32>
    %849 = arith.mulf %848, %834 : vector<4x8x100xf32>
    %850 = arith.addf %831, %849 : vector<4x8x100xf32>
    %cst_168 = arith.constant 0.000000e+00 : f32
    %851 = vector.broadcast %cst_168 : f32 to vector<4x8x9xf32>
    %852 = vector.extract_strided_slice %649 {offsets = [0, 0, 0], sizes = [4, 8, 91], strides = [1, 1, 1]} : vector<4x8x100xf32> to vector<4x8x91xf32>
    %853 = tpu.concatenate %851, %852 in 2 : vector<4x8x9xf32>, vector<4x8x91xf32> -> vector<4x8x100xf32>
    %c10_169 = arith.constant 10 : index
    %854 = memref.load %arg8[%c10_169] : memref<96xf32, #tpu.memory_space<smem>>
    %855 = vector.broadcast %854 : f32 to vector<4x8x100xf32>
    %856 = arith.mulf %855, %853 : vector<4x8x100xf32>
    %857 = arith.addf %838, %856 : vector<4x8x100xf32>
    %c34_170 = arith.constant 34 : index
    %858 = memref.load %arg8[%c34_170] : memref<96xf32, #tpu.memory_space<smem>>
    %859 = vector.broadcast %858 : f32 to vector<4x8x100xf32>
    %860 = arith.mulf %859, %853 : vector<4x8x100xf32>
    %861 = arith.addf %842, %860 : vector<4x8x100xf32>
    %c58_171 = arith.constant 58 : index
    %862 = memref.load %arg8[%c58_171] : memref<96xf32, #tpu.memory_space<smem>>
    %863 = vector.broadcast %862 : f32 to vector<4x8x100xf32>
    %864 = arith.mulf %863, %853 : vector<4x8x100xf32>
    %865 = arith.addf %846, %864 : vector<4x8x100xf32>
    %c82_172 = arith.constant 82 : index
    %866 = memref.load %arg8[%c82_172] : memref<96xf32, #tpu.memory_space<smem>>
    %867 = vector.broadcast %866 : f32 to vector<4x8x100xf32>
    %868 = arith.mulf %867, %853 : vector<4x8x100xf32>
    %869 = arith.addf %850, %868 : vector<4x8x100xf32>
    %c11_173 = arith.constant 11 : index
    %870 = memref.load %arg8[%c11_173] : memref<96xf32, #tpu.memory_space<smem>>
    %871 = vector.broadcast %870 : f32 to vector<4x8x100xf32>
    %872 = arith.mulf %871, %649 : vector<4x8x100xf32>
    %873 = arith.addf %857, %872 : vector<4x8x100xf32>
    %c35_174 = arith.constant 35 : index
    %874 = memref.load %arg8[%c35_174] : memref<96xf32, #tpu.memory_space<smem>>
    %875 = vector.broadcast %874 : f32 to vector<4x8x100xf32>
    %876 = arith.mulf %875, %649 : vector<4x8x100xf32>
    %877 = arith.addf %861, %876 : vector<4x8x100xf32>
    %c59_175 = arith.constant 59 : index
    %878 = memref.load %arg8[%c59_175] : memref<96xf32, #tpu.memory_space<smem>>
    %879 = vector.broadcast %878 : f32 to vector<4x8x100xf32>
    %880 = arith.mulf %879, %649 : vector<4x8x100xf32>
    %881 = arith.addf %865, %880 : vector<4x8x100xf32>
    %c83_176 = arith.constant 83 : index
    %882 = memref.load %arg8[%c83_176] : memref<96xf32, #tpu.memory_space<smem>>
    %883 = vector.broadcast %882 : f32 to vector<4x8x100xf32>
    %884 = arith.mulf %883, %649 : vector<4x8x100xf32>
    %885 = arith.addf %869, %884 : vector<4x8x100xf32>
    %cst_177 = arith.constant 0.000000e+00 : f32
    %886 = vector.broadcast %cst_177 : f32 to vector<4x8x45xf32>
    %887 = vector.extract_strided_slice %654 {offsets = [0, 0, 0], sizes = [4, 8, 55], strides = [1, 1, 1]} : vector<4x8x100xf32> to vector<4x8x55xf32>
    %888 = tpu.concatenate %886, %887 in 2 : vector<4x8x45xf32>, vector<4x8x55xf32> -> vector<4x8x100xf32>
    %c12_178 = arith.constant 12 : index
    %889 = memref.load %arg8[%c12_178] : memref<96xf32, #tpu.memory_space<smem>>
    %890 = vector.broadcast %889 : f32 to vector<4x8x100xf32>
    %891 = arith.mulf %890, %888 : vector<4x8x100xf32>
    %892 = arith.addf %873, %891 : vector<4x8x100xf32>
    %c36_179 = arith.constant 36 : index
    %893 = memref.load %arg8[%c36_179] : memref<96xf32, #tpu.memory_space<smem>>
    %894 = vector.broadcast %893 : f32 to vector<4x8x100xf32>
    %895 = arith.mulf %894, %888 : vector<4x8x100xf32>
    %896 = arith.addf %877, %895 : vector<4x8x100xf32>
    %c60_180 = arith.constant 60 : index
    %897 = memref.load %arg8[%c60_180] : memref<96xf32, #tpu.memory_space<smem>>
    %898 = vector.broadcast %897 : f32 to vector<4x8x100xf32>
    %899 = arith.mulf %898, %888 : vector<4x8x100xf32>
    %900 = arith.addf %881, %899 : vector<4x8x100xf32>
    %c84_181 = arith.constant 84 : index
    %901 = memref.load %arg8[%c84_181] : memref<96xf32, #tpu.memory_space<smem>>
    %902 = vector.broadcast %901 : f32 to vector<4x8x100xf32>
    %903 = arith.mulf %902, %888 : vector<4x8x100xf32>
    %904 = arith.addf %885, %903 : vector<4x8x100xf32>
    %cst_182 = arith.constant 0.000000e+00 : f32
    %905 = vector.broadcast %cst_182 : f32 to vector<4x8x36xf32>
    %906 = vector.extract_strided_slice %654 {offsets = [0, 0, 0], sizes = [4, 8, 64], strides = [1, 1, 1]} : vector<4x8x100xf32> to vector<4x8x64xf32>
    %907 = tpu.concatenate %905, %906 in 2 : vector<4x8x36xf32>, vector<4x8x64xf32> -> vector<4x8x100xf32>
    %c13_183 = arith.constant 13 : index
    %908 = memref.load %arg8[%c13_183] : memref<96xf32, #tpu.memory_space<smem>>
    %909 = vector.broadcast %908 : f32 to vector<4x8x100xf32>
    %910 = arith.mulf %909, %907 : vector<4x8x100xf32>
    %911 = arith.addf %892, %910 : vector<4x8x100xf32>
    %c37_184 = arith.constant 37 : index
    %912 = memref.load %arg8[%c37_184] : memref<96xf32, #tpu.memory_space<smem>>
    %913 = vector.broadcast %912 : f32 to vector<4x8x100xf32>
    %914 = arith.mulf %913, %907 : vector<4x8x100xf32>
    %915 = arith.addf %896, %914 : vector<4x8x100xf32>
    %c61_185 = arith.constant 61 : index
    %916 = memref.load %arg8[%c61_185] : memref<96xf32, #tpu.memory_space<smem>>
    %917 = vector.broadcast %916 : f32 to vector<4x8x100xf32>
    %918 = arith.mulf %917, %907 : vector<4x8x100xf32>
    %919 = arith.addf %900, %918 : vector<4x8x100xf32>
    %c85_186 = arith.constant 85 : index
    %920 = memref.load %arg8[%c85_186] : memref<96xf32, #tpu.memory_space<smem>>
    %921 = vector.broadcast %920 : f32 to vector<4x8x100xf32>
    %922 = arith.mulf %921, %907 : vector<4x8x100xf32>
    %923 = arith.addf %904, %922 : vector<4x8x100xf32>
    %cst_187 = arith.constant 0.000000e+00 : f32
    %924 = vector.broadcast %cst_187 : f32 to vector<4x8x27xf32>
    %925 = vector.extract_strided_slice %654 {offsets = [0, 0, 0], sizes = [4, 8, 73], strides = [1, 1, 1]} : vector<4x8x100xf32> to vector<4x8x73xf32>
    %926 = tpu.concatenate %924, %925 in 2 : vector<4x8x27xf32>, vector<4x8x73xf32> -> vector<4x8x100xf32>
    %c14_188 = arith.constant 14 : index
    %927 = memref.load %arg8[%c14_188] : memref<96xf32, #tpu.memory_space<smem>>
    %928 = vector.broadcast %927 : f32 to vector<4x8x100xf32>
    %929 = arith.mulf %928, %926 : vector<4x8x100xf32>
    %930 = arith.addf %911, %929 : vector<4x8x100xf32>
    %c38_189 = arith.constant 38 : index
    %931 = memref.load %arg8[%c38_189] : memref<96xf32, #tpu.memory_space<smem>>
    %932 = vector.broadcast %931 : f32 to vector<4x8x100xf32>
    %933 = arith.mulf %932, %926 : vector<4x8x100xf32>
    %934 = arith.addf %915, %933 : vector<4x8x100xf32>
    %c62_190 = arith.constant 62 : index
    %935 = memref.load %arg8[%c62_190] : memref<96xf32, #tpu.memory_space<smem>>
    %936 = vector.broadcast %935 : f32 to vector<4x8x100xf32>
    %937 = arith.mulf %936, %926 : vector<4x8x100xf32>
    %938 = arith.addf %919, %937 : vector<4x8x100xf32>
    %c86_191 = arith.constant 86 : index
    %939 = memref.load %arg8[%c86_191] : memref<96xf32, #tpu.memory_space<smem>>
    %940 = vector.broadcast %939 : f32 to vector<4x8x100xf32>
    %941 = arith.mulf %940, %926 : vector<4x8x100xf32>
    %942 = arith.addf %923, %941 : vector<4x8x100xf32>
    %cst_192 = arith.constant 0.000000e+00 : f32
    %943 = vector.broadcast %cst_192 : f32 to vector<4x8x18xf32>
    %944 = vector.extract_strided_slice %654 {offsets = [0, 0, 0], sizes = [4, 8, 82], strides = [1, 1, 1]} : vector<4x8x100xf32> to vector<4x8x82xf32>
    %945 = tpu.concatenate %943, %944 in 2 : vector<4x8x18xf32>, vector<4x8x82xf32> -> vector<4x8x100xf32>
    %c15_193 = arith.constant 15 : index
    %946 = memref.load %arg8[%c15_193] : memref<96xf32, #tpu.memory_space<smem>>
    %947 = vector.broadcast %946 : f32 to vector<4x8x100xf32>
    %948 = arith.mulf %947, %945 : vector<4x8x100xf32>
    %949 = arith.addf %930, %948 : vector<4x8x100xf32>
    %c39_194 = arith.constant 39 : index
    %950 = memref.load %arg8[%c39_194] : memref<96xf32, #tpu.memory_space<smem>>
    %951 = vector.broadcast %950 : f32 to vector<4x8x100xf32>
    %952 = arith.mulf %951, %945 : vector<4x8x100xf32>
    %953 = arith.addf %934, %952 : vector<4x8x100xf32>
    %c63_195 = arith.constant 63 : index
    %954 = memref.load %arg8[%c63_195] : memref<96xf32, #tpu.memory_space<smem>>
    %955 = vector.broadcast %954 : f32 to vector<4x8x100xf32>
    %956 = arith.mulf %955, %945 : vector<4x8x100xf32>
    %957 = arith.addf %938, %956 : vector<4x8x100xf32>
    %c87_196 = arith.constant 87 : index
    %958 = memref.load %arg8[%c87_196] : memref<96xf32, #tpu.memory_space<smem>>
    %959 = vector.broadcast %958 : f32 to vector<4x8x100xf32>
    %960 = arith.mulf %959, %945 : vector<4x8x100xf32>
    %961 = arith.addf %942, %960 : vector<4x8x100xf32>
    %cst_197 = arith.constant 0.000000e+00 : f32
    %962 = vector.broadcast %cst_197 : f32 to vector<4x8x9xf32>
    %963 = vector.extract_strided_slice %654 {offsets = [0, 0, 0], sizes = [4, 8, 91], strides = [1, 1, 1]} : vector<4x8x100xf32> to vector<4x8x91xf32>
    %964 = tpu.concatenate %962, %963 in 2 : vector<4x8x9xf32>, vector<4x8x91xf32> -> vector<4x8x100xf32>
    %c16_198 = arith.constant 16 : index
    %965 = memref.load %arg8[%c16_198] : memref<96xf32, #tpu.memory_space<smem>>
    %966 = vector.broadcast %965 : f32 to vector<4x8x100xf32>
    %967 = arith.mulf %966, %964 : vector<4x8x100xf32>
    %968 = arith.addf %949, %967 : vector<4x8x100xf32>
    %c40_199 = arith.constant 40 : index
    %969 = memref.load %arg8[%c40_199] : memref<96xf32, #tpu.memory_space<smem>>
    %970 = vector.broadcast %969 : f32 to vector<4x8x100xf32>
    %971 = arith.mulf %970, %964 : vector<4x8x100xf32>
    %972 = arith.addf %953, %971 : vector<4x8x100xf32>
    %c64_200 = arith.constant 64 : index
    %973 = memref.load %arg8[%c64_200] : memref<96xf32, #tpu.memory_space<smem>>
    %974 = vector.broadcast %973 : f32 to vector<4x8x100xf32>
    %975 = arith.mulf %974, %964 : vector<4x8x100xf32>
    %976 = arith.addf %957, %975 : vector<4x8x100xf32>
    %c88_201 = arith.constant 88 : index
    %977 = memref.load %arg8[%c88_201] : memref<96xf32, #tpu.memory_space<smem>>
    %978 = vector.broadcast %977 : f32 to vector<4x8x100xf32>
    %979 = arith.mulf %978, %964 : vector<4x8x100xf32>
    %980 = arith.addf %961, %979 : vector<4x8x100xf32>
    %c17_202 = arith.constant 17 : index
    %981 = memref.load %arg8[%c17_202] : memref<96xf32, #tpu.memory_space<smem>>
    %982 = vector.broadcast %981 : f32 to vector<4x8x100xf32>
    %983 = arith.mulf %982, %654 : vector<4x8x100xf32>
    %984 = arith.addf %968, %983 : vector<4x8x100xf32>
    %c41_203 = arith.constant 41 : index
    %985 = memref.load %arg8[%c41_203] : memref<96xf32, #tpu.memory_space<smem>>
    %986 = vector.broadcast %985 : f32 to vector<4x8x100xf32>
    %987 = arith.mulf %986, %654 : vector<4x8x100xf32>
    %988 = arith.addf %972, %987 : vector<4x8x100xf32>
    %c65_204 = arith.constant 65 : index
    %989 = memref.load %arg8[%c65_204] : memref<96xf32, #tpu.memory_space<smem>>
    %990 = vector.broadcast %989 : f32 to vector<4x8x100xf32>
    %991 = arith.mulf %990, %654 : vector<4x8x100xf32>
    %992 = arith.addf %976, %991 : vector<4x8x100xf32>
    %c89_205 = arith.constant 89 : index
    %993 = memref.load %arg8[%c89_205] : memref<96xf32, #tpu.memory_space<smem>>
    %994 = vector.broadcast %993 : f32 to vector<4x8x100xf32>
    %995 = arith.mulf %994, %654 : vector<4x8x100xf32>
    %996 = arith.addf %980, %995 : vector<4x8x100xf32>
    %cst_206 = arith.constant 0.000000e+00 : f32
    %997 = vector.broadcast %cst_206 : f32 to vector<4x8x45xf32>
    %998 = vector.extract_strided_slice %659 {offsets = [0, 0, 0], sizes = [4, 8, 55], strides = [1, 1, 1]} : vector<4x8x100xf32> to vector<4x8x55xf32>
    %999 = tpu.concatenate %997, %998 in 2 : vector<4x8x45xf32>, vector<4x8x55xf32> -> vector<4x8x100xf32>
    %c18_207 = arith.constant 18 : index
    %1000 = memref.load %arg8[%c18_207] : memref<96xf32, #tpu.memory_space<smem>>
    %1001 = vector.broadcast %1000 : f32 to vector<4x8x100xf32>
    %1002 = arith.mulf %1001, %999 : vector<4x8x100xf32>
    %1003 = arith.addf %984, %1002 : vector<4x8x100xf32>
    %c42_208 = arith.constant 42 : index
    %1004 = memref.load %arg8[%c42_208] : memref<96xf32, #tpu.memory_space<smem>>
    %1005 = vector.broadcast %1004 : f32 to vector<4x8x100xf32>
    %1006 = arith.mulf %1005, %999 : vector<4x8x100xf32>
    %1007 = arith.addf %988, %1006 : vector<4x8x100xf32>
    %c66_209 = arith.constant 66 : index
    %1008 = memref.load %arg8[%c66_209] : memref<96xf32, #tpu.memory_space<smem>>
    %1009 = vector.broadcast %1008 : f32 to vector<4x8x100xf32>
    %1010 = arith.mulf %1009, %999 : vector<4x8x100xf32>
    %1011 = arith.addf %992, %1010 : vector<4x8x100xf32>
    %c90_210 = arith.constant 90 : index
    %1012 = memref.load %arg8[%c90_210] : memref<96xf32, #tpu.memory_space<smem>>
    %1013 = vector.broadcast %1012 : f32 to vector<4x8x100xf32>
    %1014 = arith.mulf %1013, %999 : vector<4x8x100xf32>
    %1015 = arith.addf %996, %1014 : vector<4x8x100xf32>
    %cst_211 = arith.constant 0.000000e+00 : f32
    %1016 = vector.broadcast %cst_211 : f32 to vector<4x8x36xf32>
    %1017 = vector.extract_strided_slice %659 {offsets = [0, 0, 0], sizes = [4, 8, 64], strides = [1, 1, 1]} : vector<4x8x100xf32> to vector<4x8x64xf32>
    %1018 = tpu.concatenate %1016, %1017 in 2 : vector<4x8x36xf32>, vector<4x8x64xf32> -> vector<4x8x100xf32>
    %c19_212 = arith.constant 19 : index
    %1019 = memref.load %arg8[%c19_212] : memref<96xf32, #tpu.memory_space<smem>>
    %1020 = vector.broadcast %1019 : f32 to vector<4x8x100xf32>
    %1021 = arith.mulf %1020, %1018 : vector<4x8x100xf32>
    %1022 = arith.addf %1003, %1021 : vector<4x8x100xf32>
    %c43_213 = arith.constant 43 : index
    %1023 = memref.load %arg8[%c43_213] : memref<96xf32, #tpu.memory_space<smem>>
    %1024 = vector.broadcast %1023 : f32 to vector<4x8x100xf32>
    %1025 = arith.mulf %1024, %1018 : vector<4x8x100xf32>
    %1026 = arith.addf %1007, %1025 : vector<4x8x100xf32>
    %c67_214 = arith.constant 67 : index
    %1027 = memref.load %arg8[%c67_214] : memref<96xf32, #tpu.memory_space<smem>>
    %1028 = vector.broadcast %1027 : f32 to vector<4x8x100xf32>
    %1029 = arith.mulf %1028, %1018 : vector<4x8x100xf32>
    %1030 = arith.addf %1011, %1029 : vector<4x8x100xf32>
    %c91_215 = arith.constant 91 : index
    %1031 = memref.load %arg8[%c91_215] : memref<96xf32, #tpu.memory_space<smem>>
    %1032 = vector.broadcast %1031 : f32 to vector<4x8x100xf32>
    %1033 = arith.mulf %1032, %1018 : vector<4x8x100xf32>
    %1034 = arith.addf %1015, %1033 : vector<4x8x100xf32>
    %cst_216 = arith.constant 0.000000e+00 : f32
    %1035 = vector.broadcast %cst_216 : f32 to vector<4x8x27xf32>
    %1036 = vector.extract_strided_slice %659 {offsets = [0, 0, 0], sizes = [4, 8, 73], strides = [1, 1, 1]} : vector<4x8x100xf32> to vector<4x8x73xf32>
    %1037 = tpu.concatenate %1035, %1036 in 2 : vector<4x8x27xf32>, vector<4x8x73xf32> -> vector<4x8x100xf32>
    %c20_217 = arith.constant 20 : index
    %1038 = memref.load %arg8[%c20_217] : memref<96xf32, #tpu.memory_space<smem>>
    %1039 = vector.broadcast %1038 : f32 to vector<4x8x100xf32>
    %1040 = arith.mulf %1039, %1037 : vector<4x8x100xf32>
    %1041 = arith.addf %1022, %1040 : vector<4x8x100xf32>
    %c44_218 = arith.constant 44 : index
    %1042 = memref.load %arg8[%c44_218] : memref<96xf32, #tpu.memory_space<smem>>
    %1043 = vector.broadcast %1042 : f32 to vector<4x8x100xf32>
    %1044 = arith.mulf %1043, %1037 : vector<4x8x100xf32>
    %1045 = arith.addf %1026, %1044 : vector<4x8x100xf32>
    %c68_219 = arith.constant 68 : index
    %1046 = memref.load %arg8[%c68_219] : memref<96xf32, #tpu.memory_space<smem>>
    %1047 = vector.broadcast %1046 : f32 to vector<4x8x100xf32>
    %1048 = arith.mulf %1047, %1037 : vector<4x8x100xf32>
    %1049 = arith.addf %1030, %1048 : vector<4x8x100xf32>
    %c92_220 = arith.constant 92 : index
    %1050 = memref.load %arg8[%c92_220] : memref<96xf32, #tpu.memory_space<smem>>
    %1051 = vector.broadcast %1050 : f32 to vector<4x8x100xf32>
    %1052 = arith.mulf %1051, %1037 : vector<4x8x100xf32>
    %1053 = arith.addf %1034, %1052 : vector<4x8x100xf32>
    %cst_221 = arith.constant 0.000000e+00 : f32
    %1054 = vector.broadcast %cst_221 : f32 to vector<4x8x18xf32>
    %1055 = vector.extract_strided_slice %659 {offsets = [0, 0, 0], sizes = [4, 8, 82], strides = [1, 1, 1]} : vector<4x8x100xf32> to vector<4x8x82xf32>
    %1056 = tpu.concatenate %1054, %1055 in 2 : vector<4x8x18xf32>, vector<4x8x82xf32> -> vector<4x8x100xf32>
    %c21_222 = arith.constant 21 : index
    %1057 = memref.load %arg8[%c21_222] : memref<96xf32, #tpu.memory_space<smem>>
    %1058 = vector.broadcast %1057 : f32 to vector<4x8x100xf32>
    %1059 = arith.mulf %1058, %1056 : vector<4x8x100xf32>
    %1060 = arith.addf %1041, %1059 : vector<4x8x100xf32>
    %c45_223 = arith.constant 45 : index
    %1061 = memref.load %arg8[%c45_223] : memref<96xf32, #tpu.memory_space<smem>>
    %1062 = vector.broadcast %1061 : f32 to vector<4x8x100xf32>
    %1063 = arith.mulf %1062, %1056 : vector<4x8x100xf32>
    %1064 = arith.addf %1045, %1063 : vector<4x8x100xf32>
    %c69_224 = arith.constant 69 : index
    %1065 = memref.load %arg8[%c69_224] : memref<96xf32, #tpu.memory_space<smem>>
    %1066 = vector.broadcast %1065 : f32 to vector<4x8x100xf32>
    %1067 = arith.mulf %1066, %1056 : vector<4x8x100xf32>
    %1068 = arith.addf %1049, %1067 : vector<4x8x100xf32>
    %c93_225 = arith.constant 93 : index
    %1069 = memref.load %arg8[%c93_225] : memref<96xf32, #tpu.memory_space<smem>>
    %1070 = vector.broadcast %1069 : f32 to vector<4x8x100xf32>
    %1071 = arith.mulf %1070, %1056 : vector<4x8x100xf32>
    %1072 = arith.addf %1053, %1071 : vector<4x8x100xf32>
    %cst_226 = arith.constant 0.000000e+00 : f32
    %1073 = vector.broadcast %cst_226 : f32 to vector<4x8x9xf32>
    %1074 = vector.extract_strided_slice %659 {offsets = [0, 0, 0], sizes = [4, 8, 91], strides = [1, 1, 1]} : vector<4x8x100xf32> to vector<4x8x91xf32>
    %1075 = tpu.concatenate %1073, %1074 in 2 : vector<4x8x9xf32>, vector<4x8x91xf32> -> vector<4x8x100xf32>
    %c22_227 = arith.constant 22 : index
    %1076 = memref.load %arg8[%c22_227] : memref<96xf32, #tpu.memory_space<smem>>
    %1077 = vector.broadcast %1076 : f32 to vector<4x8x100xf32>
    %1078 = arith.mulf %1077, %1075 : vector<4x8x100xf32>
    %1079 = arith.addf %1060, %1078 : vector<4x8x100xf32>
    %c46_228 = arith.constant 46 : index
    %1080 = memref.load %arg8[%c46_228] : memref<96xf32, #tpu.memory_space<smem>>
    %1081 = vector.broadcast %1080 : f32 to vector<4x8x100xf32>
    %1082 = arith.mulf %1081, %1075 : vector<4x8x100xf32>
    %1083 = arith.addf %1064, %1082 : vector<4x8x100xf32>
    %c70_229 = arith.constant 70 : index
    %1084 = memref.load %arg8[%c70_229] : memref<96xf32, #tpu.memory_space<smem>>
    %1085 = vector.broadcast %1084 : f32 to vector<4x8x100xf32>
    %1086 = arith.mulf %1085, %1075 : vector<4x8x100xf32>
    %1087 = arith.addf %1068, %1086 : vector<4x8x100xf32>
    %c94_230 = arith.constant 94 : index
    %1088 = memref.load %arg8[%c94_230] : memref<96xf32, #tpu.memory_space<smem>>
    %1089 = vector.broadcast %1088 : f32 to vector<4x8x100xf32>
    %1090 = arith.mulf %1089, %1075 : vector<4x8x100xf32>
    %1091 = arith.addf %1072, %1090 : vector<4x8x100xf32>
    %c23_231 = arith.constant 23 : index
    %1092 = memref.load %arg8[%c23_231] : memref<96xf32, #tpu.memory_space<smem>>
    %1093 = vector.broadcast %1092 : f32 to vector<4x8x100xf32>
    %1094 = arith.mulf %1093, %659 : vector<4x8x100xf32>
    %1095 = arith.addf %1079, %1094 : vector<4x8x100xf32>
    %c47_232 = arith.constant 47 : index
    %1096 = memref.load %arg8[%c47_232] : memref<96xf32, #tpu.memory_space<smem>>
    %1097 = vector.broadcast %1096 : f32 to vector<4x8x100xf32>
    %1098 = arith.mulf %1097, %659 : vector<4x8x100xf32>
    %1099 = arith.addf %1083, %1098 : vector<4x8x100xf32>
    %c71_233 = arith.constant 71 : index
    %1100 = memref.load %arg8[%c71_233] : memref<96xf32, #tpu.memory_space<smem>>
    %1101 = vector.broadcast %1100 : f32 to vector<4x8x100xf32>
    %1102 = arith.mulf %1101, %659 : vector<4x8x100xf32>
    %1103 = arith.addf %1087, %1102 : vector<4x8x100xf32>
    %c95_234 = arith.constant 95 : index
    %1104 = memref.load %arg8[%c95_234] : memref<96xf32, #tpu.memory_space<smem>>
    %1105 = vector.broadcast %1104 : f32 to vector<4x8x100xf32>
    %1106 = arith.mulf %1105, %659 : vector<4x8x100xf32>
    %1107 = arith.addf %1091, %1106 : vector<4x8x100xf32>
    %c0_235 = arith.constant 0 : index
    %1108 = memref.load %arg9[%c0_235] : memref<4xf32, #tpu.memory_space<smem>>
    %1109 = vector.broadcast %1108 : f32 to vector<4x8x100xf32>
    %1110 = arith.addf %1095, %1109 : vector<4x8x100xf32>
    %cst_236 = arith.constant 0.000000e+00 : f32
    %1111 = vector.broadcast %cst_236 : f32 to vector<4x8x100xf32>
    %1112 = arith.maximumf %1110, %1111 : vector<4x8x100xf32>
    %c1_237 = arith.constant 1 : index
    %1113 = memref.load %arg9[%c1_237] : memref<4xf32, #tpu.memory_space<smem>>
    %1114 = vector.broadcast %1113 : f32 to vector<4x8x100xf32>
    %1115 = arith.addf %1099, %1114 : vector<4x8x100xf32>
    %cst_238 = arith.constant 0.000000e+00 : f32
    %1116 = vector.broadcast %cst_238 : f32 to vector<4x8x100xf32>
    %1117 = arith.maximumf %1115, %1116 : vector<4x8x100xf32>
    %c2_239 = arith.constant 2 : index
    %1118 = memref.load %arg9[%c2_239] : memref<4xf32, #tpu.memory_space<smem>>
    %1119 = vector.broadcast %1118 : f32 to vector<4x8x100xf32>
    %1120 = arith.addf %1103, %1119 : vector<4x8x100xf32>
    %cst_240 = arith.constant 0.000000e+00 : f32
    %1121 = vector.broadcast %cst_240 : f32 to vector<4x8x100xf32>
    %1122 = arith.maximumf %1120, %1121 : vector<4x8x100xf32>
    %c3_241 = arith.constant 3 : index
    %1123 = memref.load %arg9[%c3_241] : memref<4xf32, #tpu.memory_space<smem>>
    %1124 = vector.broadcast %1123 : f32 to vector<4x8x100xf32>
    %1125 = arith.addf %1107, %1124 : vector<4x8x100xf32>
    %cst_242 = arith.constant 0.000000e+00 : f32
    %1126 = vector.broadcast %cst_242 : f32 to vector<4x8x100xf32>
    %1127 = arith.maximumf %1125, %1126 : vector<4x8x100xf32>
    %c0_243 = arith.constant 0 : index
    %1128 = memref.load %arg10[%c0_243] : memref<4xf32, #tpu.memory_space<smem>>
    %1129 = vector.broadcast %1128 : f32 to vector<4x8x100xf32>
    %1130 = arith.mulf %1112, %1129 : vector<4x8x100xf32>
    %c0_244 = arith.constant 0 : index
    %1131 = memref.load %arg11[%c0_244] : memref<4xf32, #tpu.memory_space<smem>>
    %1132 = vector.broadcast %1131 : f32 to vector<4x8x100xf32>
    %1133 = arith.addf %1130, %1132 : vector<4x8x100xf32>
    %c0_245 = arith.constant 0 : index
    %c0_246 = arith.constant 0 : index
    %c0_247 = arith.constant 0 : index
    %c0_248 = arith.constant 0 : index
    %1134 = vector.load %arg12[%c0_245, %c0_246, %c0_247, %c0_248] : memref<4x4x8x100xf32, #tpu.memory_space<vmem>>, vector<4x1x8x100xf32>
    %1135 = vector.shape_cast %1134 : vector<4x1x8x100xf32> to vector<4x8x100xf32>
    %1136 = arith.addf %1135, %1133 : vector<4x8x100xf32>
    %c0_249 = arith.constant 0 : index
    %c0_250 = arith.constant 0 : index
    %c0_251 = arith.constant 0 : index
    %c0_252 = arith.constant 0 : index
    %1137 = vector.load %arg12[%c0_249, %c0_250, %c0_251, %c0_252] : memref<4x4x8x100xf32, #tpu.memory_space<vmem>>, vector<4x1x8x100xf32>
    %1138 = vector.shape_cast %1137 : vector<4x1x8x100xf32> to vector<4x8x100xf32>
    %1139 = vector.shape_cast %1136 : vector<4x8x100xf32> to vector<4x1x8x100xf32>
    tpu.vector_store %arg12[%c0_249, %c0_250, %c0_251, %c0_252], %1139 {strides = array<i32>} : memref<4x4x8x100xf32, #tpu.memory_space<vmem>>, vector<4x1x8x100xf32>,
    %c1_253 = arith.constant 1 : index
    %1140 = memref.load %arg10[%c1_253] : memref<4xf32, #tpu.memory_space<smem>>
    %1141 = vector.broadcast %1140 : f32 to vector<4x8x100xf32>
    %1142 = arith.mulf %1117, %1141 : vector<4x8x100xf32>
    %c1_254 = arith.constant 1 : index
    %1143 = memref.load %arg11[%c1_254] : memref<4xf32, #tpu.memory_space<smem>>
    %1144 = vector.broadcast %1143 : f32 to vector<4x8x100xf32>
    %1145 = arith.addf %1142, %1144 : vector<4x8x100xf32>
    %c0_255 = arith.constant 0 : index
    %c1_256 = arith.constant 1 : index
    %c0_257 = arith.constant 0 : index
    %c0_258 = arith.constant 0 : index
    %1146 = vector.load %arg12[%c0_255, %c1_256, %c0_257, %c0_258] : memref<4x4x8x100xf32, #tpu.memory_space<vmem>>, vector<4x1x8x100xf32>
    %1147 = vector.shape_cast %1146 : vector<4x1x8x100xf32> to vector<4x8x100xf32>
    %1148 = arith.addf %1147, %1145 : vector<4x8x100xf32>
    %c0_259 = arith.constant 0 : index
    %c1_260 = arith.constant 1 : index
    %c0_261 = arith.constant 0 : index
    %c0_262 = arith.constant 0 : index
    %1149 = vector.load %arg12[%c0_259, %c1_260, %c0_261, %c0_262] : memref<4x4x8x100xf32, #tpu.memory_space<vmem>>, vector<4x1x8x100xf32>
    %1150 = vector.shape_cast %1149 : vector<4x1x8x100xf32> to vector<4x8x100xf32>
    %1151 = vector.shape_cast %1148 : vector<4x8x100xf32> to vector<4x1x8x100xf32>
    tpu.vector_store %arg12[%c0_259, %c1_260, %c0_261, %c0_262], %1151 {strides = array<i32>} : memref<4x4x8x100xf32, #tpu.memory_space<vmem>>, vector<4x1x8x100xf32>,
    %c2_263 = arith.constant 2 : index
    %1152 = memref.load %arg10[%c2_263] : memref<4xf32, #tpu.memory_space<smem>>
    %1153 = vector.broadcast %1152 : f32 to vector<4x8x100xf32>
    %1154 = arith.mulf %1122, %1153 : vector<4x8x100xf32>
    %c2_264 = arith.constant 2 : index
    %1155 = memref.load %arg11[%c2_264] : memref<4xf32, #tpu.memory_space<smem>>
    %1156 = vector.broadcast %1155 : f32 to vector<4x8x100xf32>
    %1157 = arith.addf %1154, %1156 : vector<4x8x100xf32>
    %c0_265 = arith.constant 0 : index
    %c2_266 = arith.constant 2 : index
    %c0_267 = arith.constant 0 : index
    %c0_268 = arith.constant 0 : index
    %1158 = vector.load %arg12[%c0_265, %c2_266, %c0_267, %c0_268] : memref<4x4x8x100xf32, #tpu.memory_space<vmem>>, vector<4x1x8x100xf32>
    %1159 = vector.shape_cast %1158 : vector<4x1x8x100xf32> to vector<4x8x100xf32>
    %1160 = arith.addf %1159, %1157 : vector<4x8x100xf32>
    %c0_269 = arith.constant 0 : index
    %c2_270 = arith.constant 2 : index
    %c0_271 = arith.constant 0 : index
    %c0_272 = arith.constant 0 : index
    %1161 = vector.load %arg12[%c0_269, %c2_270, %c0_271, %c0_272] : memref<4x4x8x100xf32, #tpu.memory_space<vmem>>, vector<4x1x8x100xf32>
    %1162 = vector.shape_cast %1161 : vector<4x1x8x100xf32> to vector<4x8x100xf32>
    %1163 = vector.shape_cast %1160 : vector<4x8x100xf32> to vector<4x1x8x100xf32>
    tpu.vector_store %arg12[%c0_269, %c2_270, %c0_271, %c0_272], %1163 {strides = array<i32>} : memref<4x4x8x100xf32, #tpu.memory_space<vmem>>, vector<4x1x8x100xf32>,
    %c3_273 = arith.constant 3 : index
    %1164 = memref.load %arg10[%c3_273] : memref<4xf32, #tpu.memory_space<smem>>
    %1165 = vector.broadcast %1164 : f32 to vector<4x8x100xf32>
    %1166 = arith.mulf %1127, %1165 : vector<4x8x100xf32>
    %c3_274 = arith.constant 3 : index
    %1167 = memref.load %arg11[%c3_274] : memref<4xf32, #tpu.memory_space<smem>>
    %1168 = vector.broadcast %1167 : f32 to vector<4x8x100xf32>
    %1169 = arith.addf %1166, %1168 : vector<4x8x100xf32>
    %c0_275 = arith.constant 0 : index
    %c3_276 = arith.constant 3 : index
    %c0_277 = arith.constant 0 : index
    %c0_278 = arith.constant 0 : index
    %1170 = vector.load %arg12[%c0_275, %c3_276, %c0_277, %c0_278] : memref<4x4x8x100xf32, #tpu.memory_space<vmem>>, vector<4x1x8x100xf32>
    %1171 = vector.shape_cast %1170 : vector<4x1x8x100xf32> to vector<4x8x100xf32>
    %1172 = arith.addf %1171, %1169 : vector<4x8x100xf32>
    %c0_279 = arith.constant 0 : index
    %c3_280 = arith.constant 3 : index
    %c0_281 = arith.constant 0 : index
    %c0_282 = arith.constant 0 : index
    %1173 = vector.load %arg12[%c0_279, %c3_280, %c0_281, %c0_282] : memref<4x4x8x100xf32, #tpu.memory_space<vmem>>, vector<4x1x8x100xf32>
    %1174 = vector.shape_cast %1173 : vector<4x1x8x100xf32> to vector<4x8x100xf32>
    %1175 = vector.shape_cast %1172 : vector<4x8x100xf32> to vector<4x1x8x100xf32>
    tpu.vector_store %arg12[%c0_279, %c3_280, %c0_281, %c0_282], %1175 {strides = array<i32>} : memref<4x4x8x100xf32, #tpu.memory_space<vmem>>, vector<4x1x8x100xf32>,
    return
  }
  func.func @transform_0(%arg0: i32) -> (i32, i32, i32, i32) {
    %c0_i32 = arith.constant 0 : i32
    %c0_i32_0 = arith.constant 0 : i32
    %c0_i32_1 = arith.constant 0 : i32
    %c0_i32_2 = arith.constant 0 : i32
    return %arg0, %c0_i32, %c0_i32_0, %c0_i32_1 : i32, i32, i32, i32
  }
  func.func @transform_1(%arg0: i32) -> i32 {
    %c0_i32 = arith.constant 0 : i32
    %c0_i32_0 = arith.constant 0 : i32
    return %c0_i32 : i32
  }
  func.func @transform_2(%arg0: i32) -> i32 {
    %c0_i32 = arith.constant 0 : i32
    %c0_i32_0 = arith.constant 0 : i32
    return %c0_i32 : i32
  }
  func.func @transform_3(%arg0: i32) -> i32 {
    %c0_i32 = arith.constant 0 : i32
    %c0_i32_0 = arith.constant 0 : i32
    return %c0_i32 : i32
  }
  func.func @transform_4(%arg0: i32) -> i32 {
    %c0_i32 = arith.constant 0 : i32
    %c0_i32_0 = arith.constant 0 : i32
    return %c0_i32 : i32
  }
  func.func @transform_5(%arg0: i32) -> i32 {
    %c0_i32 = arith.constant 0 : i32
    %c0_i32_0 = arith.constant 0 : i32
    return %c0_i32 : i32
  }
  func.func @transform_6(%arg0: i32) -> i32 {
    %c0_i32 = arith.constant 0 : i32
    %c0_i32_0 = arith.constant 0 : i32
    return %c0_i32 : i32
  }
  func.func @transform_7(%arg0: i32) -> i32 {
    %c0_i32 = arith.constant 0 : i32
    %c0_i32_0 = arith.constant 0 : i32
    return %c0_i32 : i32
  }
  func.func @transform_8(%arg0: i32) -> i32 {
    %c0_i32 = arith.constant 0 : i32
    %c0_i32_0 = arith.constant 0 : i32
    return %c0_i32 : i32
  }
  func.func @transform_9(%arg0: i32) -> i32 {
    %c0_i32 = arith.constant 0 : i32
    %c0_i32_0 = arith.constant 0 : i32
    return %c0_i32 : i32
  }
  func.func @transform_10(%arg0: i32) -> i32 {
    %c0_i32 = arith.constant 0 : i32
    %c0_i32_0 = arith.constant 0 : i32
    return %c0_i32 : i32
  }
  func.func @transform_11(%arg0: i32) -> (i32, i32, i32, i32) {
    %c0_i32 = arith.constant 0 : i32
    %c0_i32_0 = arith.constant 0 : i32
    %c0_i32_1 = arith.constant 0 : i32
    %c0_i32_2 = arith.constant 0 : i32
    return %arg0, %c0_i32, %c0_i32_0, %c0_i32_1 : i32, i32, i32, i32
  }
}

</mosaic_0001>

<llo_original>
// kernel: stcb_forward.1
$region0: #{stcb_forward.1}
  #allocation0 [shape = 'u32[]', space=smem, size = 0x4, offset = 0x4, fixed_abs, tag = 'smem constant byte address 0x4 - core index']
  #allocation1 [shape = 'u32[144,128]{1,0:T(1,128)}', space=vmem, size = 0x12000, scoped, tag = 'internal scratch']
  %s0 = inlined_call_operand.hbm [shape: f32[8,4,8,100], index: 0, kind: input, shape index: {}]
  %s1 = inlined_call_operand.vmem [shape: f32[16], index: 1, kind: input, shape index: {}]
  %s2 = inlined_call_operand.vmem [shape: f32[4], index: 2, kind: input, shape index: {}]
  %s3 = inlined_call_operand.vmem [shape: f32[16], index: 3, kind: input, shape index: {}]
  %s4 = inlined_call_operand.vmem [shape: f32[4], index: 4, kind: input, shape index: {}]
  %s5 = inlined_call_operand.vmem [shape: f32[96], index: 5, kind: input, shape index: {}]
  %s6 = inlined_call_operand.vmem [shape: f32[4], index: 6, kind: input, shape index: {}]
  %s7 = inlined_call_operand.vmem [shape: f32[96], index: 7, kind: input, shape index: {}]
  %s8 = inlined_call_operand.vmem [shape: f32[4], index: 8, kind: input, shape index: {}]
  %s9 = inlined_call_operand.vmem [shape: f32[4], index: 9, kind: input, shape index: {}]
  %s10 = inlined_call_operand.vmem [shape: f32[4], index: 10, kind: input, shape index: {}]
  %s11 = inlined_call_operand.hbm [shape: f32[8,4,8,100], index: 11, kind: output, shape index: {}]
  %s12 = sld [smem:[#allocation0]]
  $region121: #{stcb_forward.1} parent=0
    _
  %s14 = ssub.s32 1, %s12
  %s15 = scalar_select 0, %s14, %s12
  $region1: #{stcb_forward.1} parent=0
    #allocation2 [shape = 'u8[131072]{0}', space=vmem, size = 0x20000, scoped, tag = 'input window, operand 0']
    #allocation3 [shape = 's32[2]{0}', space=sflag, size = 0x8, scoped, tag = 'scoped memory for stcb_forward.1']
    #allocation4 [shape = 's32[2]{0}', space=sflag, size = 0x8, scoped, tag = 'scoped memory for stcb_forward.1']
    #allocation5 [shape = 's32[2]{0}', space=sflag, size = 0x8, scoped, tag = 'scoped memory for stcb_forward.1']
    #allocation6 [shape = 'u8[512]{0}', space=smem, size = 0x200, scoped, tag = 'input window, operand 1, single buffered']
    #allocation7 [shape = 'u8[512]{0}', space=smem, size = 0x200, scoped, tag = 'input window, operand 2, single buffered']
    #allocation8 [shape = 's32[1]{0}', space=sflag, size = 0x4, scoped, tag = 'scoped memory for stcb_forward.1']
    #allocation9 [shape = 'u8[512]{0}', space=smem, size = 0x200, scoped, tag = 'input window, operand 3, single buffered']
    #allocation10 [shape = 'u8[512]{0}', space=smem, size = 0x200, scoped, tag = 'input window, operand 4, single buffered']
    #allocation11 [shape = 's32[1]{0}', space=sflag, size = 0x4, scoped, tag = 'scoped memory for stcb_forward.1']
    #allocation12 [shape = 'u8[512]{0}', space=smem, size = 0x200, scoped, tag = 'input window, operand 5, single buffered']
    #allocation13 [shape = 'u8[512]{0}', space=smem, size = 0x200, scoped, tag = 'input window, operand 6, single buffered']
    #allocation14 [shape = 's32[1]{0}', space=sflag, size = 0x4, scoped, tag = 'scoped memory for stcb_forward.1']
    #allocation15 [shape = 'u8[512]{0}', space=smem, size = 0x200, scoped, tag = 'input window, operand 7, single buffered']
    #allocation16 [shape = 'u8[512]{0}', space=smem, size = 0x200, scoped, tag = 'input window, operand 8, single buffered']
    #allocation17 [shape = 's32[1]{0}', space=sflag, size = 0x4, scoped, tag = 'scoped memory for stcb_forward.1']
    #allocation18 [shape = 'u8[512]{0}', space=smem, size = 0x200, scoped, tag = 'input window, operand 9, single buffered']
    #allocation19 [shape = 'u8[512]{0}', space=smem, size = 0x200, scoped, tag = 'input window, operand 10, single buffered']
    #allocation20 [shape = 's32[1]{0}', space=sflag, size = 0x4, scoped, tag = 'scoped memory for stcb_forward.1']
    #allocation21 [shape = 'u8[131072]{0}', space=vmem, size = 0x20000, scoped, tag = 'output window, operand 0']
    %16 = vsyncpa [#allocation3], 0
    %s17 = scalar_lea.sflag [#allocation3], 1
    %18 = vsyncpa %s17, 0
    %19 = vsyncpa [#allocation5], 0
    %20 = vsyncpa [#allocation8], 0
    %21 = vsyncpa [#allocation11], 0
    %22 = vsyncpa [#allocation14], 0
    %23 = vsyncpa [#allocation17], 0
    %24 = vsyncpa [#allocation20], 0
    %25 = vsyncpa [#allocation4], 0
    %s26 = scalar_lea.sflag [#allocation4], 1
    %27 = vsyncpa %s26, 0
    loop: start=0, step=1, limit=4
    $region2: #{stcb_forward.1} parent=1 // loop_pre_header
      _
    $region3: #{stcb_forward.1} parent=1 // loop_header
      %s29 = sphi 0, %s33
      %p30 = scmp.ge.s32.totalorder %s29, 4
      %s39 = sphi 0, %s41
      %s42 = sphi 0, %s39
      %s43 = sphi 0, %s42
      %s59 = sphi 0, %s43
      %s63 = sphi 0, %s63
      %s65 = sphi 0, %s63
      %s66 = sphi 0, %s65
      %s80 = sphi 0, %s66
      %s84 = sphi 0, %s84
      %s86 = sphi 0, %s84
      %s87 = sphi 0, %s86
      %s101 = sphi 0, %s87
      %s105 = sphi 0, %s105
      %s107 = sphi 0, %s105
      %s108 = sphi 0, %s107
      %s122 = sphi 0, %s108
      %s126 = sphi 0, %s126
      %s128 = sphi 0, %s126
      %s129 = sphi 0, %s128
      %s143 = sphi 0, %s129
      %s147 = sphi 0, %s147
      %s149 = sphi 0, %s147
      %s150 = sphi 0, %s149
      %s164 = sphi 0, %s150
      %s168 = sphi 0, %s168
      %s170 = sphi 0, %s168
      %s171 = sphi 0, %s170
      %s185 = sphi 0, %s171
      %s189 = sphi 0, %s189
      %s191 = sphi 0, %s189
      %s192 = sphi 0, %s191
      %s206 = sphi 0, %s192
      %s210 = sphi 0, %s210
      %s212 = sphi 0, %s210
      %s213 = sphi 0, %s212
      %s227 = sphi 0, %s213
      %s231 = sphi 0, %s231
      %s233 = sphi 0, %s231
      %s234 = sphi 0, %s233
      %s248 = sphi 0, %s234
      %s252 = sphi 0, %s252
      %s254 = sphi 0, %s252
      %s255 = sphi 0, %s254
      %s269 = sphi 0, %s255
      %s275 = sphi 0, %s277
      %s278 = sphi 0, %s275
      %s279 = sphi 0, %s278
      %s295 = sphi 0, %s279
    $region4: #{stcb_forward.1} parent=1 // loop_header_branch
      %32 = sbr.rel (%p30) target = $region8
    $region5: #{stcb_forward.1} parent=1 // loop_body
      %s34 = ssub.s32 %s29, 1
      %s35 = ssub.s32 %s29, 2
      %s36 = sadd.s32 %s29, 1
      %s37 = ssub.s32 %s29, %s36
      %p38 = scmp.eq.s32.totalorder %s37, 0
      %s40 = sadd.s32 %s39, 1
      %s41 = scalar_select %p38, %s39, %s40
      %p44 = pneg %p38
      %p45 = scmp.eq.s32.totalorder %s29, 1
      %p46 = por %p44, %p45
      %p47 = scmp.ne.s32.totalorder %s39, %s42
      %p48 = scmp.eq.s32.totalorder %s29, 0
      %p49 = por %p47, %p48
      %p50 = scmp.ne.s32.totalorder %s39, %s42
      %p51 = scmp.eq.s32.totalorder %s34, 1
      %p52 = por %p50, %p51
      %p53 = scmp.ne.s32.totalorder %s42, %s43
      %p54 = scmp.eq.s32.totalorder %s34, 0
      %p55 = por %p53, %p54
      %p56 = scmp.ne.s32.totalorder %s42, %s43
      %p57 = scmp.eq.s32.totalorder %s35, 1
      %p58 = por %p56, %p57
      %p60 = scmp.ne.s32.totalorder %s43, %s59
      %p61 = scmp.eq.s32.totalorder %s35, 0
      %p62 = por %p60, %p61
      %s64 = sadd.s32 %s63, 1
      %p67 = scmp.eq.s32.totalorder %s29, 1
      %p68 = scmp.ne.s32.totalorder %s63, %s65
      %p69 = scmp.eq.s32.totalorder %s29, 0
      %p70 = por %p68, %p69
      %p71 = scmp.ne.s32.totalorder %s63, %s65
      %p72 = scmp.eq.s32.totalorder %s34, 1
      %p73 = por %p71, %p72
      %p74 = scmp.ne.s32.totalorder %s65, %s66
      %p75 = scmp.eq.s32.totalorder %s34, 0
      %p76 = por %p74, %p75
      %p77 = scmp.ne.s32.totalorder %s65, %s66
      %p78 = scmp.eq.s32.totalorder %s35, 1
      %p79 = por %p77, %p78
      %p81 = scmp.ne.s32.totalorder %s66, %s80
      %p82 = scmp.eq.s32.totalorder %s35, 0
      %p83 = por %p81, %p82
      %s85 = sadd.s32 %s84, 1
      %p88 = scmp.eq.s32.totalorder %s29, 1
      %p89 = scmp.ne.s32.totalorder %s84, %s86
      %p90 = scmp.eq.s32.totalorder %s29, 0
      %p91 = por %p89, %p90
      %p92 = scmp.ne.s32.totalorder %s84, %s86
      %p93 = scmp.eq.s32.totalorder %s34, 1
      %p94 = por %p92, %p93
      %p95 = scmp.ne.s32.totalorder %s86, %s87
      %p96 = scmp.eq.s32.totalorder %s34, 0
      %p97 = por %p95, %p96
      %p98 = scmp.ne.s32.totalorder %s86, %s87
      %p99 = scmp.eq.s32.totalorder %s35, 1
      %p100 = por %p98, %p99
      %p102 = scmp.ne.s32.totalorder %s87, %s101
      %p103 = scmp.eq.s32.totalorder %s35, 0
      %p104 = por %p102, %p103
      %s106 = sadd.s32 %s105, 1
      %p109 = scmp.eq.s32.totalorder %s29, 1
      %p110 = scmp.ne.s32.totalorder %s105, %s107
      %p111 = scmp.eq.s32.totalorder %s29, 0
      %p112 = por %p110, %p111
      %p113 = scmp.ne.s32.totalorder %s105, %s107
      %p114 = scmp.eq.s32.totalorder %s34, 1
      %p115 = por %p113, %p114
      %p116 = scmp.ne.s32.totalorder %s107, %s108
      %p117 = scmp.eq.s32.totalorder %s34, 0
      %p118 = por %p116, %p117
      %p119 = scmp.ne.s32.totalorder %s107, %s108
      %p120 = scmp.eq.s32.totalorder %s35, 1
      %p121 = por %p119, %p120
      %p123 = scmp.ne.s32.totalorder %s108, %s122
      %p124 = scmp.eq.s32.totalorder %s35, 0
      %p125 = por %p123, %p124
      %s127 = sadd.s32 %s126, 1
      %p130 = scmp.eq.s32.totalorder %s29, 1
      %p131 = scmp.ne.s32.totalorder %s126, %s128
      %p132 = scmp.eq.s32.totalorder %s29, 0
      %p133 = por %p131, %p132
      %p134 = scmp.ne.s32.totalorder %s126, %s128
      %p135 = scmp.eq.s32.totalorder %s34, 1
      %p136 = por %p134, %p135
      %p137 = scmp.ne.s32.totalorder %s128, %s129
      %p138 = scmp.eq.s32.totalorder %s34, 0
      %p139 = por %p137, %p138
      %p140 = scmp.ne.s32.totalorder %s128, %s129
      %p141 = scmp.eq.s32.totalorder %s35, 1
      %p142 = por %p140, %p141
      %p144 = scmp.ne.s32.totalorder %s129, %s143
      %p145 = scmp.eq.s32.totalorder %s35, 0
      %p146 = por %p144, %p145
      %s148 = sadd.s32 %s147, 1
      %p151 = scmp.eq.s32.totalorder %s29, 1
      %p152 = scmp.ne.s32.totalorder %s147, %s149
      %p153 = scmp.eq.s32.totalorder %s29, 0
      %p154 = por %p152, %p153
      %p155 = scmp.ne.s32.totalorder %s147, %s149
      %p156 = scmp.eq.s32.totalorder %s34, 1
      %p157 = por %p155, %p156
      %p158 = scmp.ne.s32.totalorder %s149, %s150
      %p159 = scmp.eq.s32.totalorder %s34, 0
      %p160 = por %p158, %p159
      %p161 = scmp.ne.s32.totalorder %s149, %s150
      %p162 = scmp.eq.s32.totalorder %s35, 1
      %p163 = por %p161, %p162
      %p165 = scmp.ne.s32.totalorder %s150, %s164
      %p166 = scmp.eq.s32.totalorder %s35, 0
      %p167 = por %p165, %p166
      %s169 = sadd.s32 %s168, 1
      %p172 = scmp.eq.s32.totalorder %s29, 1
      %p173 = scmp.ne.s32.totalorder %s168, %s170
      %p174 = scmp.eq.s32.totalorder %s29, 0
      %p175 = por %p173, %p174
      %p176 = scmp.ne.s32.totalorder %s168, %s170
      %p177 = scmp.eq.s32.totalorder %s34, 1
      %p178 = por %p176, %p177
      %p179 = scmp.ne.s32.totalorder %s170, %s171
      %p180 = scmp.eq.s32.totalorder %s34, 0
      %p181 = por %p179, %p180
      %p182 = scmp.ne.s32.totalorder %s170, %s171
      %p183 = scmp.eq.s32.totalorder %s35, 1
      %p184 = por %p182, %p183
      %p186 = scmp.ne.s32.totalorder %s171, %s185
      %p187 = scmp.eq.s32.totalorder %s35, 0
      %p188 = por %p186, %p187
      %s190 = sadd.s32 %s189, 1
      %p193 = scmp.eq.s32.totalorder %s29, 1
      %p194 = scmp.ne.s32.totalorder %s189, %s191
      %p195 = scmp.eq.s32.totalorder %s29, 0
      %p196 = por %p194, %p195
      %p197 = scmp.ne.s32.totalorder %s189, %s191
      %p198 = scmp.eq.s32.totalorder %s34, 1
      %p199 = por %p197, %p198
      %p200 = scmp.ne.s32.totalorder %s191, %s192
      %p201 = scmp.eq.s32.totalorder %s34, 0
      %p202 = por %p200, %p201
      %p203 = scmp.ne.s32.totalorder %s191, %s192
      %p204 = scmp.eq.s32.totalorder %s35, 1
      %p205 = por %p203, %p204
      %p207 = scmp.ne.s32.totalorder %s192, %s206
      %p208 = scmp.eq.s32.totalorder %s35, 0
      %p209 = por %p207, %p208
      %s211 = sadd.s32 %s210, 1
      %p214 = scmp.eq.s32.totalorder %s29, 1
      %p215 = scmp.ne.s32.totalorder %s210, %s212
      %p216 = scmp.eq.s32.totalorder %s29, 0
      %p217 = por %p215, %p216
      %p218 = scmp.ne.s32.totalorder %s210, %s212
      %p219 = scmp.eq.s32.totalorder %s34, 1
      %p220 = por %p218, %p219
      %p221 = scmp.ne.s32.totalorder %s212, %s213
      %p222 = scmp.eq.s32.totalorder %s34, 0
      %p223 = por %p221, %p222
      %p224 = scmp.ne.s32.totalorder %s212, %s213
      %p225 = scmp.eq.s32.totalorder %s35, 1
      %p226 = por %p224, %p225
      %p228 = scmp.ne.s32.totalorder %s213, %s227
      %p229 = scmp.eq.s32.totalorder %s35, 0
      %p230 = por %p228, %p229
      %s232 = sadd.s32 %s231, 1
      %p235 = scmp.eq.s32.totalorder %s29, 1
      %p236 = scmp.ne.s32.totalorder %s231, %s233
      %p237 = scmp.eq.s32.totalorder %s29, 0
      %p238 = por %p236, %p237
      %p239 = scmp.ne.s32.totalorder %s231, %s233
      %p240 = scmp.eq.s32.totalorder %s34, 1
      %p241 = por %p239, %p240
      %p242 = scmp.ne.s32.totalorder %s233, %s234
      %p243 = scmp.eq.s32.totalorder %s34, 0
      %p244 = por %p242, %p243
      %p245 = scmp.ne.s32.totalorder %s233, %s234
      %p246 = scmp.eq.s32.totalorder %s35, 1
      %p247 = por %p245, %p246
      %p249 = scmp.ne.s32.totalorder %s234, %s248
      %p250 = scmp.eq.s32.totalorder %s35, 0
      %p251 = por %p249, %p250
      %s253 = sadd.s32 %s252, 1
      %p256 = scmp.eq.s32.totalorder %s29, 1
      %p257 = scmp.ne.s32.totalorder %s252, %s254
      %p258 = scmp.eq.s32.totalorder %s29, 0
      %p259 = por %p257, %p258
      %p260 = scmp.ne.s32.totalorder %s252, %s254
      %p261 = scmp.eq.s32.totalorder %s34, 1
      %p262 = por %p260, %p261
      %p263 = scmp.ne.s32.totalorder %s254, %s255
      %p264 = scmp.eq.s32.totalorder %s34, 0
      %p265 = por %p263, %p264
      %p266 = scmp.ne.s32.totalorder %s254, %s255
      %p267 = scmp.eq.s32.totalorder %s35, 1
      %p268 = por %p266, %p267
      %p270 = scmp.ne.s32.totalorder %s255, %s269
      %p271 = scmp.eq.s32.totalorder %s35, 0
      %p272 = por %p270, %p271
      %s273 = ssub.s32 %s29, %s36
      %p274 = scmp.eq.s32.totalorder %s273, 0
      %s276 = sadd.s32 %s275, 1
      %s277 = scalar_select %p274, %s275, %s276
      %p280 = pneg %p274
      %p281 = scmp.eq.s32.totalorder %s29, 1
      %p282 = por %p280, %p281
      %p283 = scmp.ne.s32.totalorder %s275, %s278
      %p284 = scmp.eq.s32.totalorder %s29, 0
      %p285 = por %p283, %p284
      %p286 = scmp.ne.s32.totalorder %s275, %s278
      %p287 = scmp.eq.s32.totalorder %s34, 1
      %p288 = por %p286, %p287
      %p289 = scmp.ne.s32.totalorder %s278, %s279
      %p290 = scmp.eq.s32.totalorder %s34, 0
      %p291 = por %p289, %p290
      %p292 = scmp.ne.s32.totalorder %s278, %s279
      %p293 = scmp.eq.s32.totalorder %s35, 1
      %p294 = por %p292, %p293
      %p296 = scmp.ne.s32.totalorder %s279, %s295
      %p297 = scmp.eq.s32.totalorder %s35, 0
      %p298 = por %p296, %p297
      %p299 = scmp.le.s32.totalorder 1, %s29
      %p300 = scmp.lt.s32.totalorder %s29, 3
      %p301 = pnand %p299, %p300
      %p302 = pneg %p301
      // Predicated region
      $region9: #{stcb_forward.1} parent=5 // pred_check
        _
      $region10: #{stcb_forward.1} parent=5 // pred_check_branch
        %304 = sbr.rel (%p301) target = $region12
      $region11: #{stcb_forward.1} parent=5 // pred_region
        %s305 = ssub.s32 %s29, 1
        // Predicated region
        $region13: #{stcb_forward.1} parent=11 // pred_check
          %p306 = pneg %p76
        $region14: #{stcb_forward.1} parent=11 // pred_check_branch
          %308 = sbr.rel (%p306) target = $region16
        $region15: #{stcb_forward.1} parent=11 // pred_region
          %s310 = ssub.s32 16, 16
          %311 = vsyncadd [#allocation5], %s310
          %s313 = sshll.u32 %s1, 4
          %s314 = int_to_ptr.vmem [resolvable:$true] %s313
          %316 = dma.vmem_to_smem %s314, 16, [#allocation6], [#allocation5]
        $region16: #{stcb_forward.1} parent=11 // pred_fallthru
          _
        // Predicated region
        $region17: #{stcb_forward.1} parent=11 // pred_check
          %p317 = pneg %p97
        $region18: #{stcb_forward.1} parent=11 // pred_check_branch
          %319 = sbr.rel (%p317) target = $region20
        $region19: #{stcb_forward.1} parent=11 // pred_region
          %s321 = ssub.s32 16, 16
          %322 = vsyncadd [#allocation8], %s321
          %s324 = sshll.u32 %s2, 4
          %s325 = int_to_ptr.vmem [resolvable:$true] %s324
          %327 = dma.vmem_to_smem %s325, 16, [#allocation7], [#allocation8]
        $region20: #{stcb_forward.1} parent=11 // pred_fallthru
          _
        // Predicated region
        $region21: #{stcb_forward.1} parent=11 // pred_check
          %p328 = pneg %p118
        $region22: #{stcb_forward.1} parent=11 // pred_check_branch
          %330 = sbr.rel (%p328) target = $region24
        $region23: #{stcb_forward.1} parent=11 // pred_region
          %s332 = ssub.s32 16, 16
          %333 = vsyncadd [#allocation8], %s332
          %s335 = sshll.u32 %s3, 4
          %s336 = int_to_ptr.vmem [resolvable:$true] %s335
          %338 = dma.vmem_to_smem %s336, 16, [#allocation9], [#allocation8]
        $region24: #{stcb_forward.1} parent=11 // pred_fallthru
          _
        // Predicated region
        $region25: #{stcb_forward.1} parent=11 // pred_check
          %p339 = pneg %p139
        $region26: #{stcb_forward.1} parent=11 // pred_check_branch
          %341 = sbr.rel (%p339) target = $region28
        $region27: #{stcb_forward.1} parent=11 // pred_region
          %s343 = ssub.s32 16, 16
          %344 = vsyncadd [#allocation11], %s343
          %s346 = sshll.u32 %s4, 4
          %s347 = int_to_ptr.vmem [resolvable:$true] %s346
          %349 = dma.vmem_to_smem %s347, 16, [#allocation10], [#allocation11]
        $region28: #{stcb_forward.1} parent=11 // pred_fallthru
          _
        // Predicated region
        $region29: #{stcb_forward.1} parent=11 // pred_check
          %p350 = pneg %p160
        $region30: #{stcb_forward.1} parent=11 // pred_check_branch
          %352 = sbr.rel (%p350) target = $region32
        $region31: #{stcb_forward.1} parent=11 // pred_region
          %s354 = ssub.s32 16, 16
          %355 = vsyncadd [#allocation11], %s354
          %s357 = sshll.u32 %s5, 4
          %s358 = int_to_ptr.vmem [resolvable:$true] %s357
          %360 = dma.vmem_to_smem %s358, 16, [#allocation12], [#allocation11]
        $region32: #{stcb_forward.1} parent=11 // pred_fallthru
          _
        // Predicated region
        $region33: #{stcb_forward.1} parent=11 // pred_check
          %p361 = pneg %p181
        $region34: #{stcb_forward.1} parent=11 // pred_check_branch
          %363 = sbr.rel (%p361) target = $region36
        $region35: #{stcb_forward.1} parent=11 // pred_region
          %s365 = ssub.s32 16, 16
          %366 = vsyncadd [#allocation14], %s365
          %s368 = sshll.u32 %s6, 4
          %s369 = int_to_ptr.vmem [resolvable:$true] %s368
          %371 = dma.vmem_to_smem %s369, 16, [#allocation13], [#allocation14]
        $region36: #{stcb_forward.1} parent=11 // pred_fallthru
          _
        // Predicated region
        $region37: #{stcb_forward.1} parent=11 // pred_check
          %p372 = pneg %p202
        $region38: #{stcb_forward.1} parent=11 // pred_check_branch
          %374 = sbr.rel (%p372) target = $region40
        $region39: #{stcb_forward.1} parent=11 // pred_region
          %s376 = ssub.s32 16, 16
          %377 = vsyncadd [#allocation14], %s376
          %s379 = sshll.u32 %s7, 4
          %s380 = int_to_ptr.vmem [resolvable:$true] %s379
          %382 = dma.vmem_to_smem %s380, 16, [#allocation15], [#allocation14]
        $region40: #{stcb_forward.1} parent=11 // pred_fallthru
          _
        // Predicated region
        $region41: #{stcb_forward.1} parent=11 // pred_check
          %p383 = pneg %p223
        $region42: #{stcb_forward.1} parent=11 // pred_check_branch
          %385 = sbr.rel (%p383) target = $region44
        $region43: #{stcb_forward.1} parent=11 // pred_region
          %s387 = ssub.s32 16, 16
          %388 = vsyncadd [#allocation17], %s387
          %s390 = sshll.u32 %s8, 4
          %s391 = int_to_ptr.vmem [resolvable:$true] %s390
          %393 = dma.vmem_to_smem %s391, 16, [#allocation16], [#allocation17]
        $region44: #{stcb_forward.1} parent=11 // pred_fallthru
          _
        // Predicated region
        $region45: #{stcb_forward.1} parent=11 // pred_check
          %p394 = pneg %p244
        $region46: #{stcb_forward.1} parent=11 // pred_check_branch
          %396 = sbr.rel (%p394) target = $region48
        $region47: #{stcb_forward.1} parent=11 // pred_region
          %s398 = ssub.s32 16, 16
          %399 = vsyncadd [#allocation17], %s398
          %s401 = sshll.u32 %s9, 4
          %s402 = int_to_ptr.vmem [resolvable:$true] %s401
          %404 = dma.vmem_to_smem %s402, 16, [#allocation18], [#allocation17]
        $region48: #{stcb_forward.1} parent=11 // pred_fallthru
          _
        // Predicated region
        $region49: #{stcb_forward.1} parent=11 // pred_check
          %p405 = pneg %p265
        $region50: #{stcb_forward.1} parent=11 // pred_check_branch
          %407 = sbr.rel (%p405) target = $region52
        $region51: #{stcb_forward.1} parent=11 // pred_region
          %s409 = ssub.s32 16, 16
          %410 = vsyncadd [#allocation20], %s409
          %s412 = sshll.u32 %s10, 4
          %s413 = int_to_ptr.vmem [resolvable:$true] %s412
          %415 = dma.vmem_to_smem %s413, 16, [#allocation19], [#allocation20]
        $region52: #{stcb_forward.1} parent=11 // pred_fallthru
          _
      $region12: #{stcb_forward.1} parent=5 // pred_fallthru
        _
      %p416 = scmp.lt.s32.totalorder %s29, 2
      // Predicated region
      $region53: #{stcb_forward.1} parent=5 // pred_check
        %p417 = pneg %p416
      $region54: #{stcb_forward.1} parent=5 // pred_check_branch
        %419 = sbr.rel (%p417) target = $region56
      $region55: #{stcb_forward.1} parent=5 // pred_region
        // Predicated region
        $region57: #{stcb_forward.1} parent=55 // pred_check
          %p420 = pneg %p49
        $region58: #{stcb_forward.1} parent=55 // pred_check_branch
          %422 = sbr.rel (%p420) target = $region60
        $region59: #{stcb_forward.1} parent=55 // pred_region
          %s423 = sand.u32 %s39, 1
          %s424 = scalar_lea.sflag [#allocation3], %s423
          %s425 = sand.u32 %s39, 1
          %s426 = smul.addr %s425, 128
          %s427 = scalar_lea.vmem [#allocation2], %s426
          %s428 = smul.u32 4, %s29
          %s430 = ssub.s32 2048, 2048
          %431 = vsyncadd %s424, %s430
          %s432 = smul.addr %s428, 4
          %s433 = smul.addr %s432, 128
          %s434 = scalar_lea.hbm %s0, %s433
          %s435 = sshll.u32 %s427, 4
          %s436 = int_to_ptr.vmem [resolvable:$true] %s435
          %441 = dma.hbm_to_vmem [thread:$0]  %s434, 2048, %s436, %s424, 128, 128, 8
        $region60: #{stcb_forward.1} parent=55 // pred_fallthru
          _
      $region56: #{stcb_forward.1} parent=5 // pred_fallthru
        _
      %p442 = scmp.le.s32.totalorder 1, %s29
      %p443 = scmp.lt.s32.totalorder %s29, 3
      %p444 = pnand %p442, %p443
      %p445 = pneg %p444
      // Predicated region
      $region61: #{stcb_forward.1} parent=5 // pred_check
        _
      $region62: #{stcb_forward.1} parent=5 // pred_check_branch
        %447 = sbr.rel (%p444) target = $region64
      $region63: #{stcb_forward.1} parent=5 // pred_region
        %s448 = ssub.s32 %s29, 1
        %s449 = sand.u32 %s42, 1
        %s450 = scalar_lea.sflag [#allocation3], %s449
        %s451 = sand.u32 %s42, 1
        %s452 = smul.addr %s451, 128
        %s453 = scalar_lea.vmem [#allocation2], %s452
        // Predicated region
        $region65: #{stcb_forward.1} parent=63 // pred_check
          %p454 = pneg %p55
        $region66: #{stcb_forward.1} parent=63 // pred_check_branch
          %456 = sbr.rel (%p454) target = $region68
        $region67: #{stcb_forward.1} parent=63 // pred_region
          %457 = dma.done %s450, 2048
        $region68: #{stcb_forward.1} parent=63 // pred_fallthru
          _
        // Predicated region
        $region69: #{stcb_forward.1} parent=63 // pred_check
          %p458 = pneg %p76
        $region70: #{stcb_forward.1} parent=63 // pred_check_branch
          %460 = sbr.rel (%p458) target = $region72
        $region71: #{stcb_forward.1} parent=63 // pred_region
          %461 = dma.done [#allocation5], 16
        $region72: #{stcb_forward.1} parent=63 // pred_fallthru
          _
        // Predicated region
        $region73: #{stcb_forward.1} parent=63 // pred_check
          %p462 = pneg %p97
        $region74: #{stcb_forward.1} parent=63 // pred_check_branch
          %464 = sbr.rel (%p462) target = $region76
        $region75: #{stcb_forward.1} parent=63 // pred_region
          %465 = dma.done [#allocation8], 16
        $region76: #{stcb_forward.1} parent=63 // pred_fallthru
          _
        // Predicated region
        $region77: #{stcb_forward.1} parent=63 // pred_check
          %p466 = pneg %p118
        $region78: #{stcb_forward.1} parent=63 // pred_check_branch
          %468 = sbr.rel (%p466) target = $region80
        $region79: #{stcb_forward.1} parent=63 // pred_region
          %469 = dma.done [#allocation8], 16
        $region80: #{stcb_forward.1} parent=63 // pred_fallthru
          _
        // Predicated region
        $region81: #{stcb_forward.1} parent=63 // pred_check
          %p470 = pneg %p139
        $region82: #{stcb_forward.1} parent=63 // pred_check_branch
          %472 = sbr.rel (%p470) target = $region84
        $region83: #{stcb_forward.1} parent=63 // pred_region
          %473 = dma.done [#allocation11], 16
        $region84: #{stcb_forward.1} parent=63 // pred_fallthru
          _
        // Predicated region
        $region85: #{stcb_forward.1} parent=63 // pred_check
          %p474 = pneg %p160
        $region86: #{stcb_forward.1} parent=63 // pred_check_branch
          %476 = sbr.rel (%p474) target = $region88
        $region87: #{stcb_forward.1} parent=63 // pred_region
          %477 = dma.done [#allocation11], 16
        $region88: #{stcb_forward.1} parent=63 // pred_fallthru
          _
        // Predicated region
        $region89: #{stcb_forward.1} parent=63 // pred_check
          %p478 = pneg %p181
        $region90: #{stcb_forward.1} parent=63 // pred_check_branch
          %480 = sbr.rel (%p478) target = $region92
        $region91: #{stcb_forward.1} parent=63 // pred_region
          %481 = dma.done [#allocation14], 16
        $region92: #{stcb_forward.1} parent=63 // pred_fallthru
          _
        // Predicated region
        $region93: #{stcb_forward.1} parent=63 // pred_check
          %p482 = pneg %p202
        $region94: #{stcb_forward.1} parent=63 // pred_check_branch
          %484 = sbr.rel (%p482) target = $region96
        $region95: #{stcb_forward.1} parent=63 // pred_region
          %485 = dma.done [#allocation14], 16
        $region96: #{stcb_forward.1} parent=63 // pred_fallthru
          _
        // Predicated region
        $region97: #{stcb_forward.1} parent=63 // pred_check
          %p486 = pneg %p223
        $region98: #{stcb_forward.1} parent=63 // pred_check_branch
          %488 = sbr.rel (%p486) target = $region100
        $region99: #{stcb_forward.1} parent=63 // pred_region
          %489 = dma.done [#allocation17], 16
        $region100: #{stcb_forward.1} parent=63 // pred_fallthru
          _
        // Predicated region
        $region101: #{stcb_forward.1} parent=63 // pred_check
          %p490 = pneg %p244
        $region102: #{stcb_forward.1} parent=63 // pred_check_branch
          %492 = sbr.rel (%p490) target = $region104
        $region103: #{stcb_forward.1} parent=63 // pred_region
          %493 = dma.done [#allocation17], 16
        $region104: #{stcb_forward.1} parent=63 // pred_fallthru
          _
        // Predicated region
        $region105: #{stcb_forward.1} parent=63 // pred_check
          %p494 = pneg %p265
        $region106: #{stcb_forward.1} parent=63 // pred_check_branch
          %496 = sbr.rel (%p494) target = $region108
        $region107: #{stcb_forward.1} parent=63 // pred_region
          %497 = dma.done [#allocation20], 16
        $region108: #{stcb_forward.1} parent=63 // pred_fallthru
          _
        %498 = sfence
        %s499 = sand.u32 %s42, 1
        %s500 = scalar_lea.sflag [#allocation3], %s499
        %s501 = sand.u32 %s42, 1
        %s502 = smul.addr %s501, 128
        %s503 = scalar_lea.vmem [#allocation2], %s502
        %p504 = pneg %p55
        %p505 = pneg %p52
        %p506 = pneg %p76
        %p507 = pneg %p73
        %p508 = pneg %p97
        %p509 = pneg %p94
        %p510 = pneg %p118
        %p511 = pneg %p115
        %p512 = pneg %p139
        %p513 = pneg %p136
        %p514 = pneg %p160
        %p515 = pneg %p157
        %p516 = pneg %p181
        %p517 = pneg %p178
        %p518 = pneg %p202
        %p519 = pneg %p199
        %p520 = pneg %p223
        %p521 = pneg %p220
        %p522 = pneg %p244
        %p523 = pneg %p241
        %p524 = pneg %p265
        %p525 = pneg %p262
        %p526 = pneg %p291
        %p527 = pneg %p288
        %s528 = sand.u32 %s278, 1
        %s529 = scalar_lea.sflag [#allocation4], %s528
        %s530 = sand.u32 %s278, 1
        %s531 = smul.addr %s530, 128
        %s532 = scalar_lea.vmem [#allocation21], %s531
        %s533 = smul.u32 4, %s34
        %s534 = smul.u32 4, %s34
        %v535 = vld [vmem:[%s453] sm:$0xff]
        %v536 = vld [vmem:[%s453 + $0x20] sm:$0xff]
        %v537 = vld [vmem:[%s453 + $0x40] sm:$0xff]
        %v538 = vld [vmem:[%s453 + $0x60] sm:$0xff]
        %s539 = scalar_lea.vmem %s453, 8 [#allocation2]
        %v540 = vld [vmem:[%s539] sm:$0xff]
        %v541 = vld [vmem:[%s539 + $0x20] sm:$0xff]
        %v542 = vld [vmem:[%s539 + $0x40] sm:$0xff]
        %v543 = vld [vmem:[%s539 + $0x60] sm:$0xff]
        %s544 = scalar_lea.vmem %s453, 16 [#allocation2]
        %v545 = vld [vmem:[%s544] sm:$0xff]
        %v546 = vld [vmem:[%s544 + $0x20] sm:$0xff]
        %v547 = vld [vmem:[%s544 + $0x40] sm:$0xff]
        %v548 = vld [vmem:[%s544 + $0x60] sm:$0xff]
        %s549 = scalar_lea.vmem %s453, 24 [#allocation2]
        %v550 = vld [vmem:[%s549] sm:$0xff]
        %v551 = vld [vmem:[%s549 + $0x20] sm:$0xff]
        %v552 = vld [vmem:[%s549 + $0x40] sm:$0xff]
        %v553 = vld [vmem:[%s549 + $0x60] sm:$0xff]
        %s554 = sld [smem:[#allocation6]]
        %v555 = vstv %s554
        %v556 = vmul.f32 %v555, %v535
        %v557 = vmul.f32 %v555, %v536
        %v558 = vmul.f32 %v555, %v537
        %v559 = vmul.f32 %v555, %v538
        %v560 = vadd.f32 %v556, 0.0
        %v561 = vadd.f32 %v557, 0.0
        %v562 = vadd.f32 %v558, 0.0
        %v563 = vadd.f32 %v559, 0.0
        %s564 = sld [smem:[#allocation9]]
        %v565 = vstv %s564
        %v566 = vmul.f32 %v565, %v535
        %v567 = vmul.f32 %v565, %v536
        %v568 = vmul.f32 %v565, %v537
        %v569 = vmul.f32 %v565, %v538
        %v570 = vadd.f32 %v566, 0.0
        %v571 = vadd.f32 %v567, 0.0
        %v572 = vadd.f32 %v568, 0.0
        %v573 = vadd.f32 %v569, 0.0
        %s574 = sld [smem:[#allocation6 + $0x1]]
        %v575 = vstv %s574
        %v576 = vmul.f32 %v575, %v540
        %v577 = vmul.f32 %v575, %v541
        %v578 = vmul.f32 %v575, %v542
        %v579 = vmul.f32 %v575, %v543
        %v580 = vadd.f32 %v560, %v576
        %v581 = vadd.f32 %v561, %v577
        %v582 = vadd.f32 %v562, %v578
        %v583 = vadd.f32 %v563, %v579
        %s584 = sld [smem:[#allocation9 + $0x1]]
        %v585 = vstv %s584
        %v586 = vmul.f32 %v585, %v540
        %v587 = vmul.f32 %v585, %v541
        %v588 = vmul.f32 %v585, %v542
        %v589 = vmul.f32 %v585, %v543
        %v590 = vadd.f32 %v570, %v586
        %v591 = vadd.f32 %v571, %v587
        %v592 = vadd.f32 %v572, %v588
        %v593 = vadd.f32 %v573, %v589
        %s594 = sld [smem:[#allocation6 + $0x2]]
        %v595 = vstv %s594
        %v596 = vmul.f32 %v595, %v545
        %v597 = vmul.f32 %v595, %v546
        %v598 = vmul.f32 %v595, %v547
        %v599 = vmul.f32 %v595, %v548
        %v600 = vadd.f32 %v580, %v596
        %v601 = vadd.f32 %v581, %v597
        %v602 = vadd.f32 %v582, %v598
        %v603 = vadd.f32 %v583, %v599
        %s604 = sld [smem:[#allocation9 + $0x2]]
        %v605 = vstv %s604
        %v606 = vmul.f32 %v605, %v545
        %v607 = vmul.f32 %v605, %v546
        %v608 = vmul.f32 %v605, %v547
        %v609 = vmul.f32 %v605, %v548
        %v610 = vadd.f32 %v590, %v606
        %v611 = vadd.f32 %v591, %v607
        %v612 = vadd.f32 %v592, %v608
        %v613 = vadd.f32 %v593, %v609
        %s614 = sld [smem:[#allocation6 + $0x3]]
        %v615 = vstv %s614
        %v616 = vmul.f32 %v615, %v550
        %v617 = vmul.f32 %v615, %v551
        %v618 = vmul.f32 %v615, %v552
        %v619 = vmul.f32 %v615, %v553
        %v620 = vadd.f32 %v600, %v616
        %v621 = vadd.f32 %v601, %v617
        %v622 = vadd.f32 %v602, %v618
        %v623 = vadd.f32 %v603, %v619
        %s624 = sld [smem:[#allocation9 + $0x3]]
        %v625 = vstv %s624
        %v626 = vmul.f32 %v625, %v550
        %v627 = vmul.f32 %v625, %v551
        %v628 = vmul.f32 %v625, %v552
        %v629 = vmul.f32 %v625, %v553
        %v630 = vadd.f32 %v610, %v626
        %v631 = vadd.f32 %v611, %v627
        %v632 = vadd.f32 %v612, %v628
        %v633 = vadd.f32 %v613, %v629
        %s634 = sld [smem:[#allocation7]]
        %v635 = vstv %s634
        %v636 = vadd.f32 %v620, %v635
        %v637 = vadd.f32 %v621, %v635
        %v638 = vadd.f32 %v622, %v635
        %v639 = vadd.f32 %v623, %v635
        %s640 = sld [smem:[#allocation10]]
        %v641 = vstv %s640
        %v642 = vadd.f32 %v630, %v641
        %v643 = vadd.f32 %v631, %v641
        %v644 = vadd.f32 %v632, %v641
        %v645 = vadd.f32 %v633, %v641
        %vm646 = vcmask 818176
        %647 = vst.msk [vmem:[%s532] sm:$0xff] %vm646, %v636
        %648 = vst.msk [vmem:[%s532 + $0x20] sm:$0xff] %vm646, %v637
        %649 = vst.msk [vmem:[%s532 + $0x40] sm:$0xff] %vm646, %v638
        %650 = vst.msk [vmem:[%s532 + $0x60] sm:$0xff] %vm646, %v639
        %v651 = vadd.f32 %v636, %v642
        %v652 = vadd.f32 %v637, %v643
        %v653 = vadd.f32 %v638, %v644
        %v654 = vadd.f32 %v639, %v645
        %v655 = vmax.f32 %v651, 0.0
        %v656 = vmax.f32 %v652, 0.0
        %v657 = vmax.f32 %v653, 0.0
        %v658 = vmax.f32 %v654, 0.0
        %s659 = sld [smem:[#allocation6 + $0x4]]
        %v660 = vstv %s659
        %v661 = vmul.f32 %v660, %v535
        %v662 = vmul.f32 %v660, %v536
        %v663 = vmul.f32 %v660, %v537
        %v664 = vmul.f32 %v660, %v538
        %v665 = vadd.f32 %v661, 0.0
        %v666 = vadd.f32 %v662, 0.0
        %v667 = vadd.f32 %v663, 0.0
        %v668 = vadd.f32 %v664, 0.0
        %s669 = sld [smem:[#allocation9 + $0x4]]
        %v670 = vstv %s669
        %v671 = vmul.f32 %v670, %v535
        %v672 = vmul.f32 %v670, %v536
        %v673 = vmul.f32 %v670, %v537
        %v674 = vmul.f32 %v670, %v538
        %v675 = vadd.f32 %v671, 0.0
        %v676 = vadd.f32 %v672, 0.0
        %v677 = vadd.f32 %v673, 0.0
        %v678 = vadd.f32 %v674, 0.0
        %s679 = sld [smem:[#allocation6 + $0x5]]
        %v680 = vstv %s679
        %v681 = vmul.f32 %v680, %v540
        %v682 = vmul.f32 %v680, %v541
        %v683 = vmul.f32 %v680, %v542
        %v684 = vmul.f32 %v680, %v543
        %v685 = vadd.f32 %v665, %v681
        %v686 = vadd.f32 %v666, %v682
        %v687 = vadd.f32 %v667, %v683
        %v688 = vadd.f32 %v668, %v684
        %s689 = sld [smem:[#allocation9 + $0x5]]
        %v690 = vstv %s689
        %v691 = vmul.f32 %v690, %v540
        %v692 = vmul.f32 %v690, %v541
        %v693 = vmul.f32 %v690, %v542
        %v694 = vmul.f32 %v690, %v543
        %v695 = vadd.f32 %v675, %v691
        %v696 = vadd.f32 %v676, %v692
        %v697 = vadd.f32 %v677, %v693
        %v698 = vadd.f32 %v678, %v694
        %s699 = sld [smem:[#allocation6 + $0x6]]
        %v700 = vstv %s699
        %v701 = vmul.f32 %v700, %v545
        %v702 = vmul.f32 %v700, %v546
        %v703 = vmul.f32 %v700, %v547
        %v704 = vmul.f32 %v700, %v548
        %v705 = vadd.f32 %v685, %v701
        %v706 = vadd.f32 %v686, %v702
        %v707 = vadd.f32 %v687, %v703
        %v708 = vadd.f32 %v688, %v704
        %s709 = sld [smem:[#allocation9 + $0x6]]
        %v710 = vstv %s709
        %v711 = vmul.f32 %v710, %v545
        %v712 = vmul.f32 %v710, %v546
        %v713 = vmul.f32 %v710, %v547
        %v714 = vmul.f32 %v710, %v548
        %v715 = vadd.f32 %v695, %v711
        %v716 = vadd.f32 %v696, %v712
        %v717 = vadd.f32 %v697, %v713
        %v718 = vadd.f32 %v698, %v714
        %s719 = sld [smem:[#allocation6 + $0x7]]
        %v720 = vstv %s719
        %v721 = vmul.f32 %v720, %v550
        %v722 = vmul.f32 %v720, %v551
        %v723 = vmul.f32 %v720, %v552
        %v724 = vmul.f32 %v720, %v553
        %v725 = vadd.f32 %v705, %v721
        %v726 = vadd.f32 %v706, %v722
        %v727 = vadd.f32 %v707, %v723
        %v728 = vadd.f32 %v708, %v724
        %s729 = sld [smem:[#allocation9 + $0x7]]
        %v730 = vstv %s729
        %v731 = vmul.f32 %v730, %v550
        %v732 = vmul.f32 %v730, %v551
        %v733 = vmul.f32 %v730, %v552
        %v734 = vmul.f32 %v730, %v553
        %v735 = vadd.f32 %v715, %v731
        %v736 = vadd.f32 %v716, %v732
        %v737 = vadd.f32 %v717, %v733
        %v738 = vadd.f32 %v718, %v734
        %s739 = sld [smem:[#allocation7 + $0x1]]
        %v740 = vstv %s739
        %v741 = vadd.f32 %v725, %v740
        %v742 = vadd.f32 %v726, %v740
        %v743 = vadd.f32 %v727, %v740
        %v744 = vadd.f32 %v728, %v740
        %s745 = sld [smem:[#allocation10 + $0x1]]
        %v746 = vstv %s745
        %v747 = vadd.f32 %v735, %v746
        %v748 = vadd.f32 %v736, %v746
        %v749 = vadd.f32 %v737, %v746
        %v750 = vadd.f32 %v738, %v746
        %s751 = scalar_lea.vmem %s532, 8 [#allocation21]
        %752 = vst.msk [vmem:[%s751] sm:$0xff] %vm646, %v741
        %753 = vst.msk [vmem:[%s751 + $0x20] sm:$0xff] %vm646, %v742
        %754 = vst.msk [vmem:[%s751 + $0x40] sm:$0xff] %vm646, %v743
        %755 = vst.msk [vmem:[%s751 + $0x60] sm:$0xff] %vm646, %v744
        %v756 = vadd.f32 %v741, %v747
        %v757 = vadd.f32 %v742, %v748
        %v758 = vadd.f32 %v743, %v749
        %v759 = vadd.f32 %v744, %v750
        %v760 = vmax.f32 %v756, 0.0
        %v761 = vmax.f32 %v757, 0.0
        %v762 = vmax.f32 %v758, 0.0
        %v763 = vmax.f32 %v759, 0.0
        %s764 = sld [smem:[#allocation6 + $0x8]]
        %v765 = vstv %s764
        %v766 = vmul.f32 %v765, %v535
        %v767 = vmul.f32 %v765, %v536
        %v768 = vmul.f32 %v765, %v537
        %v769 = vmul.f32 %v765, %v538
        %v770 = vadd.f32 %v766, 0.0
        %v771 = vadd.f32 %v767, 0.0
        %v772 = vadd.f32 %v768, 0.0
        %v773 = vadd.f32 %v769, 0.0
        %s774 = sld [smem:[#allocation9 + $0x8]]
        %v775 = vstv %s774
        %v776 = vmul.f32 %v775, %v535
        %v777 = vmul.f32 %v775, %v536
        %v778 = vmul.f32 %v775, %v537
        %v779 = vmul.f32 %v775, %v538
        %v780 = vadd.f32 %v776, 0.0
        %v781 = vadd.f32 %v777, 0.0
        %v782 = vadd.f32 %v778, 0.0
        %v783 = vadd.f32 %v779, 0.0
        %s784 = sld [smem:[#allocation6 + $0x9]]
        %v785 = vstv %s784
        %v786 = vmul.f32 %v785, %v540
        %v787 = vmul.f32 %v785, %v541
        %v788 = vmul.f32 %v785, %v542
        %v789 = vmul.f32 %v785, %v543
        %v790 = vadd.f32 %v770, %v786
        %v791 = vadd.f32 %v771, %v787
        %v792 = vadd.f32 %v772, %v788
        %v793 = vadd.f32 %v773, %v789
        %s794 = sld [smem:[#allocation9 + $0x9]]
        %v795 = vstv %s794
        %v796 = vmul.f32 %v795, %v540
        %v797 = vmul.f32 %v795, %v541
        %v798 = vmul.f32 %v795, %v542
        %v799 = vmul.f32 %v795, %v543
        %v800 = vadd.f32 %v780, %v796
        %v801 = vadd.f32 %v781, %v797
        %v802 = vadd.f32 %v782, %v798
        %v803 = vadd.f32 %v783, %v799
        %s804 = sld [smem:[#allocation6 + $0xa]]
        %v805 = vstv %s804
        %v806 = vmul.f32 %v805, %v545
        %v807 = vmul.f32 %v805, %v546
        %v808 = vmul.f32 %v805, %v547
        %v809 = vmul.f32 %v805, %v548
        %v810 = vadd.f32 %v790, %v806
        %v811 = vadd.f32 %v791, %v807
        %v812 = vadd.f32 %v792, %v808
        %v813 = vadd.f32 %v793, %v809
        %s814 = sld [smem:[#allocation9 + $0xa]]
        %v815 = vstv %s814
        %v816 = vmul.f32 %v815, %v545
        %v817 = vmul.f32 %v815, %v546
        %v818 = vmul.f32 %v815, %v547
        %v819 = vmul.f32 %v815, %v548
        %v820 = vadd.f32 %v800, %v816
        %v821 = vadd.f32 %v801, %v817
        %v822 = vadd.f32 %v802, %v818
        %v823 = vadd.f32 %v803, %v819
        %s824 = sld [smem:[#allocation6 + $0xb]]
        %v825 = vstv %s824
        %v826 = vmul.f32 %v825, %v550
        %v827 = vmul.f32 %v825, %v551
        %v828 = vmul.f32 %v825, %v552
        %v829 = vmul.f32 %v825, %v553
        %v830 = vadd.f32 %v810, %v826
        %v831 = vadd.f32 %v811, %v827
        %v832 = vadd.f32 %v812, %v828
        %v833 = vadd.f32 %v813, %v829
        %s834 = sld [smem:[#allocation9 + $0xb]]
        %v835 = vstv %s834
        %v836 = vmul.f32 %v835, %v550
        %v837 = vmul.f32 %v835, %v551
        %v838 = vmul.f32 %v835, %v552
        %v839 = vmul.f32 %v835, %v553
        %v840 = vadd.f32 %v820, %v836
        %v841 = vadd.f32 %v821, %v837
        %v842 = vadd.f32 %v822, %v838
        %v843 = vadd.f32 %v823, %v839
        %s844 = sld [smem:[#allocation7 + $0x2]]
        %v845 = vstv %s844
        %v846 = vadd.f32 %v830, %v845
        %v847 = vadd.f32 %v831, %v845
        %v848 = vadd.f32 %v832, %v845
        %v849 = vadd.f32 %v833, %v845
        %s850 = sld [smem:[#allocation10 + $0x2]]
        %v851 = vstv %s850
        %v852 = vadd.f32 %v840, %v851
        %v853 = vadd.f32 %v841, %v851
        %v854 = vadd.f32 %v842, %v851
        %v855 = vadd.f32 %v843, %v851
        %s856 = scalar_lea.vmem %s532, 16 [#allocation21]
        %857 = vst.msk [vmem:[%s856] sm:$0xff] %vm646, %v846
        %858 = vst.msk [vmem:[%s856 + $0x20] sm:$0xff] %vm646, %v847
        %859 = vst.msk [vmem:[%s856 + $0x40] sm:$0xff] %vm646, %v848
        %860 = vst.msk [vmem:[%s856 + $0x60] sm:$0xff] %vm646, %v849
        %v861 = vadd.f32 %v846, %v852
        %v862 = vadd.f32 %v847, %v853
        %v863 = vadd.f32 %v848, %v854
        %v864 = vadd.f32 %v849, %v855
        %v865 = vmax.f32 %v861, 0.0
        %v866 = vmax.f32 %v862, 0.0
        %v867 = vmax.f32 %v863, 0.0
        %v868 = vmax.f32 %v864, 0.0
        %s869 = sld [smem:[#allocation6 + $0xc]]
        %v870 = vstv %s869
        %v871 = vmul.f32 %v870, %v535
        %v872 = vmul.f32 %v870, %v536
        %v873 = vmul.f32 %v870, %v537
        %v874 = vmul.f32 %v870, %v538
        %v875 = vadd.f32 %v871, 0.0
        %v876 = vadd.f32 %v872, 0.0
        %v877 = vadd.f32 %v873, 0.0
        %v878 = vadd.f32 %v874, 0.0
        %s879 = sld [smem:[#allocation9 + $0xc]]
        %v880 = vstv %s879
        %v881 = vmul.f32 %v880, %v535
        %v882 = vmul.f32 %v880, %v536
        %v883 = vmul.f32 %v880, %v537
        %v884 = vmul.f32 %v880, %v538
        %v885 = vadd.f32 %v881, 0.0
        %v886 = vadd.f32 %v882, 0.0
        %v887 = vadd.f32 %v883, 0.0
        %v888 = vadd.f32 %v884, 0.0
        %s889 = sld [smem:[#allocation6 + $0xd]]
        %v890 = vstv %s889
        %v891 = vmul.f32 %v890, %v540
        %v892 = vmul.f32 %v890, %v541
        %v893 = vmul.f32 %v890, %v542
        %v894 = vmul.f32 %v890, %v543
        %v895 = vadd.f32 %v875, %v891
        %v896 = vadd.f32 %v876, %v892
        %v897 = vadd.f32 %v877, %v893
        %v898 = vadd.f32 %v878, %v894
        %s899 = sld [smem:[#allocation9 + $0xd]]
        %v900 = vstv %s899
        %v901 = vmul.f32 %v900, %v540
        %v902 = vmul.f32 %v900, %v541
        %v903 = vmul.f32 %v900, %v542
        %v904 = vmul.f32 %v900, %v543
        %v905 = vadd.f32 %v885, %v901
        %v906 = vadd.f32 %v886, %v902
        %v907 = vadd.f32 %v887, %v903
        %v908 = vadd.f32 %v888, %v904
        %s909 = sld [smem:[#allocation6 + $0xe]]
        %v910 = vstv %s909
        %v911 = vmul.f32 %v910, %v545
        %v912 = vmul.f32 %v910, %v546
        %v913 = vmul.f32 %v910, %v547
        %v914 = vmul.f32 %v910, %v548
        %v915 = vadd.f32 %v895, %v911
        %v916 = vadd.f32 %v896, %v912
        %v917 = vadd.f32 %v897, %v913
        %v918 = vadd.f32 %v898, %v914
        %s919 = sld [smem:[#allocation9 + $0xe]]
        %v920 = vstv %s919
        %v921 = vmul.f32 %v920, %v545
        %v922 = vmul.f32 %v920, %v546
        %v923 = vmul.f32 %v920, %v547
        %v924 = vmul.f32 %v920, %v548
        %v925 = vadd.f32 %v905, %v921
        %v926 = vadd.f32 %v906, %v922
        %v927 = vadd.f32 %v907, %v923
        %v928 = vadd.f32 %v908, %v924
        %s929 = sld [smem:[#allocation6 + $0xf]]
        %v930 = vstv %s929
        %v931 = vmul.f32 %v930, %v550
        %v932 = vmul.f32 %v930, %v551
        %v933 = vmul.f32 %v930, %v552
        %v934 = vmul.f32 %v930, %v553
        %v935 = vadd.f32 %v915, %v931
        %v936 = vadd.f32 %v916, %v932
        %v937 = vadd.f32 %v917, %v933
        %v938 = vadd.f32 %v918, %v934
        %s939 = sld [smem:[#allocation9 + $0xf]]
        %v940 = vstv %s939
        %v941 = vmul.f32 %v940, %v550
        %v942 = vmul.f32 %v940, %v551
        %v943 = vmul.f32 %v940, %v552
        %v944 = vmul.f32 %v940, %v553
        %v945 = vadd.f32 %v925, %v941
        %v946 = vadd.f32 %v926, %v942
        %v947 = vadd.f32 %v927, %v943
        %v948 = vadd.f32 %v928, %v944
        %s949 = sld [smem:[#allocation7 + $0x3]]
        %v950 = vstv %s949
        %v951 = vadd.f32 %v935, %v950
        %v952 = vadd.f32 %v936, %v950
        %v953 = vadd.f32 %v937, %v950
        %v954 = vadd.f32 %v938, %v950
        %s955 = sld [smem:[#allocation10 + $0x3]]
        %v956 = vstv %s955
        %v957 = vadd.f32 %v945, %v956
        %v958 = vadd.f32 %v946, %v956
        %v959 = vadd.f32 %v947, %v956
        %v960 = vadd.f32 %v948, %v956
        %s961 = scalar_lea.vmem %s532, 24 [#allocation21]
        %962 = vst.msk [vmem:[%s961] sm:$0xff] %vm646, %v951
        %963 = vst.msk [vmem:[%s961 + $0x20] sm:$0xff] %vm646, %v952
        %964 = vst.msk [vmem:[%s961 + $0x40] sm:$0xff] %vm646, %v953
        %965 = vst.msk [vmem:[%s961 + $0x60] sm:$0xff] %vm646, %v954
        %v966 = vadd.f32 %v951, %v957
        %v967 = vadd.f32 %v952, %v958
        %v968 = vadd.f32 %v953, %v959
        %v969 = vadd.f32 %v954, %v960
        %v970 = vmax.f32 %v966, 0.0
        %v971 = vmax.f32 %v967, 0.0
        %v972 = vmax.f32 %v968, 0.0
        %v973 = vmax.f32 %v969, 0.0
        %978 = vrot.lane.b32.xlu0 %v655, 45
        %v979 = vpop.permute.xlu0 %978
        %980 = vrot.lane.b32.xlu0 %v656, 45
        %v981 = vpop.permute.xlu0 %980
        %982 = vrot.lane.b32.xlu0 %v657, 45
        %v983 = vpop.permute.xlu0 %982
        %984 = vrot.lane.b32.xlu0 %v658, 45
        %v985 = vpop.permute.xlu0 %984
        %vm990 = vcmask 367616
        %v991 = vsel %vm990, 0.0, %v979
        %v992 = vsel %vm990, 0.0, %v981
        %v993 = vsel %vm990, 0.0, %v983
        %v994 = vsel %vm990, 0.0, %v985
        %s995 = sld [smem:[#allocation12]]
        %v996 = vstv %s995
        %v997 = vmul.f32 %v996, %v991
        %v998 = vmul.f32 %v996, %v992
        %v999 = vmul.f32 %v996, %v993
        %v1000 = vmul.f32 %v996, %v994
        %v1001 = vadd.f32 %v997, 0.0
        %v1002 = vadd.f32 %v998, 0.0
        %v1003 = vadd.f32 %v999, 0.0
        %v1004 = vadd.f32 %v1000, 0.0
        %s1005 = sld [smem:[#allocation12 + $0x18]]
        %v1006 = vstv %s1005
        %v1007 = vmul.f32 %v1006, %v991
        %v1008 = vmul.f32 %v1006, %v992
        %v1009 = vmul.f32 %v1006, %v993
        %v1010 = vmul.f32 %v1006, %v994
        %v1011 = vadd.f32 %v1007, 0.0
        %v1012 = vadd.f32 %v1008, 0.0
        %v1013 = vadd.f32 %v1009, 0.0
        %v1014 = vadd.f32 %v1010, 0.0
        %s1015 = sld [smem:[#allocation12 + $0x30]]
        %v1016 = vstv %s1015
        %v1017 = vmul.f32 %v1016, %v991
        %v1018 = vmul.f32 %v1016, %v992
        %v1019 = vmul.f32 %v1016, %v993
        %v1020 = vmul.f32 %v1016, %v994
        %v1021 = vadd.f32 %v1017, 0.0
        %v1022 = vadd.f32 %v1018, 0.0
        %v1023 = vadd.f32 %v1019, 0.0
        %v1024 = vadd.f32 %v1020, 0.0
        %s1025 = sld [smem:[#allocation12 + $0x48]]
        %v1026 = vstv %s1025
        %v1027 = vmul.f32 %v1026, %v991
        %v1028 = vmul.f32 %v1026, %v992
        %v1029 = vmul.f32 %v1026, %v993
        %v1030 = vmul.f32 %v1026, %v994
        %v1031 = vadd.f32 %v1027, 0.0
        %v1032 = vadd.f32 %v1028, 0.0
        %v1033 = vadd.f32 %v1029, 0.0
        %v1034 = vadd.f32 %v1030, 0.0
        %1035 = vrot.lane.b32.xlu0 %v655, 36
        %v1036 = vpop.permute.xlu0 %1035
        %1037 = vrot.lane.b32.xlu0 %v656, 36
        %v1038 = vpop.permute.xlu0 %1037
        %1039 = vrot.lane.b32.xlu0 %v657, 36
        %v1040 = vpop.permute.xlu0 %1039
        %1041 = vrot.lane.b32.xlu0 %v658, 36
        %v1042 = vpop.permute.xlu0 %1041
        %vm1047 = vcmask 293888
        %v1048 = vsel %vm1047, 0.0, %v1036
        %v1049 = vsel %vm1047, 0.0, %v1038
        %v1050 = vsel %vm1047, 0.0, %v1040
        %v1051 = vsel %vm1047, 0.0, %v1042
        %s1052 = sld [smem:[#allocation12 + $0x1]]
        %v1053 = vstv %s1052
        %v1054 = vmul.f32 %v1053, %v1048
        %v1055 = vmul.f32 %v1053, %v1049
        %v1056 = vmul.f32 %v1053, %v1050
        %v1057 = vmul.f32 %v1053, %v1051
        %v1058 = vadd.f32 %v1001, %v1054
        %v1059 = vadd.f32 %v1002, %v1055
        %v1060 = vadd.f32 %v1003, %v1056
        %v1061 = vadd.f32 %v1004, %v1057
        %s1062 = sld [smem:[#allocation12 + $0x19]]
        %v1063 = vstv %s1062
        %v1064 = vmul.f32 %v1063, %v1048
        %v1065 = vmul.f32 %v1063, %v1049
        %v1066 = vmul.f32 %v1063, %v1050
        %v1067 = vmul.f32 %v1063, %v1051
        %v1068 = vadd.f32 %v1011, %v1064
        %v1069 = vadd.f32 %v1012, %v1065
        %v1070 = vadd.f32 %v1013, %v1066
        %v1071 = vadd.f32 %v1014, %v1067
        %s1072 = sld [smem:[#allocation12 + $0x31]]
        %v1073 = vstv %s1072
        %v1074 = vmul.f32 %v1073, %v1048
        %v1075 = vmul.f32 %v1073, %v1049
        %v1076 = vmul.f32 %v1073, %v1050
        %v1077 = vmul.f32 %v1073, %v1051
        %v1078 = vadd.f32 %v1021, %v1074
        %v1079 = vadd.f32 %v1022, %v1075
        %v1080 = vadd.f32 %v1023, %v1076
        %v1081 = vadd.f32 %v1024, %v1077
        %s1082 = sld [smem:[#allocation12 + $0x49]]
        %v1083 = vstv %s1082
        %v1084 = vmul.f32 %v1083, %v1048
        %v1085 = vmul.f32 %v1083, %v1049
        %v1086 = vmul.f32 %v1083, %v1050
        %v1087 = vmul.f32 %v1083, %v1051
        %v1088 = vadd.f32 %v1031, %v1084
        %v1089 = vadd.f32 %v1032, %v1085
        %v1090 = vadd.f32 %v1033, %v1086
        %v1091 = vadd.f32 %v1034, %v1087
        %1092 = vrot.lane.b32.xlu0 %v655, 27
        %v1093 = vpop.permute.xlu0 %1092
        %1094 = vrot.lane.b32.xlu0 %v656, 27
        %v1095 = vpop.permute.xlu0 %1094
        %1096 = vrot.lane.b32.xlu0 %v657, 27
        %v1097 = vpop.permute.xlu0 %1096
        %1098 = vrot.lane.b32.xlu0 %v658, 27
        %v1099 = vpop.permute.xlu0 %1098
        %vm1104 = vcmask 220160
        %v1105 = vsel %vm1104, 0.0, %v1093
        %v1106 = vsel %vm1104, 0.0, %v1095
        %v1107 = vsel %vm1104, 0.0, %v1097
        %v1108 = vsel %vm1104, 0.0, %v1099
        %s1109 = sld [smem:[#allocation12 + $0x2]]
        %v1110 = vstv %s1109
        %v1111 = vmul.f32 %v1110, %v1105
        %v1112 = vmul.f32 %v1110, %v1106
        %v1113 = vmul.f32 %v1110, %v1107
        %v1114 = vmul.f32 %v1110, %v1108
        %v1115 = vadd.f32 %v1058, %v1111
        %v1116 = vadd.f32 %v1059, %v1112
        %v1117 = vadd.f32 %v1060, %v1113
        %v1118 = vadd.f32 %v1061, %v1114
        %s1119 = sld [smem:[#allocation12 + $0x1a]]
        %v1120 = vstv %s1119
        %v1121 = vmul.f32 %v1120, %v1105
        %v1122 = vmul.f32 %v1120, %v1106
        %v1123 = vmul.f32 %v1120, %v1107
        %v1124 = vmul.f32 %v1120, %v1108
        %v1125 = vadd.f32 %v1068, %v1121
        %v1126 = vadd.f32 %v1069, %v1122
        %v1127 = vadd.f32 %v1070, %v1123
        %v1128 = vadd.f32 %v1071, %v1124
        %s1129 = sld [smem:[#allocation12 + $0x32]]
        %v1130 = vstv %s1129
        %v1131 = vmul.f32 %v1130, %v1105
        %v1132 = vmul.f32 %v1130, %v1106
        %v1133 = vmul.f32 %v1130, %v1107
        %v1134 = vmul.f32 %v1130, %v1108
        %v1135 = vadd.f32 %v1078, %v1131
        %v1136 = vadd.f32 %v1079, %v1132
        %v1137 = vadd.f32 %v1080, %v1133
        %v1138 = vadd.f32 %v1081, %v1134
        %s1139 = sld [smem:[#allocation12 + $0x4a]]
        %v1140 = vstv %s1139
        %v1141 = vmul.f32 %v1140, %v1105
        %v1142 = vmul.f32 %v1140, %v1106
        %v1143 = vmul.f32 %v1140, %v1107
        %v1144 = vmul.f32 %v1140, %v1108
        %v1145 = vadd.f32 %v1088, %v1141
        %v1146 = vadd.f32 %v1089, %v1142
        %v1147 = vadd.f32 %v1090, %v1143
        %v1148 = vadd.f32 %v1091, %v1144
        %1149 = vrot.lane.b32.xlu0 %v655, 18
        %v1150 = vpop.permute.xlu0 %1149
        %1151 = vrot.lane.b32.xlu0 %v656, 18
        %v1152 = vpop.permute.xlu0 %1151
        %1153 = vrot.lane.b32.xlu0 %v657, 18
        %v1154 = vpop.permute.xlu0 %1153
        %1155 = vrot.lane.b32.xlu0 %v658, 18
        %v1156 = vpop.permute.xlu0 %1155
        %vm1161 = vcmask 146432
        %v1162 = vsel %vm1161, 0.0, %v1150
        %v1163 = vsel %vm1161, 0.0, %v1152
        %v1164 = vsel %vm1161, 0.0, %v1154
        %v1165 = vsel %vm1161, 0.0, %v1156
        %s1166 = sld [smem:[#allocation12 + $0x3]]
        %v1167 = vstv %s1166
        %v1168 = vmul.f32 %v1167, %v1162
        %v1169 = vmul.f32 %v1167, %v1163
        %v1170 = vmul.f32 %v1167, %v1164
        %v1171 = vmul.f32 %v1167, %v1165
        %v1172 = vadd.f32 %v1115, %v1168
        %v1173 = vadd.f32 %v1116, %v1169
        %v1174 = vadd.f32 %v1117, %v1170
        %v1175 = vadd.f32 %v1118, %v1171
        %s1176 = sld [smem:[#allocation12 + $0x1b]]
        %v1177 = vstv %s1176
        %v1178 = vmul.f32 %v1177, %v1162
        %v1179 = vmul.f32 %v1177, %v1163
        %v1180 = vmul.f32 %v1177, %v1164
        %v1181 = vmul.f32 %v1177, %v1165
        %v1182 = vadd.f32 %v1125, %v1178
        %v1183 = vadd.f32 %v1126, %v1179
        %v1184 = vadd.f32 %v1127, %v1180
        %v1185 = vadd.f32 %v1128, %v1181
        %s1186 = sld [smem:[#allocation12 + $0x33]]
        %v1187 = vstv %s1186
        %v1188 = vmul.f32 %v1187, %v1162
        %v1189 = vmul.f32 %v1187, %v1163
        %v1190 = vmul.f32 %v1187, %v1164
        %v1191 = vmul.f32 %v1187, %v1165
        %v1192 = vadd.f32 %v1135, %v1188
        %v1193 = vadd.f32 %v1136, %v1189
        %v1194 = vadd.f32 %v1137, %v1190
        %v1195 = vadd.f32 %v1138, %v1191
        %s1196 = sld [smem:[#allocation12 + $0x4b]]
        %v1197 = vstv %s1196
        %v1198 = vmul.f32 %v1197, %v1162
        %v1199 = vmul.f32 %v1197, %v1163
        %v1200 = vmul.f32 %v1197, %v1164
        %v1201 = vmul.f32 %v1197, %v1165
        %v1202 = vadd.f32 %v1145, %v1198
        %v1203 = vadd.f32 %v1146, %v1199
        %v1204 = vadd.f32 %v1147, %v1200
        %v1205 = vadd.f32 %v1148, %v1201
        %1206 = vrot.lane.b32.xlu0 %v655, 9
        %v1207 = vpop.permute.xlu0 %1206
        %1208 = vrot.lane.b32.xlu0 %v656, 9
        %v1209 = vpop.permute.xlu0 %1208
        %1210 = vrot.lane.b32.xlu0 %v657, 9
        %v1211 = vpop.permute.xlu0 %1210
        %1212 = vrot.lane.b32.xlu0 %v658, 9
        %v1213 = vpop.permute.xlu0 %1212
        %vm1218 = vcmask 72704
        %v1219 = vsel %vm1218, 0.0, %v1207
        %v1220 = vsel %vm1218, 0.0, %v1209
        %v1221 = vsel %vm1218, 0.0, %v1211
        %v1222 = vsel %vm1218, 0.0, %v1213
        %s1223 = sld [smem:[#allocation12 + $0x4]]
        %v1224 = vstv %s1223
        %v1225 = vmul.f32 %v1224, %v1219
        %v1226 = vmul.f32 %v1224, %v1220
        %v1227 = vmul.f32 %v1224, %v1221
        %v1228 = vmul.f32 %v1224, %v1222
        %v1229 = vadd.f32 %v1172, %v1225
        %v1230 = vadd.f32 %v1173, %v1226
        %v1231 = vadd.f32 %v1174, %v1227
        %v1232 = vadd.f32 %v1175, %v1228
        %s1233 = sld [smem:[#allocation12 + $0x1c]]
        %v1234 = vstv %s1233
        %v1235 = vmul.f32 %v1234, %v1219
        %v1236 = vmul.f32 %v1234, %v1220
        %v1237 = vmul.f32 %v1234, %v1221
        %v1238 = vmul.f32 %v1234, %v1222
        %v1239 = vadd.f32 %v1182, %v1235
        %v1240 = vadd.f32 %v1183, %v1236
        %v1241 = vadd.f32 %v1184, %v1237
        %v1242 = vadd.f32 %v1185, %v1238
        %s1243 = sld [smem:[#allocation12 + $0x34]]
        %v1244 = vstv %s1243
        %v1245 = vmul.f32 %v1244, %v1219
        %v1246 = vmul.f32 %v1244, %v1220
        %v1247 = vmul.f32 %v1244, %v1221
        %v1248 = vmul.f32 %v1244, %v1222
        %v1249 = vadd.f32 %v1192, %v1245
        %v1250 = vadd.f32 %v1193, %v1246
        %v1251 = vadd.f32 %v1194, %v1247
        %v1252 = vadd.f32 %v1195, %v1248
        %s1253 = sld [smem:[#allocation12 + $0x4c]]
        %v1254 = vstv %s1253
        %v1255 = vmul.f32 %v1254, %v1219
        %v1256 = vmul.f32 %v1254, %v1220
        %v1257 = vmul.f32 %v1254, %v1221
        %v1258 = vmul.f32 %v1254, %v1222
        %v1259 = vadd.f32 %v1202, %v1255
        %v1260 = vadd.f32 %v1203, %v1256
        %v1261 = vadd.f32 %v1204, %v1257
        %v1262 = vadd.f32 %v1205, %v1258
        %s1263 = sld [smem:[#allocation12 + $0x5]]
        %v1264 = vstv %s1263
        %v1265 = vmul.f32 %v1264, %v655
        %v1266 = vmul.f32 %v1264, %v656
        %v1267 = vmul.f32 %v1264, %v657
        %v1268 = vmul.f32 %v1264, %v658
        %v1269 = vadd.f32 %v1229, %v1265
        %v1270 = vadd.f32 %v1230, %v1266
        %v1271 = vadd.f32 %v1231, %v1267
        %v1272 = vadd.f32 %v1232, %v1268
        %s1273 = sld [smem:[#allocation12 + $0x1d]]
        %v1274 = vstv %s1273
        %v1275 = vmul.f32 %v1274, %v655
        %v1276 = vmul.f32 %v1274, %v656
        %v1277 = vmul.f32 %v1274, %v657
        %v1278 = vmul.f32 %v1274, %v658
        %v1279 = vadd.f32 %v1239, %v1275
        %v1280 = vadd.f32 %v1240, %v1276
        %v1281 = vadd.f32 %v1241, %v1277
        %v1282 = vadd.f32 %v1242, %v1278
        %s1283 = sld [smem:[#allocation12 + $0x35]]
        %v1284 = vstv %s1283
        %v1285 = vmul.f32 %v1284, %v655
        %v1286 = vmul.f32 %v1284, %v656
        %v1287 = vmul.f32 %v1284, %v657
        %v1288 = vmul.f32 %v1284, %v658
        %v1289 = vadd.f32 %v1249, %v1285
        %v1290 = vadd.f32 %v1250, %v1286
        %v1291 = vadd.f32 %v1251, %v1287
        %v1292 = vadd.f32 %v1252, %v1288
        %s1293 = sld [smem:[#allocation12 + $0x4d]]
        %v1294 = vstv %s1293
        %v1295 = vmul.f32 %v1294, %v655
        %v1296 = vmul.f32 %v1294, %v656
        %v1297 = vmul.f32 %v1294, %v657
        %v1298 = vmul.f32 %v1294, %v658
        %v1299 = vadd.f32 %v1259, %v1295
        %v1300 = vadd.f32 %v1260, %v1296
        %v1301 = vadd.f32 %v1261, %v1297
        %v1302 = vadd.f32 %v1262, %v1298
        %1307 = vrot.lane.b32.xlu0 %v760, 45
        %v1308 = vpop.permute.xlu0 %1307
        %1309 = vrot.lane.b32.xlu0 %v761, 45
        %v1310 = vpop.permute.xlu0 %1309
        %1311 = vrot.lane.b32.xlu0 %v762, 45
        %v1312 = vpop.permute.xlu0 %1311
        %1313 = vrot.lane.b32.xlu0 %v763, 45
        %v1314 = vpop.permute.xlu0 %1313
        %v1319 = vsel %vm990, 0.0, %v1308
        %v1320 = vsel %vm990, 0.0, %v1310
        %v1321 = vsel %vm990, 0.0, %v1312
        %v1322 = vsel %vm990, 0.0, %v1314
        %s1323 = sld [smem:[#allocation12 + $0x6]]
        %v1324 = vstv %s1323
        %v1325 = vmul.f32 %v1324, %v1319
        %v1326 = vmul.f32 %v1324, %v1320
        %v1327 = vmul.f32 %v1324, %v1321
        %v1328 = vmul.f32 %v1324, %v1322
        %v1329 = vadd.f32 %v1269, %v1325
        %v1330 = vadd.f32 %v1270, %v1326
        %v1331 = vadd.f32 %v1271, %v1327
        %v1332 = vadd.f32 %v1272, %v1328
        %s1333 = sld [smem:[#allocation12 + $0x1e]]
        %v1334 = vstv %s1333
        %v1335 = vmul.f32 %v1334, %v1319
        %v1336 = vmul.f32 %v1334, %v1320
        %v1337 = vmul.f32 %v1334, %v1321
        %v1338 = vmul.f32 %v1334, %v1322
        %v1339 = vadd.f32 %v1279, %v1335
        %v1340 = vadd.f32 %v1280, %v1336
        %v1341 = vadd.f32 %v1281, %v1337
        %v1342 = vadd.f32 %v1282, %v1338
        %s1343 = sld [smem:[#allocation12 + $0x36]]
        %v1344 = vstv %s1343
        %v1345 = vmul.f32 %v1344, %v1319
        %v1346 = vmul.f32 %v1344, %v1320
        %v1347 = vmul.f32 %v1344, %v1321
        %v1348 = vmul.f32 %v1344, %v1322
        %v1349 = vadd.f32 %v1289, %v1345
        %v1350 = vadd.f32 %v1290, %v1346
        %v1351 = vadd.f32 %v1291, %v1347
        %v1352 = vadd.f32 %v1292, %v1348
        %s1353 = sld [smem:[#allocation12 + $0x4e]]
        %v1354 = vstv %s1353
        %v1355 = vmul.f32 %v1354, %v1319
        %v1356 = vmul.f32 %v1354, %v1320
        %v1357 = vmul.f32 %v1354, %v1321
        %v1358 = vmul.f32 %v1354, %v1322
        %v1359 = vadd.f32 %v1299, %v1355
        %v1360 = vadd.f32 %v1300, %v1356
        %v1361 = vadd.f32 %v1301, %v1357
        %v1362 = vadd.f32 %v1302, %v1358
        %1363 = vrot.lane.b32.xlu0 %v760, 36
        %v1364 = vpop.permute.xlu0 %1363
        %1365 = vrot.lane.b32.xlu0 %v761, 36
        %v1366 = vpop.permute.xlu0 %1365
        %1367 = vrot.lane.b32.xlu0 %v762, 36
        %v1368 = vpop.permute.xlu0 %1367
        %1369 = vrot.lane.b32.xlu0 %v763, 36
        %v1370 = vpop.permute.xlu0 %1369
        %v1375 = vsel %vm1047, 0.0, %v1364
        %v1376 = vsel %vm1047, 0.0, %v1366
        %v1377 = vsel %vm1047, 0.0, %v1368
        %v1378 = vsel %vm1047, 0.0, %v1370
        %s1379 = sld [smem:[#allocation12 + $0x7]]
        %v1380 = vstv %s1379
        %v1381 = vmul.f32 %v1380, %v1375
        %v1382 = vmul.f32 %v1380, %v1376
        %v1383 = vmul.f32 %v1380, %v1377
        %v1384 = vmul.f32 %v1380, %v1378
        %v1385 = vadd.f32 %v1329, %v1381
        %v1386 = vadd.f32 %v1330, %v1382
        %v1387 = vadd.f32 %v1331, %v1383
        %v1388 = vadd.f32 %v1332, %v1384
        %s1389 = sld [smem:[#allocation12 + $0x1f]]
        %v1390 = vstv %s1389
        %v1391 = vmul.f32 %v1390, %v1375
        %v1392 = vmul.f32 %v1390, %v1376
        %v1393 = vmul.f32 %v1390, %v1377
        %v1394 = vmul.f32 %v1390, %v1378
        %v1395 = vadd.f32 %v1339, %v1391
        %v1396 = vadd.f32 %v1340, %v1392
        %v1397 = vadd.f32 %v1341, %v1393
        %v1398 = vadd.f32 %v1342, %v1394
        %s1399 = sld [smem:[#allocation12 + $0x37]]
        %v1400 = vstv %s1399
        %v1401 = vmul.f32 %v1400, %v1375
        %v1402 = vmul.f32 %v1400, %v1376
        %v1403 = vmul.f32 %v1400, %v1377
        %v1404 = vmul.f32 %v1400, %v1378
        %v1405 = vadd.f32 %v1349, %v1401
        %v1406 = vadd.f32 %v1350, %v1402
        %v1407 = vadd.f32 %v1351, %v1403
        %v1408 = vadd.f32 %v1352, %v1404
        %s1409 = sld [smem:[#allocation12 + $0x4f]]
        %v1410 = vstv %s1409
        %v1411 = vmul.f32 %v1410, %v1375
        %v1412 = vmul.f32 %v1410, %v1376
        %v1413 = vmul.f32 %v1410, %v1377
        %v1414 = vmul.f32 %v1410, %v1378
        %v1415 = vadd.f32 %v1359, %v1411
        %v1416 = vadd.f32 %v1360, %v1412
        %v1417 = vadd.f32 %v1361, %v1413
        %v1418 = vadd.f32 %v1362, %v1414
        %1419 = vrot.lane.b32.xlu0 %v760, 27
        %v1420 = vpop.permute.xlu0 %1419
        %1421 = vrot.lane.b32.xlu0 %v761, 27
        %v1422 = vpop.permute.xlu0 %1421
        %1423 = vrot.lane.b32.xlu0 %v762, 27
        %v1424 = vpop.permute.xlu0 %1423
        %1425 = vrot.lane.b32.xlu0 %v763, 27
        %v1426 = vpop.permute.xlu0 %1425
        %v1431 = vsel %vm1104, 0.0, %v1420
        %v1432 = vsel %vm1104, 0.0, %v1422
        %v1433 = vsel %vm1104, 0.0, %v1424
        %v1434 = vsel %vm1104, 0.0, %v1426
        %s1435 = sld [smem:[#allocation12 + $0x8]]
        %v1436 = vstv %s1435
        %v1437 = vmul.f32 %v1436, %v1431
        %v1438 = vmul.f32 %v1436, %v1432
        %v1439 = vmul.f32 %v1436, %v1433
        %v1440 = vmul.f32 %v1436, %v1434
        %v1441 = vadd.f32 %v1385, %v1437
        %v1442 = vadd.f32 %v1386, %v1438
        %v1443 = vadd.f32 %v1387, %v1439
        %v1444 = vadd.f32 %v1388, %v1440
        %s1445 = sld [smem:[#allocation12 + $0x20]]
        %v1446 = vstv %s1445
        %v1447 = vmul.f32 %v1446, %v1431
        %v1448 = vmul.f32 %v1446, %v1432
        %v1449 = vmul.f32 %v1446, %v1433
        %v1450 = vmul.f32 %v1446, %v1434
        %v1451 = vadd.f32 %v1395, %v1447
        %v1452 = vadd.f32 %v1396, %v1448
        %v1453 = vadd.f32 %v1397, %v1449
        %v1454 = vadd.f32 %v1398, %v1450
        %s1455 = sld [smem:[#allocation12 + $0x38]]
        %v1456 = vstv %s1455
        %v1457 = vmul.f32 %v1456, %v1431
        %v1458 = vmul.f32 %v1456, %v1432
        %v1459 = vmul.f32 %v1456, %v1433
        %v1460 = vmul.f32 %v1456, %v1434
        %v1461 = vadd.f32 %v1405, %v1457
        %v1462 = vadd.f32 %v1406, %v1458
        %v1463 = vadd.f32 %v1407, %v1459
        %v1464 = vadd.f32 %v1408, %v1460
        %s1465 = sld [smem:[#allocation12 + $0x50]]
        %v1466 = vstv %s1465
        %v1467 = vmul.f32 %v1466, %v1431
        %v1468 = vmul.f32 %v1466, %v1432
        %v1469 = vmul.f32 %v1466, %v1433
        %v1470 = vmul.f32 %v1466, %v1434
        %v1471 = vadd.f32 %v1415, %v1467
        %v1472 = vadd.f32 %v1416, %v1468
        %v1473 = vadd.f32 %v1417, %v1469
        %v1474 = vadd.f32 %v1418, %v1470
        %1475 = vrot.lane.b32.xlu0 %v760, 18
        %v1476 = vpop.permute.xlu0 %1475
        %1477 = vrot.lane.b32.xlu0 %v761, 18
        %v1478 = vpop.permute.xlu0 %1477
        %1479 = vrot.lane.b32.xlu0 %v762, 18
        %v1480 = vpop.permute.xlu0 %1479
        %1481 = vrot.lane.b32.xlu0 %v763, 18
        %v1482 = vpop.permute.xlu0 %1481
        %v1487 = vsel %vm1161, 0.0, %v1476
        %v1488 = vsel %vm1161, 0.0, %v1478
        %v1489 = vsel %vm1161, 0.0, %v1480
        %v1490 = vsel %vm1161, 0.0, %v1482
        %s1491 = sld [smem:[#allocation12 + $0x9]]
        %v1492 = vstv %s1491
        %v1493 = vmul.f32 %v1492, %v1487
        %v1494 = vmul.f32 %v1492, %v1488
        %v1495 = vmul.f32 %v1492, %v1489
        %v1496 = vmul.f32 %v1492, %v1490
        %v1497 = vadd.f32 %v1441, %v1493
        %v1498 = vadd.f32 %v1442, %v1494
        %v1499 = vadd.f32 %v1443, %v1495
        %v1500 = vadd.f32 %v1444, %v1496
        %s1501 = sld [smem:[#allocation12 + $0x21]]
        %v1502 = vstv %s1501
        %v1503 = vmul.f32 %v1502, %v1487
        %v1504 = vmul.f32 %v1502, %v1488
        %v1505 = vmul.f32 %v1502, %v1489
        %v1506 = vmul.f32 %v1502, %v1490
        %v1507 = vadd.f32 %v1451, %v1503
        %v1508 = vadd.f32 %v1452, %v1504
        %v1509 = vadd.f32 %v1453, %v1505
        %v1510 = vadd.f32 %v1454, %v1506
        %s1511 = sld [smem:[#allocation12 + $0x39]]
        %v1512 = vstv %s1511
        %v1513 = vmul.f32 %v1512, %v1487
        %v1514 = vmul.f32 %v1512, %v1488
        %v1515 = vmul.f32 %v1512, %v1489
        %v1516 = vmul.f32 %v1512, %v1490
        %v1517 = vadd.f32 %v1461, %v1513
        %v1518 = vadd.f32 %v1462, %v1514
        %v1519 = vadd.f32 %v1463, %v1515
        %v1520 = vadd.f32 %v1464, %v1516
        %s1521 = sld [smem:[#allocation12 + $0x51]]
        %v1522 = vstv %s1521
        %v1523 = vmul.f32 %v1522, %v1487
        %v1524 = vmul.f32 %v1522, %v1488
        %v1525 = vmul.f32 %v1522, %v1489
        %v1526 = vmul.f32 %v1522, %v1490
        %v1527 = vadd.f32 %v1471, %v1523
        %v1528 = vadd.f32 %v1472, %v1524
        %v1529 = vadd.f32 %v1473, %v1525
        %v1530 = vadd.f32 %v1474, %v1526
        %1531 = vrot.lane.b32.xlu0 %v760, 9
        %v1532 = vpop.permute.xlu0 %1531
        %1533 = vrot.lane.b32.xlu0 %v761, 9
        %v1534 = vpop.permute.xlu0 %1533
        %1535 = vrot.lane.b32.xlu0 %v762, 9
        %v1536 = vpop.permute.xlu0 %1535
        %1537 = vrot.lane.b32.xlu0 %v763, 9
        %v1538 = vpop.permute.xlu0 %1537
        %v1543 = vsel %vm1218, 0.0, %v1532
        %v1544 = vsel %vm1218, 0.0, %v1534
        %v1545 = vsel %vm1218, 0.0, %v1536
        %v1546 = vsel %vm1218, 0.0, %v1538
        %s1547 = sld [smem:[#allocation12 + $0xa]]
        %v1548 = vstv %s1547
        %v1549 = vmul.f32 %v1548, %v1543
        %v1550 = vmul.f32 %v1548, %v1544
        %v1551 = vmul.f32 %v1548, %v1545
        %v1552 = vmul.f32 %v1548, %v1546
        %v1553 = vadd.f32 %v1497, %v1549
        %v1554 = vadd.f32 %v1498, %v1550
        %v1555 = vadd.f32 %v1499, %v1551
        %v1556 = vadd.f32 %v1500, %v1552
        %s1557 = sld [smem:[#allocation12 + $0x22]]
        %v1558 = vstv %s1557
        %v1559 = vmul.f32 %v1558, %v1543
        %v1560 = vmul.f32 %v1558, %v1544
        %v1561 = vmul.f32 %v1558, %v1545
        %v1562 = vmul.f32 %v1558, %v1546
        %v1563 = vadd.f32 %v1507, %v1559
        %v1564 = vadd.f32 %v1508, %v1560
        %v1565 = vadd.f32 %v1509, %v1561
        %v1566 = vadd.f32 %v1510, %v1562
        %s1567 = sld [smem:[#allocation12 + $0x3a]]
        %v1568 = vstv %s1567
        %v1569 = vmul.f32 %v1568, %v1543
        %v1570 = vmul.f32 %v1568, %v1544
        %v1571 = vmul.f32 %v1568, %v1545
        %v1572 = vmul.f32 %v1568, %v1546
        %v1573 = vadd.f32 %v1517, %v1569
        %v1574 = vadd.f32 %v1518, %v1570
        %v1575 = vadd.f32 %v1519, %v1571
        %v1576 = vadd.f32 %v1520, %v1572
        %s1577 = sld [smem:[#allocation12 + $0x52]]
        %v1578 = vstv %s1577
        %v1579 = vmul.f32 %v1578, %v1543
        %v1580 = vmul.f32 %v1578, %v1544
        %v1581 = vmul.f32 %v1578, %v1545
        %v1582 = vmul.f32 %v1578, %v1546
        %v1583 = vadd.f32 %v1527, %v1579
        %v1584 = vadd.f32 %v1528, %v1580
        %v1585 = vadd.f32 %v1529, %v1581
        %v1586 = vadd.f32 %v1530, %v1582
        %s1587 = sld [smem:[#allocation12 + $0xb]]
        %v1588 = vstv %s1587
        %v1589 = vmul.f32 %v1588, %v760
        %v1590 = vmul.f32 %v1588, %v761
        %v1591 = vmul.f32 %v1588, %v762
        %v1592 = vmul.f32 %v1588, %v763
        %v1593 = vadd.f32 %v1553, %v1589
        %v1594 = vadd.f32 %v1554, %v1590
        %v1595 = vadd.f32 %v1555, %v1591
        %v1596 = vadd.f32 %v1556, %v1592
        %s1597 = sld [smem:[#allocation12 + $0x23]]
        %v1598 = vstv %s1597
        %v1599 = vmul.f32 %v1598, %v760
        %v1600 = vmul.f32 %v1598, %v761
        %v1601 = vmul.f32 %v1598, %v762
        %v1602 = vmul.f32 %v1598, %v763
        %v1603 = vadd.f32 %v1563, %v1599
        %v1604 = vadd.f32 %v1564, %v1600
        %v1605 = vadd.f32 %v1565, %v1601
        %v1606 = vadd.f32 %v1566, %v1602
        %s1607 = sld [smem:[#allocation12 + $0x3b]]
        %v1608 = vstv %s1607
        %v1609 = vmul.f32 %v1608, %v760
        %v1610 = vmul.f32 %v1608, %v761
        %v1611 = vmul.f32 %v1608, %v762
        %v1612 = vmul.f32 %v1608, %v763
        %v1613 = vadd.f32 %v1573, %v1609
        %v1614 = vadd.f32 %v1574, %v1610
        %v1615 = vadd.f32 %v1575, %v1611
        %v1616 = vadd.f32 %v1576, %v1612
        %s1617 = sld [smem:[#allocation12 + $0x53]]
        %v1618 = vstv %s1617
        %v1619 = vmul.f32 %v1618, %v760
        %v1620 = vmul.f32 %v1618, %v761
        %v1621 = vmul.f32 %v1618, %v762
        %v1622 = vmul.f32 %v1618, %v763
        %v1623 = vadd.f32 %v1583, %v1619
        %v1624 = vadd.f32 %v1584, %v1620
        %v1625 = vadd.f32 %v1585, %v1621
        %v1626 = vadd.f32 %v1586, %v1622
        %1631 = vrot.lane.b32.xlu0 %v865, 45
        %v1632 = vpop.permute.xlu0 %1631
        %1633 = vrot.lane.b32.xlu0 %v866, 45
        %v1634 = vpop.permute.xlu0 %1633
        %1635 = vrot.lane.b32.xlu0 %v867, 45
        %v1636 = vpop.permute.xlu0 %1635
        %1637 = vrot.lane.b32.xlu0 %v868, 45
        %v1638 = vpop.permute.xlu0 %1637
        %v1643 = vsel %vm990, 0.0, %v1632
        %v1644 = vsel %vm990, 0.0, %v1634
        %v1645 = vsel %vm990, 0.0, %v1636
        %v1646 = vsel %vm990, 0.0, %v1638
        %s1647 = sld [smem:[#allocation12 + $0xc]]
        %v1648 = vstv %s1647
        %v1649 = vmul.f32 %v1648, %v1643
        %v1650 = vmul.f32 %v1648, %v1644
        %v1651 = vmul.f32 %v1648, %v1645
        %v1652 = vmul.f32 %v1648, %v1646
        %v1653 = vadd.f32 %v1593, %v1649
        %v1654 = vadd.f32 %v1594, %v1650
        %v1655 = vadd.f32 %v1595, %v1651
        %v1656 = vadd.f32 %v1596, %v1652
        %s1657 = sld [smem:[#allocation12 + $0x24]]
        %v1658 = vstv %s1657
        %v1659 = vmul.f32 %v1658, %v1643
        %v1660 = vmul.f32 %v1658, %v1644
        %v1661 = vmul.f32 %v1658, %v1645
        %v1662 = vmul.f32 %v1658, %v1646
        %v1663 = vadd.f32 %v1603, %v1659
        %v1664 = vadd.f32 %v1604, %v1660
        %v1665 = vadd.f32 %v1605, %v1661
        %v1666 = vadd.f32 %v1606, %v1662
        %s1667 = sld [smem:[#allocation12 + $0x3c]]
        %v1668 = vstv %s1667
        %v1669 = vmul.f32 %v1668, %v1643
        %v1670 = vmul.f32 %v1668, %v1644
        %v1671 = vmul.f32 %v1668, %v1645
        %v1672 = vmul.f32 %v1668, %v1646
        %v1673 = vadd.f32 %v1613, %v1669
        %v1674 = vadd.f32 %v1614, %v1670
        %v1675 = vadd.f32 %v1615, %v1671
        %v1676 = vadd.f32 %v1616, %v1672
        %s1677 = sld [smem:[#allocation12 + $0x54]]
        %v1678 = vstv %s1677
        %v1679 = vmul.f32 %v1678, %v1643
        %v1680 = vmul.f32 %v1678, %v1644
        %v1681 = vmul.f32 %v1678, %v1645
        %v1682 = vmul.f32 %v1678, %v1646
        %v1683 = vadd.f32 %v1623, %v1679
        %v1684 = vadd.f32 %v1624, %v1680
        %v1685 = vadd.f32 %v1625, %v1681
        %v1686 = vadd.f32 %v1626, %v1682
        %1687 = vrot.lane.b32.xlu0 %v865, 36
        %v1688 = vpop.permute.xlu0 %1687
        %1689 = vrot.lane.b32.xlu0 %v866, 36
        %v1690 = vpop.permute.xlu0 %1689
        %1691 = vrot.lane.b32.xlu0 %v867, 36
        %v1692 = vpop.permute.xlu0 %1691
        %1693 = vrot.lane.b32.xlu0 %v868, 36
        %v1694 = vpop.permute.xlu0 %1693
        %v1699 = vsel %vm1047, 0.0, %v1688
        %v1700 = vsel %vm1047, 0.0, %v1690
        %v1701 = vsel %vm1047, 0.0, %v1692
        %v1702 = vsel %vm1047, 0.0, %v1694
        %s1703 = sld [smem:[#allocation12 + $0xd]]
        %v1704 = vstv %s1703
        %v1705 = vmul.f32 %v1704, %v1699
        %v1706 = vmul.f32 %v1704, %v1700
        %v1707 = vmul.f32 %v1704, %v1701
        %v1708 = vmul.f32 %v1704, %v1702
        %v1709 = vadd.f32 %v1653, %v1705
        %v1710 = vadd.f32 %v1654, %v1706
        %v1711 = vadd.f32 %v1655, %v1707
        %v1712 = vadd.f32 %v1656, %v1708
        %s1713 = sld [smem:[#allocation12 + $0x25]]
        %v1714 = vstv %s1713
        %v1715 = vmul.f32 %v1714, %v1699
        %v1716 = vmul.f32 %v1714, %v1700
        %v1717 = vmul.f32 %v1714, %v1701
        %v1718 = vmul.f32 %v1714, %v1702
        %v1719 = vadd.f32 %v1663, %v1715
        %v1720 = vadd.f32 %v1664, %v1716
        %v1721 = vadd.f32 %v1665, %v1717
        %v1722 = vadd.f32 %v1666, %v1718
        %s1723 = sld [smem:[#allocation12 + $0x3d]]
        %v1724 = vstv %s1723
        %v1725 = vmul.f32 %v1724, %v1699
        %v1726 = vmul.f32 %v1724, %v1700
        %v1727 = vmul.f32 %v1724, %v1701
        %v1728 = vmul.f32 %v1724, %v1702
        %v1729 = vadd.f32 %v1673, %v1725
        %v1730 = vadd.f32 %v1674, %v1726
        %v1731 = vadd.f32 %v1675, %v1727
        %v1732 = vadd.f32 %v1676, %v1728
        %s1733 = sld [smem:[#allocation12 + $0x55]]
        %v1734 = vstv %s1733
        %v1735 = vmul.f32 %v1734, %v1699
        %v1736 = vmul.f32 %v1734, %v1700
        %v1737 = vmul.f32 %v1734, %v1701
        %v1738 = vmul.f32 %v1734, %v1702
        %v1739 = vadd.f32 %v1683, %v1735
        %v1740 = vadd.f32 %v1684, %v1736
        %v1741 = vadd.f32 %v1685, %v1737
        %v1742 = vadd.f32 %v1686, %v1738
        %1743 = vrot.lane.b32.xlu0 %v865, 27
        %v1744 = vpop.permute.xlu0 %1743
        %1745 = vrot.lane.b32.xlu0 %v866, 27
        %v1746 = vpop.permute.xlu0 %1745
        %1747 = vrot.lane.b32.xlu0 %v867, 27
        %v1748 = vpop.permute.xlu0 %1747
        %1749 = vrot.lane.b32.xlu0 %v868, 27
        %v1750 = vpop.permute.xlu0 %1749
        %v1755 = vsel %vm1104, 0.0, %v1744
        %v1756 = vsel %vm1104, 0.0, %v1746
        %v1757 = vsel %vm1104, 0.0, %v1748
        %v1758 = vsel %vm1104, 0.0, %v1750
        %s1759 = sld [smem:[#allocation12 + $0xe]]
        %v1760 = vstv %s1759
        %v1761 = vmul.f32 %v1760, %v1755
        %v1762 = vmul.f32 %v1760, %v1756
        %v1763 = vmul.f32 %v1760, %v1757
        %v1764 = vmul.f32 %v1760, %v1758
        %v1765 = vadd.f32 %v1709, %v1761
        %v1766 = vadd.f32 %v1710, %v1762
        %v1767 = vadd.f32 %v1711, %v1763
        %v1768 = vadd.f32 %v1712, %v1764
        %s1769 = sld [smem:[#allocation12 + $0x26]]
        %v1770 = vstv %s1769
        %v1771 = vmul.f32 %v1770, %v1755
        %v1772 = vmul.f32 %v1770, %v1756
        %v1773 = vmul.f32 %v1770, %v1757
        %v1774 = vmul.f32 %v1770, %v1758
        %v1775 = vadd.f32 %v1719, %v1771
        %v1776 = vadd.f32 %v1720, %v1772
        %v1777 = vadd.f32 %v1721, %v1773
        %v1778 = vadd.f32 %v1722, %v1774
        %s1779 = sld [smem:[#allocation12 + $0x3e]]
        %v1780 = vstv %s1779
        %v1781 = vmul.f32 %v1780, %v1755
        %v1782 = vmul.f32 %v1780, %v1756
        %v1783 = vmul.f32 %v1780, %v1757
        %v1784 = vmul.f32 %v1780, %v1758
        %v1785 = vadd.f32 %v1729, %v1781
        %v1786 = vadd.f32 %v1730, %v1782
        %v1787 = vadd.f32 %v1731, %v1783
        %v1788 = vadd.f32 %v1732, %v1784
        %s1789 = sld [smem:[#allocation12 + $0x56]]
        %v1790 = vstv %s1789
        %v1791 = vmul.f32 %v1790, %v1755
        %v1792 = vmul.f32 %v1790, %v1756
        %v1793 = vmul.f32 %v1790, %v1757
        %v1794 = vmul.f32 %v1790, %v1758
        %v1795 = vadd.f32 %v1739, %v1791
        %v1796 = vadd.f32 %v1740, %v1792
        %v1797 = vadd.f32 %v1741, %v1793
        %v1798 = vadd.f32 %v1742, %v1794
        %1799 = vrot.lane.b32.xlu0 %v865, 18
        %v1800 = vpop.permute.xlu0 %1799
        %1801 = vrot.lane.b32.xlu0 %v866, 18
        %v1802 = vpop.permute.xlu0 %1801
        %1803 = vrot.lane.b32.xlu0 %v867, 18
        %v1804 = vpop.permute.xlu0 %1803
        %1805 = vrot.lane.b32.xlu0 %v868, 18
        %v1806 = vpop.permute.xlu0 %1805
        %v1811 = vsel %vm1161, 0.0, %v1800
        %v1812 = vsel %vm1161, 0.0, %v1802
        %v1813 = vsel %vm1161, 0.0, %v1804
        %v1814 = vsel %vm1161, 0.0, %v1806
        %s1815 = sld [smem:[#allocation12 + $0xf]]
        %v1816 = vstv %s1815
        %v1817 = vmul.f32 %v1816, %v1811
        %v1818 = vmul.f32 %v1816, %v1812
        %v1819 = vmul.f32 %v1816, %v1813
        %v1820 = vmul.f32 %v1816, %v1814
        %v1821 = vadd.f32 %v1765, %v1817
        %v1822 = vadd.f32 %v1766, %v1818
        %v1823 = vadd.f32 %v1767, %v1819
        %v1824 = vadd.f32 %v1768, %v1820
        %s1825 = sld [smem:[#allocation12 + $0x27]]
        %v1826 = vstv %s1825
        %v1827 = vmul.f32 %v1826, %v1811
        %v1828 = vmul.f32 %v1826, %v1812
        %v1829 = vmul.f32 %v1826, %v1813
        %v1830 = vmul.f32 %v1826, %v1814
        %v1831 = vadd.f32 %v1775, %v1827
        %v1832 = vadd.f32 %v1776, %v1828
        %v1833 = vadd.f32 %v1777, %v1829
        %v1834 = vadd.f32 %v1778, %v1830
        %s1835 = sld [smem:[#allocation12 + $0x3f]]
        %v1836 = vstv %s1835
        %v1837 = vmul.f32 %v1836, %v1811
        %v1838 = vmul.f32 %v1836, %v1812
        %v1839 = vmul.f32 %v1836, %v1813
        %v1840 = vmul.f32 %v1836, %v1814
        %v1841 = vadd.f32 %v1785, %v1837
        %v1842 = vadd.f32 %v1786, %v1838
        %v1843 = vadd.f32 %v1787, %v1839
        %v1844 = vadd.f32 %v1788, %v1840
        %s1845 = sld [smem:[#allocation12 + $0x57]]
        %v1846 = vstv %s1845
        %v1847 = vmul.f32 %v1846, %v1811
        %v1848 = vmul.f32 %v1846, %v1812
        %v1849 = vmul.f32 %v1846, %v1813
        %v1850 = vmul.f32 %v1846, %v1814
        %v1851 = vadd.f32 %v1795, %v1847
        %v1852 = vadd.f32 %v1796, %v1848
        %v1853 = vadd.f32 %v1797, %v1849
        %v1854 = vadd.f32 %v1798, %v1850
        %1855 = vrot.lane.b32.xlu0 %v865, 9
        %v1856 = vpop.permute.xlu0 %1855
        %1857 = vrot.lane.b32.xlu0 %v866, 9
        %v1858 = vpop.permute.xlu0 %1857
        %1859 = vrot.lane.b32.xlu0 %v867, 9
        %v1860 = vpop.permute.xlu0 %1859
        %1861 = vrot.lane.b32.xlu0 %v868, 9
        %v1862 = vpop.permute.xlu0 %1861
        %v1867 = vsel %vm1218, 0.0, %v1856
        %v1868 = vsel %vm1218, 0.0, %v1858
        %v1869 = vsel %vm1218, 0.0, %v1860
        %v1870 = vsel %vm1218, 0.0, %v1862
        %s1871 = sld [smem:[#allocation12 + $0x10]]
        %v1872 = vstv %s1871
        %v1873 = vmul.f32 %v1872, %v1867
        %v1874 = vmul.f32 %v1872, %v1868
        %v1875 = vmul.f32 %v1872, %v1869
        %v1876 = vmul.f32 %v1872, %v1870
        %v1877 = vadd.f32 %v1821, %v1873
        %v1878 = vadd.f32 %v1822, %v1874
        %v1879 = vadd.f32 %v1823, %v1875
        %v1880 = vadd.f32 %v1824, %v1876
        %s1881 = sld [smem:[#allocation12 + $0x28]]
        %v1882 = vstv %s1881
        %v1883 = vmul.f32 %v1882, %v1867
        %v1884 = vmul.f32 %v1882, %v1868
        %v1885 = vmul.f32 %v1882, %v1869
        %v1886 = vmul.f32 %v1882, %v1870
        %v1887 = vadd.f32 %v1831, %v1883
        %v1888 = vadd.f32 %v1832, %v1884
        %v1889 = vadd.f32 %v1833, %v1885
        %v1890 = vadd.f32 %v1834, %v1886
        %s1891 = sld [smem:[#allocation12 + $0x40]]
        %v1892 = vstv %s1891
        %v1893 = vmul.f32 %v1892, %v1867
        %v1894 = vmul.f32 %v1892, %v1868
        %v1895 = vmul.f32 %v1892, %v1869
        %v1896 = vmul.f32 %v1892, %v1870
        %v1897 = vadd.f32 %v1841, %v1893
        %v1898 = vadd.f32 %v1842, %v1894
        %v1899 = vadd.f32 %v1843, %v1895
        %v1900 = vadd.f32 %v1844, %v1896
        %s1901 = sld [smem:[#allocation12 + $0x58]]
        %v1902 = vstv %s1901
        %v1903 = vmul.f32 %v1902, %v1867
        %v1904 = vmul.f32 %v1902, %v1868
        %v1905 = vmul.f32 %v1902, %v1869
        %v1906 = vmul.f32 %v1902, %v1870
        %v1907 = vadd.f32 %v1851, %v1903
        %v1908 = vadd.f32 %v1852, %v1904
        %v1909 = vadd.f32 %v1853, %v1905
        %v1910 = vadd.f32 %v1854, %v1906
        %s1911 = sld [smem:[#allocation12 + $0x11]]
        %v1912 = vstv %s1911
        %v1913 = vmul.f32 %v1912, %v865
        %v1914 = vmul.f32 %v1912, %v866
        %v1915 = vmul.f32 %v1912, %v867
        %v1916 = vmul.f32 %v1912, %v868
        %v1917 = vadd.f32 %v1877, %v1913
        %v1918 = vadd.f32 %v1878, %v1914
        %v1919 = vadd.f32 %v1879, %v1915
        %v1920 = vadd.f32 %v1880, %v1916
        %s1921 = sld [smem:[#allocation12 + $0x29]]
        %v1922 = vstv %s1921
        %v1923 = vmul.f32 %v1922, %v865
        %v1924 = vmul.f32 %v1922, %v866
        %v1925 = vmul.f32 %v1922, %v867
        %v1926 = vmul.f32 %v1922, %v868
        %v1927 = vadd.f32 %v1887, %v1923
        %v1928 = vadd.f32 %v1888, %v1924
        %v1929 = vadd.f32 %v1889, %v1925
        %v1930 = vadd.f32 %v1890, %v1926
        %s1931 = sld [smem:[#allocation12 + $0x41]]
        %v1932 = vstv %s1931
        %v1933 = vmul.f32 %v1932, %v865
        %v1934 = vmul.f32 %v1932, %v866
        %v1935 = vmul.f32 %v1932, %v867
        %v1936 = vmul.f32 %v1932, %v868
        %v1937 = vadd.f32 %v1897, %v1933
        %v1938 = vadd.f32 %v1898, %v1934
        %v1939 = vadd.f32 %v1899, %v1935
        %v1940 = vadd.f32 %v1900, %v1936
        %s1941 = sld [smem:[#allocation12 + $0x59]]
        %v1942 = vstv %s1941
        %v1943 = vmul.f32 %v1942, %v865
        %v1944 = vmul.f32 %v1942, %v866
        %v1945 = vmul.f32 %v1942, %v867
        %v1946 = vmul.f32 %v1942, %v868
        %v1947 = vadd.f32 %v1907, %v1943
        %v1948 = vadd.f32 %v1908, %v1944
        %v1949 = vadd.f32 %v1909, %v1945
        %v1950 = vadd.f32 %v1910, %v1946
        %1955 = vrot.lane.b32.xlu0 %v970, 45
        %v1956 = vpop.permute.xlu0 %1955
        %1957 = vrot.lane.b32.xlu0 %v971, 45
        %v1958 = vpop.permute.xlu0 %1957
        %1959 = vrot.lane.b32.xlu0 %v972, 45
        %v1960 = vpop.permute.xlu0 %1959
        %1961 = vrot.lane.b32.xlu0 %v973, 45
        %v1962 = vpop.permute.xlu0 %1961
        %v1967 = vsel %vm990, 0.0, %v1956
        %v1968 = vsel %vm990, 0.0, %v1958
        %v1969 = vsel %vm990, 0.0, %v1960
        %v1970 = vsel %vm990, 0.0, %v1962
        %s1971 = sld [smem:[#allocation12 + $0x12]]
        %v1972 = vstv %s1971
        %v1973 = vmul.f32 %v1972, %v1967
        %v1974 = vmul.f32 %v1972, %v1968
        %v1975 = vmul.f32 %v1972, %v1969
        %v1976 = vmul.f32 %v1972, %v1970
        %v1977 = vadd.f32 %v1917, %v1973
        %v1978 = vadd.f32 %v1918, %v1974
        %v1979 = vadd.f32 %v1919, %v1975
        %v1980 = vadd.f32 %v1920, %v1976
        %s1981 = sld [smem:[#allocation12 + $0x2a]]
        %v1982 = vstv %s1981
        %v1983 = vmul.f32 %v1982, %v1967
        %v1984 = vmul.f32 %v1982, %v1968
        %v1985 = vmul.f32 %v1982, %v1969
        %v1986 = vmul.f32 %v1982, %v1970
        %v1987 = vadd.f32 %v1927, %v1983
        %v1988 = vadd.f32 %v1928, %v1984
        %v1989 = vadd.f32 %v1929, %v1985
        %v1990 = vadd.f32 %v1930, %v1986
        %s1991 = sld [smem:[#allocation12 + $0x42]]
        %v1992 = vstv %s1991
        %v1993 = vmul.f32 %v1992, %v1967
        %v1994 = vmul.f32 %v1992, %v1968
        %v1995 = vmul.f32 %v1992, %v1969
        %v1996 = vmul.f32 %v1992, %v1970
        %v1997 = vadd.f32 %v1937, %v1993
        %v1998 = vadd.f32 %v1938, %v1994
        %v1999 = vadd.f32 %v1939, %v1995
        %v2000 = vadd.f32 %v1940, %v1996
        %s2001 = sld [smem:[#allocation12 + $0x5a]]
        %v2002 = vstv %s2001
        %v2003 = vmul.f32 %v2002, %v1967
        %v2004 = vmul.f32 %v2002, %v1968
        %v2005 = vmul.f32 %v2002, %v1969
        %v2006 = vmul.f32 %v2002, %v1970
        %v2007 = vadd.f32 %v1947, %v2003
        %v2008 = vadd.f32 %v1948, %v2004
        %v2009 = vadd.f32 %v1949, %v2005
        %v2010 = vadd.f32 %v1950, %v2006
        %2011 = vrot.lane.b32.xlu0 %v970, 36
        %v2012 = vpop.permute.xlu0 %2011
        %2013 = vrot.lane.b32.xlu0 %v971, 36
        %v2014 = vpop.permute.xlu0 %2013
        %2015 = vrot.lane.b32.xlu0 %v972, 36
        %v2016 = vpop.permute.xlu0 %2015
        %2017 = vrot.lane.b32.xlu0 %v973, 36
        %v2018 = vpop.permute.xlu0 %2017
        %v2023 = vsel %vm1047, 0.0, %v2012
        %v2024 = vsel %vm1047, 0.0, %v2014
        %v2025 = vsel %vm1047, 0.0, %v2016
        %v2026 = vsel %vm1047, 0.0, %v2018
        %s2027 = sld [smem:[#allocation12 + $0x13]]
        %v2028 = vstv %s2027
        %v2029 = vmul.f32 %v2028, %v2023
        %v2030 = vmul.f32 %v2028, %v2024
        %v2031 = vmul.f32 %v2028, %v2025
        %v2032 = vmul.f32 %v2028, %v2026
        %v2033 = vadd.f32 %v1977, %v2029
        %v2034 = vadd.f32 %v1978, %v2030
        %v2035 = vadd.f32 %v1979, %v2031
        %v2036 = vadd.f32 %v1980, %v2032
        %s2037 = sld [smem:[#allocation12 + $0x2b]]
        %v2038 = vstv %s2037
        %v2039 = vmul.f32 %v2038, %v2023
        %v2040 = vmul.f32 %v2038, %v2024
        %v2041 = vmul.f32 %v2038, %v2025
        %v2042 = vmul.f32 %v2038, %v2026
        %v2043 = vadd.f32 %v1987, %v2039
        %v2044 = vadd.f32 %v1988, %v2040
        %v2045 = vadd.f32 %v1989, %v2041
        %v2046 = vadd.f32 %v1990, %v2042
        %s2047 = sld [smem:[#allocation12 + $0x43]]
        %v2048 = vstv %s2047
        %v2049 = vmul.f32 %v2048, %v2023
        %v2050 = vmul.f32 %v2048, %v2024
        %v2051 = vmul.f32 %v2048, %v2025
        %v2052 = vmul.f32 %v2048, %v2026
        %v2053 = vadd.f32 %v1997, %v2049
        %v2054 = vadd.f32 %v1998, %v2050
        %v2055 = vadd.f32 %v1999, %v2051
        %v2056 = vadd.f32 %v2000, %v2052
        %s2057 = sld [smem:[#allocation12 + $0x5b]]
        %v2058 = vstv %s2057
        %v2059 = vmul.f32 %v2058, %v2023
        %v2060 = vmul.f32 %v2058, %v2024
        %v2061 = vmul.f32 %v2058, %v2025
        %v2062 = vmul.f32 %v2058, %v2026
        %v2063 = vadd.f32 %v2007, %v2059
        %v2064 = vadd.f32 %v2008, %v2060
        %v2065 = vadd.f32 %v2009, %v2061
        %v2066 = vadd.f32 %v2010, %v2062
        %2067 = vrot.lane.b32.xlu0 %v970, 27
        %v2068 = vpop.permute.xlu0 %2067
        %2069 = vrot.lane.b32.xlu0 %v971, 27
        %v2070 = vpop.permute.xlu0 %2069
        %2071 = vrot.lane.b32.xlu0 %v972, 27
        %v2072 = vpop.permute.xlu0 %2071
        %2073 = vrot.lane.b32.xlu0 %v973, 27
        %v2074 = vpop.permute.xlu0 %2073
        %v2079 = vsel %vm1104, 0.0, %v2068
        %v2080 = vsel %vm1104, 0.0, %v2070
        %v2081 = vsel %vm1104, 0.0, %v2072
        %v2082 = vsel %vm1104, 0.0, %v2074
        %s2083 = sld [smem:[#allocation12 + $0x14]]
        %v2084 = vstv %s2083
        %v2085 = vmul.f32 %v2084, %v2079
        %v2086 = vmul.f32 %v2084, %v2080
        %v2087 = vmul.f32 %v2084, %v2081
        %v2088 = vmul.f32 %v2084, %v2082
        %v2089 = vadd.f32 %v2033, %v2085
        %v2090 = vadd.f32 %v2034, %v2086
        %v2091 = vadd.f32 %v2035, %v2087
        %v2092 = vadd.f32 %v2036, %v2088
        %s2093 = sld [smem:[#allocation12 + $0x2c]]
        %v2094 = vstv %s2093
        %v2095 = vmul.f32 %v2094, %v2079
        %v2096 = vmul.f32 %v2094, %v2080
        %v2097 = vmul.f32 %v2094, %v2081
        %v2098 = vmul.f32 %v2094, %v2082
        %v2099 = vadd.f32 %v2043, %v2095
        %v2100 = vadd.f32 %v2044, %v2096
        %v2101 = vadd.f32 %v2045, %v2097
        %v2102 = vadd.f32 %v2046, %v2098
        %s2103 = sld [smem:[#allocation12 + $0x44]]
        %v2104 = vstv %s2103
        %v2105 = vmul.f32 %v2104, %v2079
        %v2106 = vmul.f32 %v2104, %v2080
        %v2107 = vmul.f32 %v2104, %v2081
        %v2108 = vmul.f32 %v2104, %v2082
        %v2109 = vadd.f32 %v2053, %v2105
        %v2110 = vadd.f32 %v2054, %v2106
        %v2111 = vadd.f32 %v2055, %v2107
        %v2112 = vadd.f32 %v2056, %v2108
        %s2113 = sld [smem:[#allocation12 + $0x5c]]
        %v2114 = vstv %s2113
        %v2115 = vmul.f32 %v2114, %v2079
        %v2116 = vmul.f32 %v2114, %v2080
        %v2117 = vmul.f32 %v2114, %v2081
        %v2118 = vmul.f32 %v2114, %v2082
        %v2119 = vadd.f32 %v2063, %v2115
        %v2120 = vadd.f32 %v2064, %v2116
        %v2121 = vadd.f32 %v2065, %v2117
        %v2122 = vadd.f32 %v2066, %v2118
        %2123 = vrot.lane.b32.xlu0 %v970, 18
        %v2124 = vpop.permute.xlu0 %2123
        %2125 = vrot.lane.b32.xlu0 %v971, 18
        %v2126 = vpop.permute.xlu0 %2125
        %2127 = vrot.lane.b32.xlu0 %v972, 18
        %v2128 = vpop.permute.xlu0 %2127
        %2129 = vrot.lane.b32.xlu0 %v973, 18
        %v2130 = vpop.permute.xlu0 %2129
        %v2135 = vsel %vm1161, 0.0, %v2124
        %v2136 = vsel %vm1161, 0.0, %v2126
        %v2137 = vsel %vm1161, 0.0, %v2128
        %v2138 = vsel %vm1161, 0.0, %v2130
        %s2139 = sld [smem:[#allocation12 + $0x15]]
        %v2140 = vstv %s2139
        %v2141 = vmul.f32 %v2140, %v2135
        %v2142 = vmul.f32 %v2140, %v2136
        %v2143 = vmul.f32 %v2140, %v2137
        %v2144 = vmul.f32 %v2140, %v2138
        %v2145 = vadd.f32 %v2089, %v2141
        %v2146 = vadd.f32 %v2090, %v2142
        %v2147 = vadd.f32 %v2091, %v2143
        %v2148 = vadd.f32 %v2092, %v2144
        %s2149 = sld [smem:[#allocation12 + $0x2d]]
        %v2150 = vstv %s2149
        %v2151 = vmul.f32 %v2150, %v2135
        %v2152 = vmul.f32 %v2150, %v2136
        %v2153 = vmul.f32 %v2150, %v2137
        %v2154 = vmul.f32 %v2150, %v2138
        %v2155 = vadd.f32 %v2099, %v2151
        %v2156 = vadd.f32 %v2100, %v2152
        %v2157 = vadd.f32 %v2101, %v2153
        %v2158 = vadd.f32 %v2102, %v2154
        %s2159 = sld [smem:[#allocation12 + $0x45]]
        %v2160 = vstv %s2159
        %v2161 = vmul.f32 %v2160, %v2135
        %v2162 = vmul.f32 %v2160, %v2136
        %v2163 = vmul.f32 %v2160, %v2137
        %v2164 = vmul.f32 %v2160, %v2138
        %v2165 = vadd.f32 %v2109, %v2161
        %v2166 = vadd.f32 %v2110, %v2162
        %v2167 = vadd.f32 %v2111, %v2163
        %v2168 = vadd.f32 %v2112, %v2164
        %s2169 = sld [smem:[#allocation12 + $0x5d]]
        %v2170 = vstv %s2169
        %v2171 = vmul.f32 %v2170, %v2135
        %v2172 = vmul.f32 %v2170, %v2136
        %v2173 = vmul.f32 %v2170, %v2137
        %v2174 = vmul.f32 %v2170, %v2138
        %v2175 = vadd.f32 %v2119, %v2171
        %v2176 = vadd.f32 %v2120, %v2172
        %v2177 = vadd.f32 %v2121, %v2173
        %v2178 = vadd.f32 %v2122, %v2174
        %2179 = vrot.lane.b32.xlu0 %v970, 9
        %v2180 = vpop.permute.xlu0 %2179
        %2181 = vrot.lane.b32.xlu0 %v971, 9
        %v2182 = vpop.permute.xlu0 %2181
        %2183 = vrot.lane.b32.xlu0 %v972, 9
        %v2184 = vpop.permute.xlu0 %2183
        %2185 = vrot.lane.b32.xlu0 %v973, 9
        %v2186 = vpop.permute.xlu0 %2185
        %v2191 = vsel %vm1218, 0.0, %v2180
        %v2192 = vsel %vm1218, 0.0, %v2182
        %v2193 = vsel %vm1218, 0.0, %v2184
        %v2194 = vsel %vm1218, 0.0, %v2186
        %s2195 = sld [smem:[#allocation12 + $0x16]]
        %v2196 = vstv %s2195
        %v2197 = vmul.f32 %v2196, %v2191
        %v2198 = vmul.f32 %v2196, %v2192
        %v2199 = vmul.f32 %v2196, %v2193
        %v2200 = vmul.f32 %v2196, %v2194
        %v2201 = vadd.f32 %v2145, %v2197
        %v2202 = vadd.f32 %v2146, %v2198
        %v2203 = vadd.f32 %v2147, %v2199
        %v2204 = vadd.f32 %v2148, %v2200
        %s2205 = sld [smem:[#allocation12 + $0x2e]]
        %v2206 = vstv %s2205
        %v2207 = vmul.f32 %v2206, %v2191
        %v2208 = vmul.f32 %v2206, %v2192
        %v2209 = vmul.f32 %v2206, %v2193
        %v2210 = vmul.f32 %v2206, %v2194
        %v2211 = vadd.f32 %v2155, %v2207
        %v2212 = vadd.f32 %v2156, %v2208
        %v2213 = vadd.f32 %v2157, %v2209
        %v2214 = vadd.f32 %v2158, %v2210
        %s2215 = sld [smem:[#allocation12 + $0x46]]
        %v2216 = vstv %s2215
        %v2217 = vmul.f32 %v2216, %v2191
        %v2218 = vmul.f32 %v2216, %v2192
        %v2219 = vmul.f32 %v2216, %v2193
        %v2220 = vmul.f32 %v2216, %v2194
        %v2221 = vadd.f32 %v2165, %v2217
        %v2222 = vadd.f32 %v2166, %v2218
        %v2223 = vadd.f32 %v2167, %v2219
        %v2224 = vadd.f32 %v2168, %v2220
        %s2225 = sld [smem:[#allocation12 + $0x5e]]
        %v2226 = vstv %s2225
        %v2227 = vmul.f32 %v2226, %v2191
        %v2228 = vmul.f32 %v2226, %v2192
        %v2229 = vmul.f32 %v2226, %v2193
        %v2230 = vmul.f32 %v2226, %v2194
        %v2231 = vadd.f32 %v2175, %v2227
        %v2232 = vadd.f32 %v2176, %v2228
        %v2233 = vadd.f32 %v2177, %v2229
        %v2234 = vadd.f32 %v2178, %v2230
        %s2235 = sld [smem:[#allocation12 + $0x17]]
        %v2236 = vstv %s2235
        %v2237 = vmul.f32 %v2236, %v970
        %v2238 = vmul.f32 %v2236, %v971
        %v2239 = vmul.f32 %v2236, %v972
        %v2240 = vmul.f32 %v2236, %v973
        %v2241 = vadd.f32 %v2201, %v2237
        %v2242 = vadd.f32 %v2202, %v2238
        %v2243 = vadd.f32 %v2203, %v2239
        %v2244 = vadd.f32 %v2204, %v2240
        %s2245 = sld [smem:[#allocation12 + $0x2f]]
        %v2246 = vstv %s2245
        %v2247 = vmul.f32 %v2246, %v970
        %v2248 = vmul.f32 %v2246, %v971
        %v2249 = vmul.f32 %v2246, %v972
        %v2250 = vmul.f32 %v2246, %v973
        %v2251 = vadd.f32 %v2211, %v2247
        %v2252 = vadd.f32 %v2212, %v2248
        %v2253 = vadd.f32 %v2213, %v2249
        %v2254 = vadd.f32 %v2214, %v2250
        %s2255 = sld [smem:[#allocation12 + $0x47]]
        %v2256 = vstv %s2255
        %v2257 = vmul.f32 %v2256, %v970
        %v2258 = vmul.f32 %v2256, %v971
        %v2259 = vmul.f32 %v2256, %v972
        %v2260 = vmul.f32 %v2256, %v973
        %v2261 = vadd.f32 %v2221, %v2257
        %v2262 = vadd.f32 %v2222, %v2258
        %v2263 = vadd.f32 %v2223, %v2259
        %v2264 = vadd.f32 %v2224, %v2260
        %s2265 = sld [smem:[#allocation12 + $0x5f]]
        %v2266 = vstv %s2265
        %v2267 = vmul.f32 %v2266, %v970
        %v2268 = vmul.f32 %v2266, %v971
        %v2269 = vmul.f32 %v2266, %v972
        %v2270 = vmul.f32 %v2266, %v973
        %v2271 = vadd.f32 %v2231, %v2267
        %v2272 = vadd.f32 %v2232, %v2268
        %v2273 = vadd.f32 %v2233, %v2269
        %v2274 = vadd.f32 %v2234, %v2270
        %s2275 = sld [smem:[#allocation13]]
        %v2276 = vstv %s2275
        %v2277 = vadd.f32 %v2241, %v2276
        %v2278 = vadd.f32 %v2242, %v2276
        %v2279 = vadd.f32 %v2243, %v2276
        %v2280 = vadd.f32 %v2244, %v2276
        %v2281 = vmax.f32 %v2277, 0.0
        %v2282 = vmax.f32 %v2278, 0.0
        %v2283 = vmax.f32 %v2279, 0.0
        %v2284 = vmax.f32 %v2280, 0.0
        %s2285 = sld [smem:[#allocation13 + $0x1]]
        %v2286 = vstv %s2285
        %v2287 = vadd.f32 %v2251, %v2286
        %v2288 = vadd.f32 %v2252, %v2286
        %v2289 = vadd.f32 %v2253, %v2286
        %v2290 = vadd.f32 %v2254, %v2286
        %v2291 = vmax.f32 %v2287, 0.0
        %v2292 = vmax.f32 %v2288, 0.0
        %v2293 = vmax.f32 %v2289, 0.0
        %v2294 = vmax.f32 %v2290, 0.0
        %s2295 = sld [smem:[#allocation13 + $0x2]]
        %v2296 = vstv %s2295
        %v2297 = vadd.f32 %v2261, %v2296
        %v2298 = vadd.f32 %v2262, %v2296
        %v2299 = vadd.f32 %v2263, %v2296
        %v2300 = vadd.f32 %v2264, %v2296
        %v2301 = vmax.f32 %v2297, 0.0
        %v2302 = vmax.f32 %v2298, 0.0
        %v2303 = vmax.f32 %v2299, 0.0
        %v2304 = vmax.f32 %v2300, 0.0
        %s2305 = sld [smem:[#allocation13 + $0x3]]
        %v2306 = vstv %s2305
        %v2307 = vadd.f32 %v2271, %v2306
        %v2308 = vadd.f32 %v2272, %v2306
        %v2309 = vadd.f32 %v2273, %v2306
        %v2310 = vadd.f32 %v2274, %v2306
        %v2311 = vmax.f32 %v2307, 0.0
        %v2312 = vmax.f32 %v2308, 0.0
        %v2313 = vmax.f32 %v2309, 0.0
        %v2314 = vmax.f32 %v2310, 0.0
        %2319 = vrot.lane.b32.xlu0 %v2281, 45
        %v2320 = vpop.permute.xlu0 %2319
        %2321 = vrot.lane.b32.xlu0 %v2282, 45
        %v2322 = vpop.permute.xlu0 %2321
        %2323 = vrot.lane.b32.xlu0 %v2283, 45
        %v2324 = vpop.permute.xlu0 %2323
        %2325 = vrot.lane.b32.xlu0 %v2284, 45
        %v2326 = vpop.permute.xlu0 %2325
        %v2331 = vsel %vm990, 0.0, %v2320
        %v2332 = vsel %vm990, 0.0, %v2322
        %v2333 = vsel %vm990, 0.0, %v2324
        %v2334 = vsel %vm990, 0.0, %v2326
        %s2335 = sld [smem:[#allocation15]]
        %v2336 = vstv %s2335
        %v2337 = vmul.f32 %v2336, %v2331
        %v2338 = vmul.f32 %v2336, %v2332
        %v2339 = vmul.f32 %v2336, %v2333
        %v2340 = vmul.f32 %v2336, %v2334
        %v2341 = vadd.f32 %v2337, 0.0
        %v2342 = vadd.f32 %v2338, 0.0
        %v2343 = vadd.f32 %v2339, 0.0
        %v2344 = vadd.f32 %v2340, 0.0
        %s2345 = sld [smem:[#allocation15 + $0x18]]
        %v2346 = vstv %s2345
        %v2347 = vmul.f32 %v2346, %v2331
        %v2348 = vmul.f32 %v2346, %v2332
        %v2349 = vmul.f32 %v2346, %v2333
        %v2350 = vmul.f32 %v2346, %v2334
        %v2351 = vadd.f32 %v2347, 0.0
        %v2352 = vadd.f32 %v2348, 0.0
        %v2353 = vadd.f32 %v2349, 0.0
        %v2354 = vadd.f32 %v2350, 0.0
        %s2355 = sld [smem:[#allocation15 + $0x30]]
        %v2356 = vstv %s2355
        %v2357 = vmul.f32 %v2356, %v2331
        %v2358 = vmul.f32 %v2356, %v2332
        %v2359 = vmul.f32 %v2356, %v2333
        %v2360 = vmul.f32 %v2356, %v2334
        %v2361 = vadd.f32 %v2357, 0.0
        %v2362 = vadd.f32 %v2358, 0.0
        %v2363 = vadd.f32 %v2359, 0.0
        %v2364 = vadd.f32 %v2360, 0.0
        %s2365 = sld [smem:[#allocation15 + $0x48]]
        %v2366 = vstv %s2365
        %v2367 = vmul.f32 %v2366, %v2331
        %v2368 = vmul.f32 %v2366, %v2332
        %v2369 = vmul.f32 %v2366, %v2333
        %v2370 = vmul.f32 %v2366, %v2334
        %v2371 = vadd.f32 %v2367, 0.0
        %v2372 = vadd.f32 %v2368, 0.0
        %v2373 = vadd.f32 %v2369, 0.0
        %v2374 = vadd.f32 %v2370, 0.0
        %2375 = vrot.lane.b32.xlu0 %v2281, 36
        %v2376 = vpop.permute.xlu0 %2375
        %2377 = vrot.lane.b32.xlu0 %v2282, 36
        %v2378 = vpop.permute.xlu0 %2377
        %2379 = vrot.lane.b32.xlu0 %v2283, 36
        %v2380 = vpop.permute.xlu0 %2379
        %2381 = vrot.lane.b32.xlu0 %v2284, 36
        %v2382 = vpop.permute.xlu0 %2381
        %v2387 = vsel %vm1047, 0.0, %v2376
        %v2388 = vsel %vm1047, 0.0, %v2378
        %v2389 = vsel %vm1047, 0.0, %v2380
        %v2390 = vsel %vm1047, 0.0, %v2382
        %s2391 = sld [smem:[#allocation15 + $0x1]]
        %v2392 = vstv %s2391
        %v2393 = vmul.f32 %v2392, %v2387
        %v2394 = vmul.f32 %v2392, %v2388
        %v2395 = vmul.f32 %v2392, %v2389
        %v2396 = vmul.f32 %v2392, %v2390
        %v2397 = vadd.f32 %v2341, %v2393
        %v2398 = vadd.f32 %v2342, %v2394
        %v2399 = vadd.f32 %v2343, %v2395
        %v2400 = vadd.f32 %v2344, %v2396
        %s2401 = sld [smem:[#allocation15 + $0x19]]
        %v2402 = vstv %s2401
        %v2403 = vmul.f32 %v2402, %v2387
        %v2404 = vmul.f32 %v2402, %v2388
        %v2405 = vmul.f32 %v2402, %v2389
        %v2406 = vmul.f32 %v2402, %v2390
        %v2407 = vadd.f32 %v2351, %v2403
        %v2408 = vadd.f32 %v2352, %v2404
        %v2409 = vadd.f32 %v2353, %v2405
        %v2410 = vadd.f32 %v2354, %v2406
        %s2411 = sld [smem:[#allocation15 + $0x31]]
        %v2412 = vstv %s2411
        %v2413 = vmul.f32 %v2412, %v2387
        %v2414 = vmul.f32 %v2412, %v2388
        %v2415 = vmul.f32 %v2412, %v2389
        %v2416 = vmul.f32 %v2412, %v2390
        %v2417 = vadd.f32 %v2361, %v2413
        %v2418 = vadd.f32 %v2362, %v2414
        %v2419 = vadd.f32 %v2363, %v2415
        %v2420 = vadd.f32 %v2364, %v2416
        %s2421 = sld [smem:[#allocation15 + $0x49]]
        %v2422 = vstv %s2421
        %v2423 = vmul.f32 %v2422, %v2387
        %v2424 = vmul.f32 %v2422, %v2388
        %v2425 = vmul.f32 %v2422, %v2389
        %v2426 = vmul.f32 %v2422, %v2390
        %v2427 = vadd.f32 %v2371, %v2423
        %v2428 = vadd.f32 %v2372, %v2424
        %v2429 = vadd.f32 %v2373, %v2425
        %v2430 = vadd.f32 %v2374, %v2426
        %2431 = vrot.lane.b32.xlu0 %v2281, 27
        %v2432 = vpop.permute.xlu0 %2431
        %2433 = vrot.lane.b32.xlu0 %v2282, 27
        %v2434 = vpop.permute.xlu0 %2433
        %2435 = vrot.lane.b32.xlu0 %v2283, 27
        %v2436 = vpop.permute.xlu0 %2435
        %2437 = vrot.lane.b32.xlu0 %v2284, 27
        %v2438 = vpop.permute.xlu0 %2437
        %v2443 = vsel %vm1104, 0.0, %v2432
        %v2444 = vsel %vm1104, 0.0, %v2434
        %v2445 = vsel %vm1104, 0.0, %v2436
        %v2446 = vsel %vm1104, 0.0, %v2438
        %s2447 = sld [smem:[#allocation15 + $0x2]]
        %v2448 = vstv %s2447
        %v2449 = vmul.f32 %v2448, %v2443
        %v2450 = vmul.f32 %v2448, %v2444
        %v2451 = vmul.f32 %v2448, %v2445
        %v2452 = vmul.f32 %v2448, %v2446
        %v2453 = vadd.f32 %v2397, %v2449
        %v2454 = vadd.f32 %v2398, %v2450
        %v2455 = vadd.f32 %v2399, %v2451
        %v2456 = vadd.f32 %v2400, %v2452
        %s2457 = sld [smem:[#allocation15 + $0x1a]]
        %v2458 = vstv %s2457
        %v2459 = vmul.f32 %v2458, %v2443
        %v2460 = vmul.f32 %v2458, %v2444
        %v2461 = vmul.f32 %v2458, %v2445
        %v2462 = vmul.f32 %v2458, %v2446
        %v2463 = vadd.f32 %v2407, %v2459
        %v2464 = vadd.f32 %v2408, %v2460
        %v2465 = vadd.f32 %v2409, %v2461
        %v2466 = vadd.f32 %v2410, %v2462
        %s2467 = sld [smem:[#allocation15 + $0x32]]
        %v2468 = vstv %s2467
        %v2469 = vmul.f32 %v2468, %v2443
        %v2470 = vmul.f32 %v2468, %v2444
        %v2471 = vmul.f32 %v2468, %v2445
        %v2472 = vmul.f32 %v2468, %v2446
        %v2473 = vadd.f32 %v2417, %v2469
        %v2474 = vadd.f32 %v2418, %v2470
        %v2475 = vadd.f32 %v2419, %v2471
        %v2476 = vadd.f32 %v2420, %v2472
        %s2477 = sld [smem:[#allocation15 + $0x4a]]
        %v2478 = vstv %s2477
        %v2479 = vmul.f32 %v2478, %v2443
        %v2480 = vmul.f32 %v2478, %v2444
        %v2481 = vmul.f32 %v2478, %v2445
        %v2482 = vmul.f32 %v2478, %v2446
        %v2483 = vadd.f32 %v2427, %v2479
        %v2484 = vadd.f32 %v2428, %v2480
        %v2485 = vadd.f32 %v2429, %v2481
        %v2486 = vadd.f32 %v2430, %v2482
        %2487 = vrot.lane.b32.xlu0 %v2281, 18
        %v2488 = vpop.permute.xlu0 %2487
        %2489 = vrot.lane.b32.xlu0 %v2282, 18
        %v2490 = vpop.permute.xlu0 %2489
        %2491 = vrot.lane.b32.xlu0 %v2283, 18
        %v2492 = vpop.permute.xlu0 %2491
        %2493 = vrot.lane.b32.xlu0 %v2284, 18
        %v2494 = vpop.permute.xlu0 %2493
        %v2499 = vsel %vm1161, 0.0, %v2488
        %v2500 = vsel %vm1161, 0.0, %v2490
        %v2501 = vsel %vm1161, 0.0, %v2492
        %v2502 = vsel %vm1161, 0.0, %v2494
        %s2503 = sld [smem:[#allocation15 + $0x3]]
        %v2504 = vstv %s2503
        %v2505 = vmul.f32 %v2504, %v2499
        %v2506 = vmul.f32 %v2504, %v2500
        %v2507 = vmul.f32 %v2504, %v2501
        %v2508 = vmul.f32 %v2504, %v2502
        %v2509 = vadd.f32 %v2453, %v2505
        %v2510 = vadd.f32 %v2454, %v2506
        %v2511 = vadd.f32 %v2455, %v2507
        %v2512 = vadd.f32 %v2456, %v2508
        %s2513 = sld [smem:[#allocation15 + $0x1b]]
        %v2514 = vstv %s2513
        %v2515 = vmul.f32 %v2514, %v2499
        %v2516 = vmul.f32 %v2514, %v2500
        %v2517 = vmul.f32 %v2514, %v2501
        %v2518 = vmul.f32 %v2514, %v2502
        %v2519 = vadd.f32 %v2463, %v2515
        %v2520 = vadd.f32 %v2464, %v2516
        %v2521 = vadd.f32 %v2465, %v2517
        %v2522 = vadd.f32 %v2466, %v2518
        %s2523 = sld [smem:[#allocation15 + $0x33]]
        %v2524 = vstv %s2523
        %v2525 = vmul.f32 %v2524, %v2499
        %v2526 = vmul.f32 %v2524, %v2500
        %v2527 = vmul.f32 %v2524, %v2501
        %v2528 = vmul.f32 %v2524, %v2502
        %v2529 = vadd.f32 %v2473, %v2525
        %v2530 = vadd.f32 %v2474, %v2526
        %v2531 = vadd.f32 %v2475, %v2527
        %v2532 = vadd.f32 %v2476, %v2528
        %s2533 = sld [smem:[#allocation15 + $0x4b]]
        %v2534 = vstv %s2533
        %v2535 = vmul.f32 %v2534, %v2499
        %v2536 = vmul.f32 %v2534, %v2500
        %v2537 = vmul.f32 %v2534, %v2501
        %v2538 = vmul.f32 %v2534, %v2502
        %v2539 = vadd.f32 %v2483, %v2535
        %v2540 = vadd.f32 %v2484, %v2536
        %v2541 = vadd.f32 %v2485, %v2537
        %v2542 = vadd.f32 %v2486, %v2538
        %2543 = vrot.lane.b32.xlu0 %v2281, 9
        %v2544 = vpop.permute.xlu0 %2543
        %2545 = vrot.lane.b32.xlu0 %v2282, 9
        %v2546 = vpop.permute.xlu0 %2545
        %2547 = vrot.lane.b32.xlu0 %v2283, 9
        %v2548 = vpop.permute.xlu0 %2547
        %2549 = vrot.lane.b32.xlu0 %v2284, 9
        %v2550 = vpop.permute.xlu0 %2549
        %v2555 = vsel %vm1218, 0.0, %v2544
        %v2556 = vsel %vm1218, 0.0, %v2546
        %v2557 = vsel %vm1218, 0.0, %v2548
        %v2558 = vsel %vm1218, 0.0, %v2550
        %s2559 = sld [smem:[#allocation15 + $0x4]]
        %v2560 = vstv %s2559
        %v2561 = vmul.f32 %v2560, %v2555
        %v2562 = vmul.f32 %v2560, %v2556
        %v2563 = vmul.f32 %v2560, %v2557
        %v2564 = vmul.f32 %v2560, %v2558
        %v2565 = vadd.f32 %v2509, %v2561
        %v2566 = vadd.f32 %v2510, %v2562
        %v2567 = vadd.f32 %v2511, %v2563
        %v2568 = vadd.f32 %v2512, %v2564
        %s2569 = sld [smem:[#allocation15 + $0x1c]]
        %v2570 = vstv %s2569
        %v2571 = vmul.f32 %v2570, %v2555
        %v2572 = vmul.f32 %v2570, %v2556
        %v2573 = vmul.f32 %v2570, %v2557
        %v2574 = vmul.f32 %v2570, %v2558
        %v2575 = vadd.f32 %v2519, %v2571
        %v2576 = vadd.f32 %v2520, %v2572
        %v2577 = vadd.f32 %v2521, %v2573
        %v2578 = vadd.f32 %v2522, %v2574
        %s2579 = sld [smem:[#allocation15 + $0x34]]
        %v2580 = vstv %s2579
        %v2581 = vmul.f32 %v2580, %v2555
        %v2582 = vmul.f32 %v2580, %v2556
        %v2583 = vmul.f32 %v2580, %v2557
        %v2584 = vmul.f32 %v2580, %v2558
        %v2585 = vadd.f32 %v2529, %v2581
        %v2586 = vadd.f32 %v2530, %v2582
        %v2587 = vadd.f32 %v2531, %v2583
        %v2588 = vadd.f32 %v2532, %v2584
        %s2589 = sld [smem:[#allocation15 + $0x4c]]
        %v2590 = vstv %s2589
        %v2591 = vmul.f32 %v2590, %v2555
        %v2592 = vmul.f32 %v2590, %v2556
        %v2593 = vmul.f32 %v2590, %v2557
        %v2594 = vmul.f32 %v2590, %v2558
        %v2595 = vadd.f32 %v2539, %v2591
        %v2596 = vadd.f32 %v2540, %v2592
        %v2597 = vadd.f32 %v2541, %v2593
        %v2598 = vadd.f32 %v2542, %v2594
        %s2599 = sld [smem:[#allocation15 + $0x5]]
        %v2600 = vstv %s2599
        %v2601 = vmul.f32 %v2600, %v2281
        %v2602 = vmul.f32 %v2600, %v2282
        %v2603 = vmul.f32 %v2600, %v2283
        %v2604 = vmul.f32 %v2600, %v2284
        %v2605 = vadd.f32 %v2565, %v2601
        %v2606 = vadd.f32 %v2566, %v2602
        %v2607 = vadd.f32 %v2567, %v2603
        %v2608 = vadd.f32 %v2568, %v2604
        %s2609 = sld [smem:[#allocation15 + $0x1d]]
        %v2610 = vstv %s2609
        %v2611 = vmul.f32 %v2610, %v2281
        %v2612 = vmul.f32 %v2610, %v2282
        %v2613 = vmul.f32 %v2610, %v2283
        %v2614 = vmul.f32 %v2610, %v2284
        %v2615 = vadd.f32 %v2575, %v2611
        %v2616 = vadd.f32 %v2576, %v2612
        %v2617 = vadd.f32 %v2577, %v2613
        %v2618 = vadd.f32 %v2578, %v2614
        %s2619 = sld [smem:[#allocation15 + $0x35]]
        %v2620 = vstv %s2619
        %v2621 = vmul.f32 %v2620, %v2281
        %v2622 = vmul.f32 %v2620, %v2282
        %v2623 = vmul.f32 %v2620, %v2283
        %v2624 = vmul.f32 %v2620, %v2284
        %v2625 = vadd.f32 %v2585, %v2621
        %v2626 = vadd.f32 %v2586, %v2622
        %v2627 = vadd.f32 %v2587, %v2623
        %v2628 = vadd.f32 %v2588, %v2624
        %s2629 = sld [smem:[#allocation15 + $0x4d]]
        %v2630 = vstv %s2629
        %v2631 = vmul.f32 %v2630, %v2281
        %v2632 = vmul.f32 %v2630, %v2282
        %v2633 = vmul.f32 %v2630, %v2283
        %v2634 = vmul.f32 %v2630, %v2284
        %v2635 = vadd.f32 %v2595, %v2631
        %v2636 = vadd.f32 %v2596, %v2632
        %v2637 = vadd.f32 %v2597, %v2633
        %v2638 = vadd.f32 %v2598, %v2634
        %2643 = vrot.lane.b32.xlu0 %v2291, 45
        %v2644 = vpop.permute.xlu0 %2643
        %2645 = vrot.lane.b32.xlu0 %v2292, 45
        %v2646 = vpop.permute.xlu0 %2645
        %2647 = vrot.lane.b32.xlu0 %v2293, 45
        %v2648 = vpop.permute.xlu0 %2647
        %2649 = vrot.lane.b32.xlu0 %v2294, 45
        %v2650 = vpop.permute.xlu0 %2649
        %v2655 = vsel %vm990, 0.0, %v2644
        %v2656 = vsel %vm990, 0.0, %v2646
        %v2657 = vsel %vm990, 0.0, %v2648
        %v2658 = vsel %vm990, 0.0, %v2650
        %s2659 = sld [smem:[#allocation15 + $0x6]]
        %v2660 = vstv %s2659
        %v2661 = vmul.f32 %v2660, %v2655
        %v2662 = vmul.f32 %v2660, %v2656
        %v2663 = vmul.f32 %v2660, %v2657
        %v2664 = vmul.f32 %v2660, %v2658
        %v2665 = vadd.f32 %v2605, %v2661
        %v2666 = vadd.f32 %v2606, %v2662
        %v2667 = vadd.f32 %v2607, %v2663
        %v2668 = vadd.f32 %v2608, %v2664
        %s2669 = sld [smem:[#allocation15 + $0x1e]]
        %v2670 = vstv %s2669
        %v2671 = vmul.f32 %v2670, %v2655
        %v2672 = vmul.f32 %v2670, %v2656
        %v2673 = vmul.f32 %v2670, %v2657
        %v2674 = vmul.f32 %v2670, %v2658
        %v2675 = vadd.f32 %v2615, %v2671
        %v2676 = vadd.f32 %v2616, %v2672
        %v2677 = vadd.f32 %v2617, %v2673
        %v2678 = vadd.f32 %v2618, %v2674
        %s2679 = sld [smem:[#allocation15 + $0x36]]
        %v2680 = vstv %s2679
        %v2681 = vmul.f32 %v2680, %v2655
        %v2682 = vmul.f32 %v2680, %v2656
        %v2683 = vmul.f32 %v2680, %v2657
        %v2684 = vmul.f32 %v2680, %v2658
        %v2685 = vadd.f32 %v2625, %v2681
        %v2686 = vadd.f32 %v2626, %v2682
        %v2687 = vadd.f32 %v2627, %v2683
        %v2688 = vadd.f32 %v2628, %v2684
        %s2689 = sld [smem:[#allocation15 + $0x4e]]
        %v2690 = vstv %s2689
        %v2691 = vmul.f32 %v2690, %v2655
        %v2692 = vmul.f32 %v2690, %v2656
        %v2693 = vmul.f32 %v2690, %v2657
        %v2694 = vmul.f32 %v2690, %v2658
        %v2695 = vadd.f32 %v2635, %v2691
        %v2696 = vadd.f32 %v2636, %v2692
        %v2697 = vadd.f32 %v2637, %v2693
        %v2698 = vadd.f32 %v2638, %v2694
        %2699 = vrot.lane.b32.xlu0 %v2291, 36
        %v2700 = vpop.permute.xlu0 %2699
        %2701 = vrot.lane.b32.xlu0 %v2292, 36
        %v2702 = vpop.permute.xlu0 %2701
        %2703 = vrot.lane.b32.xlu0 %v2293, 36
        %v2704 = vpop.permute.xlu0 %2703
        %2705 = vrot.lane.b32.xlu0 %v2294, 36
        %v2706 = vpop.permute.xlu0 %2705
        %v2711 = vsel %vm1047, 0.0, %v2700
        %v2712 = vsel %vm1047, 0.0, %v2702
        %v2713 = vsel %vm1047, 0.0, %v2704
        %v2714 = vsel %vm1047, 0.0, %v2706
        %s2715 = sld [smem:[#allocation15 + $0x7]]
        %v2716 = vstv %s2715
        %v2717 = vmul.f32 %v2716, %v2711
        %v2718 = vmul.f32 %v2716, %v2712
        %v2719 = vmul.f32 %v2716, %v2713
        %v2720 = vmul.f32 %v2716, %v2714
        %v2721 = vadd.f32 %v2665, %v2717
        %v2722 = vadd.f32 %v2666, %v2718
        %v2723 = vadd.f32 %v2667, %v2719
        %v2724 = vadd.f32 %v2668, %v2720
        %s2725 = sld [smem:[#allocation15 + $0x1f]]
        %v2726 = vstv %s2725
        %v2727 = vmul.f32 %v2726, %v2711
        %v2728 = vmul.f32 %v2726, %v2712
        %v2729 = vmul.f32 %v2726, %v2713
        %v2730 = vmul.f32 %v2726, %v2714
        %v2731 = vadd.f32 %v2675, %v2727
        %v2732 = vadd.f32 %v2676, %v2728
        %v2733 = vadd.f32 %v2677, %v2729
        %v2734 = vadd.f32 %v2678, %v2730
        %s2735 = sld [smem:[#allocation15 + $0x37]]
        %v2736 = vstv %s2735
        %v2737 = vmul.f32 %v2736, %v2711
        %v2738 = vmul.f32 %v2736, %v2712
        %v2739 = vmul.f32 %v2736, %v2713
        %v2740 = vmul.f32 %v2736, %v2714
        %v2741 = vadd.f32 %v2685, %v2737
        %v2742 = vadd.f32 %v2686, %v2738
        %v2743 = vadd.f32 %v2687, %v2739
        %v2744 = vadd.f32 %v2688, %v2740
        %s2745 = sld [smem:[#allocation15 + $0x4f]]
        %v2746 = vstv %s2745
        %v2747 = vmul.f32 %v2746, %v2711
        %v2748 = vmul.f32 %v2746, %v2712
        %v2749 = vmul.f32 %v2746, %v2713
        %v2750 = vmul.f32 %v2746, %v2714
        %v2751 = vadd.f32 %v2695, %v2747
        %v2752 = vadd.f32 %v2696, %v2748
        %v2753 = vadd.f32 %v2697, %v2749
        %v2754 = vadd.f32 %v2698, %v2750
        %2755 = vrot.lane.b32.xlu0 %v2291, 27
        %v2756 = vpop.permute.xlu0 %2755
        %2757 = vrot.lane.b32.xlu0 %v2292, 27
        %v2758 = vpop.permute.xlu0 %2757
        %2759 = vrot.lane.b32.xlu0 %v2293, 27
        %v2760 = vpop.permute.xlu0 %2759
        %2761 = vrot.lane.b32.xlu0 %v2294, 27
        %v2762 = vpop.permute.xlu0 %2761
        %v2767 = vsel %vm1104, 0.0, %v2756
        %v2768 = vsel %vm1104, 0.0, %v2758
        %v2769 = vsel %vm1104, 0.0, %v2760
        %v2770 = vsel %vm1104, 0.0, %v2762
        %s2771 = sld [smem:[#allocation15 + $0x8]]
        %v2772 = vstv %s2771
        %v2773 = vmul.f32 %v2772, %v2767
        %v2774 = vmul.f32 %v2772, %v2768
        %v2775 = vmul.f32 %v2772, %v2769
        %v2776 = vmul.f32 %v2772, %v2770
        %v2777 = vadd.f32 %v2721, %v2773
        %v2778 = vadd.f32 %v2722, %v2774
        %v2779 = vadd.f32 %v2723, %v2775
        %v2780 = vadd.f32 %v2724, %v2776
        %s2781 = sld [smem:[#allocation15 + $0x20]]
        %v2782 = vstv %s2781
        %v2783 = vmul.f32 %v2782, %v2767
        %v2784 = vmul.f32 %v2782, %v2768
        %v2785 = vmul.f32 %v2782, %v2769
        %v2786 = vmul.f32 %v2782, %v2770
        %v2787 = vadd.f32 %v2731, %v2783
        %v2788 = vadd.f32 %v2732, %v2784
        %v2789 = vadd.f32 %v2733, %v2785
        %v2790 = vadd.f32 %v2734, %v2786
        %s2791 = sld [smem:[#allocation15 + $0x38]]
        %v2792 = vstv %s2791
        %v2793 = vmul.f32 %v2792, %v2767
        %v2794 = vmul.f32 %v2792, %v2768
        %v2795 = vmul.f32 %v2792, %v2769
        %v2796 = vmul.f32 %v2792, %v2770
        %v2797 = vadd.f32 %v2741, %v2793
        %v2798 = vadd.f32 %v2742, %v2794
        %v2799 = vadd.f32 %v2743, %v2795
        %v2800 = vadd.f32 %v2744, %v2796
        %s2801 = sld [smem:[#allocation15 + $0x50]]
        %v2802 = vstv %s2801
        %v2803 = vmul.f32 %v2802, %v2767
        %v2804 = vmul.f32 %v2802, %v2768
        %v2805 = vmul.f32 %v2802, %v2769
        %v2806 = vmul.f32 %v2802, %v2770
        %v2807 = vadd.f32 %v2751, %v2803
        %v2808 = vadd.f32 %v2752, %v2804
        %v2809 = vadd.f32 %v2753, %v2805
        %v2810 = vadd.f32 %v2754, %v2806
        %2811 = vrot.lane.b32.xlu0 %v2291, 18
        %v2812 = vpop.permute.xlu0 %2811
        %2813 = vrot.lane.b32.xlu0 %v2292, 18
        %v2814 = vpop.permute.xlu0 %2813
        %2815 = vrot.lane.b32.xlu0 %v2293, 18
        %v2816 = vpop.permute.xlu0 %2815
        %2817 = vrot.lane.b32.xlu0 %v2294, 18
        %v2818 = vpop.permute.xlu0 %2817
        %v2823 = vsel %vm1161, 0.0, %v2812
        %v2824 = vsel %vm1161, 0.0, %v2814
        %v2825 = vsel %vm1161, 0.0, %v2816
        %v2826 = vsel %vm1161, 0.0, %v2818
        %s2827 = sld [smem:[#allocation15 + $0x9]]
        %v2828 = vstv %s2827
        %v2829 = vmul.f32 %v2828, %v2823
        %v2830 = vmul.f32 %v2828, %v2824
        %v2831 = vmul.f32 %v2828, %v2825
        %v2832 = vmul.f32 %v2828, %v2826
        %v2833 = vadd.f32 %v2777, %v2829
        %v2834 = vadd.f32 %v2778, %v2830
        %v2835 = vadd.f32 %v2779, %v2831
        %v2836 = vadd.f32 %v2780, %v2832
        %s2837 = sld [smem:[#allocation15 + $0x21]]
        %v2838 = vstv %s2837
        %v2839 = vmul.f32 %v2838, %v2823
        %v2840 = vmul.f32 %v2838, %v2824
        %v2841 = vmul.f32 %v2838, %v2825
        %v2842 = vmul.f32 %v2838, %v2826
        %v2843 = vadd.f32 %v2787, %v2839
        %v2844 = vadd.f32 %v2788, %v2840
        %v2845 = vadd.f32 %v2789, %v2841
        %v2846 = vadd.f32 %v2790, %v2842
        %s2847 = sld [smem:[#allocation15 + $0x39]]
        %v2848 = vstv %s2847
        %v2849 = vmul.f32 %v2848, %v2823
        %v2850 = vmul.f32 %v2848, %v2824
        %v2851 = vmul.f32 %v2848, %v2825
        %v2852 = vmul.f32 %v2848, %v2826
        %v2853 = vadd.f32 %v2797, %v2849
        %v2854 = vadd.f32 %v2798, %v2850
        %v2855 = vadd.f32 %v2799, %v2851
        %v2856 = vadd.f32 %v2800, %v2852
        %s2857 = sld [smem:[#allocation15 + $0x51]]
        %v2858 = vstv %s2857
        %v2859 = vmul.f32 %v2858, %v2823
        %v2860 = vmul.f32 %v2858, %v2824
        %v2861 = vmul.f32 %v2858, %v2825
        %v2862 = vmul.f32 %v2858, %v2826
        %v2863 = vadd.f32 %v2807, %v2859
        %v2864 = vadd.f32 %v2808, %v2860
        %v2865 = vadd.f32 %v2809, %v2861
        %v2866 = vadd.f32 %v2810, %v2862
        %2867 = vrot.lane.b32.xlu0 %v2291, 9
        %v2868 = vpop.permute.xlu0 %2867
        %2869 = vrot.lane.b32.xlu0 %v2292, 9
        %v2870 = vpop.permute.xlu0 %2869
        %2871 = vrot.lane.b32.xlu0 %v2293, 9
        %v2872 = vpop.permute.xlu0 %2871
        %2873 = vrot.lane.b32.xlu0 %v2294, 9
        %v2874 = vpop.permute.xlu0 %2873
        %v2879 = vsel %vm1218, 0.0, %v2868
        %v2880 = vsel %vm1218, 0.0, %v2870
        %v2881 = vsel %vm1218, 0.0, %v2872
        %v2882 = vsel %vm1218, 0.0, %v2874
        %s2883 = sld [smem:[#allocation15 + $0xa]]
        %v2884 = vstv %s2883
        %v2885 = vmul.f32 %v2884, %v2879
        %v2886 = vmul.f32 %v2884, %v2880
        %v2887 = vmul.f32 %v2884, %v2881
        %v2888 = vmul.f32 %v2884, %v2882
        %v2889 = vadd.f32 %v2833, %v2885
        %v2890 = vadd.f32 %v2834, %v2886
        %v2891 = vadd.f32 %v2835, %v2887
        %v2892 = vadd.f32 %v2836, %v2888
        %s2893 = sld [smem:[#allocation15 + $0x22]]
        %v2894 = vstv %s2893
        %v2895 = vmul.f32 %v2894, %v2879
        %v2896 = vmul.f32 %v2894, %v2880
        %v2897 = vmul.f32 %v2894, %v2881
        %v2898 = vmul.f32 %v2894, %v2882
        %v2899 = vadd.f32 %v2843, %v2895
        %v2900 = vadd.f32 %v2844, %v2896
        %v2901 = vadd.f32 %v2845, %v2897
        %v2902 = vadd.f32 %v2846, %v2898
        %s2903 = sld [smem:[#allocation15 + $0x3a]]
        %v2904 = vstv %s2903
        %v2905 = vmul.f32 %v2904, %v2879
        %v2906 = vmul.f32 %v2904, %v2880
        %v2907 = vmul.f32 %v2904, %v2881
        %v2908 = vmul.f32 %v2904, %v2882
        %v2909 = vadd.f32 %v2853, %v2905
        %v2910 = vadd.f32 %v2854, %v2906
        %v2911 = vadd.f32 %v2855, %v2907
        %v2912 = vadd.f32 %v2856, %v2908
        %s2913 = sld [smem:[#allocation15 + $0x52]]
        %v2914 = vstv %s2913
        %v2915 = vmul.f32 %v2914, %v2879
        %v2916 = vmul.f32 %v2914, %v2880
        %v2917 = vmul.f32 %v2914, %v2881
        %v2918 = vmul.f32 %v2914, %v2882
        %v2919 = vadd.f32 %v2863, %v2915
        %v2920 = vadd.f32 %v2864, %v2916
        %v2921 = vadd.f32 %v2865, %v2917
        %v2922 = vadd.f32 %v2866, %v2918
        %s2923 = sld [smem:[#allocation15 + $0xb]]
        %v2924 = vstv %s2923
        %v2925 = vmul.f32 %v2924, %v2291
        %v2926 = vmul.f32 %v2924, %v2292
        %v2927 = vmul.f32 %v2924, %v2293
        %v2928 = vmul.f32 %v2924, %v2294
        %v2929 = vadd.f32 %v2889, %v2925
        %v2930 = vadd.f32 %v2890, %v2926
        %v2931 = vadd.f32 %v2891, %v2927
        %v2932 = vadd.f32 %v2892, %v2928
        %s2933 = sld [smem:[#allocation15 + $0x23]]
        %v2934 = vstv %s2933
        %v2935 = vmul.f32 %v2934, %v2291
        %v2936 = vmul.f32 %v2934, %v2292
        %v2937 = vmul.f32 %v2934, %v2293
        %v2938 = vmul.f32 %v2934, %v2294
        %v2939 = vadd.f32 %v2899, %v2935
        %v2940 = vadd.f32 %v2900, %v2936
        %v2941 = vadd.f32 %v2901, %v2937
        %v2942 = vadd.f32 %v2902, %v2938
        %s2943 = sld [smem:[#allocation15 + $0x3b]]
        %v2944 = vstv %s2943
        %v2945 = vmul.f32 %v2944, %v2291
        %v2946 = vmul.f32 %v2944, %v2292
        %v2947 = vmul.f32 %v2944, %v2293
        %v2948 = vmul.f32 %v2944, %v2294
        %v2949 = vadd.f32 %v2909, %v2945
        %v2950 = vadd.f32 %v2910, %v2946
        %v2951 = vadd.f32 %v2911, %v2947
        %v2952 = vadd.f32 %v2912, %v2948
        %s2953 = sld [smem:[#allocation15 + $0x53]]
        %v2954 = vstv %s2953
        %v2955 = vmul.f32 %v2954, %v2291
        %v2956 = vmul.f32 %v2954, %v2292
        %v2957 = vmul.f32 %v2954, %v2293
        %v2958 = vmul.f32 %v2954, %v2294
        %v2959 = vadd.f32 %v2919, %v2955
        %v2960 = vadd.f32 %v2920, %v2956
        %v2961 = vadd.f32 %v2921, %v2957
        %v2962 = vadd.f32 %v2922, %v2958
        %2967 = vrot.lane.b32.xlu0 %v2301, 45
        %v2968 = vpop.permute.xlu0 %2967
        %2969 = vrot.lane.b32.xlu0 %v2302, 45
        %v2970 = vpop.permute.xlu0 %2969
        %2971 = vrot.lane.b32.xlu0 %v2303, 45
        %v2972 = vpop.permute.xlu0 %2971
        %2973 = vrot.lane.b32.xlu0 %v2304, 45
        %v2974 = vpop.permute.xlu0 %2973
        %v2979 = vsel %vm990, 0.0, %v2968
        %v2980 = vsel %vm990, 0.0, %v2970
        %v2981 = vsel %vm990, 0.0, %v2972
        %v2982 = vsel %vm990, 0.0, %v2974
        %s2983 = sld [smem:[#allocation15 + $0xc]]
        %v2984 = vstv %s2983
        %v2985 = vmul.f32 %v2984, %v2979
        %v2986 = vmul.f32 %v2984, %v2980
        %v2987 = vmul.f32 %v2984, %v2981
        %v2988 = vmul.f32 %v2984, %v2982
        %v2989 = vadd.f32 %v2929, %v2985
        %v2990 = vadd.f32 %v2930, %v2986
        %v2991 = vadd.f32 %v2931, %v2987
        %v2992 = vadd.f32 %v2932, %v2988
        %s2993 = sld [smem:[#allocation15 + $0x24]]
        %v2994 = vstv %s2993
        %v2995 = vmul.f32 %v2994, %v2979
        %v2996 = vmul.f32 %v2994, %v2980
        %v2997 = vmul.f32 %v2994, %v2981
        %v2998 = vmul.f32 %v2994, %v2982
        %v2999 = vadd.f32 %v2939, %v2995
        %v3000 = vadd.f32 %v2940, %v2996
        %v3001 = vadd.f32 %v2941, %v2997
        %v3002 = vadd.f32 %v2942, %v2998
        %s3003 = sld [smem:[#allocation15 + $0x3c]]
        %v3004 = vstv %s3003
        %v3005 = vmul.f32 %v3004, %v2979
        %v3006 = vmul.f32 %v3004, %v2980
        %v3007 = vmul.f32 %v3004, %v2981
        %v3008 = vmul.f32 %v3004, %v2982
        %v3009 = vadd.f32 %v2949, %v3005
        %v3010 = vadd.f32 %v2950, %v3006
        %v3011 = vadd.f32 %v2951, %v3007
        %v3012 = vadd.f32 %v2952, %v3008
        %s3013 = sld [smem:[#allocation15 + $0x54]]
        %v3014 = vstv %s3013
        %v3015 = vmul.f32 %v3014, %v2979
        %v3016 = vmul.f32 %v3014, %v2980
        %v3017 = vmul.f32 %v3014, %v2981
        %v3018 = vmul.f32 %v3014, %v2982
        %v3019 = vadd.f32 %v2959, %v3015
        %v3020 = vadd.f32 %v2960, %v3016
        %v3021 = vadd.f32 %v2961, %v3017
        %v3022 = vadd.f32 %v2962, %v3018
        %3023 = vrot.lane.b32.xlu0 %v2301, 36
        %v3024 = vpop.permute.xlu0 %3023
        %3025 = vrot.lane.b32.xlu0 %v2302, 36
        %v3026 = vpop.permute.xlu0 %3025
        %3027 = vrot.lane.b32.xlu0 %v2303, 36
        %v3028 = vpop.permute.xlu0 %3027
        %3029 = vrot.lane.b32.xlu0 %v2304, 36
        %v3030 = vpop.permute.xlu0 %3029
        %v3035 = vsel %vm1047, 0.0, %v3024
        %v3036 = vsel %vm1047, 0.0, %v3026
        %v3037 = vsel %vm1047, 0.0, %v3028
        %v3038 = vsel %vm1047, 0.0, %v3030
        %s3039 = sld [smem:[#allocation15 + $0xd]]
        %v3040 = vstv %s3039
        %v3041 = vmul.f32 %v3040, %v3035
        %v3042 = vmul.f32 %v3040, %v3036
        %v3043 = vmul.f32 %v3040, %v3037
        %v3044 = vmul.f32 %v3040, %v3038
        %v3045 = vadd.f32 %v2989, %v3041
        %v3046 = vadd.f32 %v2990, %v3042
        %v3047 = vadd.f32 %v2991, %v3043
        %v3048 = vadd.f32 %v2992, %v3044
        %s3049 = sld [smem:[#allocation15 + $0x25]]
        %v3050 = vstv %s3049
        %v3051 = vmul.f32 %v3050, %v3035
        %v3052 = vmul.f32 %v3050, %v3036
        %v3053 = vmul.f32 %v3050, %v3037
        %v3054 = vmul.f32 %v3050, %v3038
        %v3055 = vadd.f32 %v2999, %v3051
        %v3056 = vadd.f32 %v3000, %v3052
        %v3057 = vadd.f32 %v3001, %v3053
        %v3058 = vadd.f32 %v3002, %v3054
        %s3059 = sld [smem:[#allocation15 + $0x3d]]
        %v3060 = vstv %s3059
        %v3061 = vmul.f32 %v3060, %v3035
        %v3062 = vmul.f32 %v3060, %v3036
        %v3063 = vmul.f32 %v3060, %v3037
        %v3064 = vmul.f32 %v3060, %v3038
        %v3065 = vadd.f32 %v3009, %v3061
        %v3066 = vadd.f32 %v3010, %v3062
        %v3067 = vadd.f32 %v3011, %v3063
        %v3068 = vadd.f32 %v3012, %v3064
        %s3069 = sld [smem:[#allocation15 + $0x55]]
        %v3070 = vstv %s3069
        %v3071 = vmul.f32 %v3070, %v3035
        %v3072 = vmul.f32 %v3070, %v3036
        %v3073 = vmul.f32 %v3070, %v3037
        %v3074 = vmul.f32 %v3070, %v3038
        %v3075 = vadd.f32 %v3019, %v3071
        %v3076 = vadd.f32 %v3020, %v3072
        %v3077 = vadd.f32 %v3021, %v3073
        %v3078 = vadd.f32 %v3022, %v3074
        %3079 = vrot.lane.b32.xlu0 %v2301, 27
        %v3080 = vpop.permute.xlu0 %3079
        %3081 = vrot.lane.b32.xlu0 %v2302, 27
        %v3082 = vpop.permute.xlu0 %3081
        %3083 = vrot.lane.b32.xlu0 %v2303, 27
        %v3084 = vpop.permute.xlu0 %3083
        %3085 = vrot.lane.b32.xlu0 %v2304, 27
        %v3086 = vpop.permute.xlu0 %3085
        %v3091 = vsel %vm1104, 0.0, %v3080
        %v3092 = vsel %vm1104, 0.0, %v3082
        %v3093 = vsel %vm1104, 0.0, %v3084
        %v3094 = vsel %vm1104, 0.0, %v3086
        %s3095 = sld [smem:[#allocation15 + $0xe]]
        %v3096 = vstv %s3095
        %v3097 = vmul.f32 %v3096, %v3091
        %v3098 = vmul.f32 %v3096, %v3092
        %v3099 = vmul.f32 %v3096, %v3093
        %v3100 = vmul.f32 %v3096, %v3094
        %v3101 = vadd.f32 %v3045, %v3097
        %v3102 = vadd.f32 %v3046, %v3098
        %v3103 = vadd.f32 %v3047, %v3099
        %v3104 = vadd.f32 %v3048, %v3100
        %s3105 = sld [smem:[#allocation15 + $0x26]]
        %v3106 = vstv %s3105
        %v3107 = vmul.f32 %v3106, %v3091
        %v3108 = vmul.f32 %v3106, %v3092
        %v3109 = vmul.f32 %v3106, %v3093
        %v3110 = vmul.f32 %v3106, %v3094
        %v3111 = vadd.f32 %v3055, %v3107
        %v3112 = vadd.f32 %v3056, %v3108
        %v3113 = vadd.f32 %v3057, %v3109
        %v3114 = vadd.f32 %v3058, %v3110
        %s3115 = sld [smem:[#allocation15 + $0x3e]]
        %v3116 = vstv %s3115
        %v3117 = vmul.f32 %v3116, %v3091
        %v3118 = vmul.f32 %v3116, %v3092
        %v3119 = vmul.f32 %v3116, %v3093
        %v3120 = vmul.f32 %v3116, %v3094
        %v3121 = vadd.f32 %v3065, %v3117
        %v3122 = vadd.f32 %v3066, %v3118
        %v3123 = vadd.f32 %v3067, %v3119
        %v3124 = vadd.f32 %v3068, %v3120
        %s3125 = sld [smem:[#allocation15 + $0x56]]
        %v3126 = vstv %s3125
        %v3127 = vmul.f32 %v3126, %v3091
        %v3128 = vmul.f32 %v3126, %v3092
        %v3129 = vmul.f32 %v3126, %v3093
        %v3130 = vmul.f32 %v3126, %v3094
        %v3131 = vadd.f32 %v3075, %v3127
        %v3132 = vadd.f32 %v3076, %v3128
        %v3133 = vadd.f32 %v3077, %v3129
        %v3134 = vadd.f32 %v3078, %v3130
        %3135 = vrot.lane.b32.xlu0 %v2301, 18
        %v3136 = vpop.permute.xlu0 %3135
        %3137 = vrot.lane.b32.xlu0 %v2302, 18
        %v3138 = vpop.permute.xlu0 %3137
        %3139 = vrot.lane.b32.xlu0 %v2303, 18
        %v3140 = vpop.permute.xlu0 %3139
        %3141 = vrot.lane.b32.xlu0 %v2304, 18
        %v3142 = vpop.permute.xlu0 %3141
        %v3147 = vsel %vm1161, 0.0, %v3136
        %v3148 = vsel %vm1161, 0.0, %v3138
        %v3149 = vsel %vm1161, 0.0, %v3140
        %v3150 = vsel %vm1161, 0.0, %v3142
        %s3151 = sld [smem:[#allocation15 + $0xf]]
        %v3152 = vstv %s3151
        %v3153 = vmul.f32 %v3152, %v3147
        %v3154 = vmul.f32 %v3152, %v3148
        %v3155 = vmul.f32 %v3152, %v3149
        %v3156 = vmul.f32 %v3152, %v3150
        %v3157 = vadd.f32 %v3101, %v3153
        %v3158 = vadd.f32 %v3102, %v3154
        %v3159 = vadd.f32 %v3103, %v3155
        %v3160 = vadd.f32 %v3104, %v3156
        %s3161 = sld [smem:[#allocation15 + $0x27]]
        %v3162 = vstv %s3161
        %v3163 = vmul.f32 %v3162, %v3147
        %v3164 = vmul.f32 %v3162, %v3148
        %v3165 = vmul.f32 %v3162, %v3149
        %v3166 = vmul.f32 %v3162, %v3150
        %v3167 = vadd.f32 %v3111, %v3163
        %v3168 = vadd.f32 %v3112, %v3164
        %v3169 = vadd.f32 %v3113, %v3165
        %v3170 = vadd.f32 %v3114, %v3166
        %s3171 = sld [smem:[#allocation15 + $0x3f]]
        %v3172 = vstv %s3171
        %v3173 = vmul.f32 %v3172, %v3147
        %v3174 = vmul.f32 %v3172, %v3148
        %v3175 = vmul.f32 %v3172, %v3149
        %v3176 = vmul.f32 %v3172, %v3150
        %v3177 = vadd.f32 %v3121, %v3173
        %v3178 = vadd.f32 %v3122, %v3174
        %v3179 = vadd.f32 %v3123, %v3175
        %v3180 = vadd.f32 %v3124, %v3176
        %s3181 = sld [smem:[#allocation15 + $0x57]]
        %v3182 = vstv %s3181
        %v3183 = vmul.f32 %v3182, %v3147
        %v3184 = vmul.f32 %v3182, %v3148
        %v3185 = vmul.f32 %v3182, %v3149
        %v3186 = vmul.f32 %v3182, %v3150
        %v3187 = vadd.f32 %v3131, %v3183
        %v3188 = vadd.f32 %v3132, %v3184
        %v3189 = vadd.f32 %v3133, %v3185
        %v3190 = vadd.f32 %v3134, %v3186
        %3191 = vrot.lane.b32.xlu0 %v2301, 9
        %v3192 = vpop.permute.xlu0 %3191
        %3193 = vrot.lane.b32.xlu0 %v2302, 9
        %v3194 = vpop.permute.xlu0 %3193
        %3195 = vrot.lane.b32.xlu0 %v2303, 9
        %v3196 = vpop.permute.xlu0 %3195
        %3197 = vrot.lane.b32.xlu0 %v2304, 9
        %v3198 = vpop.permute.xlu0 %3197
        %v3203 = vsel %vm1218, 0.0, %v3192
        %v3204 = vsel %vm1218, 0.0, %v3194
        %v3205 = vsel %vm1218, 0.0, %v3196
        %v3206 = vsel %vm1218, 0.0, %v3198
        %s3207 = sld [smem:[#allocation15 + $0x10]]
        %v3208 = vstv %s3207
        %v3209 = vmul.f32 %v3208, %v3203
        %v3210 = vmul.f32 %v3208, %v3204
        %v3211 = vmul.f32 %v3208, %v3205
        %v3212 = vmul.f32 %v3208, %v3206
        %v3213 = vadd.f32 %v3157, %v3209
        %v3214 = vadd.f32 %v3158, %v3210
        %v3215 = vadd.f32 %v3159, %v3211
        %v3216 = vadd.f32 %v3160, %v3212
        %s3217 = sld [smem:[#allocation15 + $0x28]]
        %v3218 = vstv %s3217
        %v3219 = vmul.f32 %v3218, %v3203
        %v3220 = vmul.f32 %v3218, %v3204
        %v3221 = vmul.f32 %v3218, %v3205
        %v3222 = vmul.f32 %v3218, %v3206
        %v3223 = vadd.f32 %v3167, %v3219
        %v3224 = vadd.f32 %v3168, %v3220
        %v3225 = vadd.f32 %v3169, %v3221
        %v3226 = vadd.f32 %v3170, %v3222
        %s3227 = sld [smem:[#allocation15 + $0x40]]
        %v3228 = vstv %s3227
        %v3229 = vmul.f32 %v3228, %v3203
        %v3230 = vmul.f32 %v3228, %v3204
        %v3231 = vmul.f32 %v3228, %v3205
        %v3232 = vmul.f32 %v3228, %v3206
        %v3233 = vadd.f32 %v3177, %v3229
        %v3234 = vadd.f32 %v3178, %v3230
        %v3235 = vadd.f32 %v3179, %v3231
        %v3236 = vadd.f32 %v3180, %v3232
        %s3237 = sld [smem:[#allocation15 + $0x58]]
        %v3238 = vstv %s3237
        %v3239 = vmul.f32 %v3238, %v3203
        %v3240 = vmul.f32 %v3238, %v3204
        %v3241 = vmul.f32 %v3238, %v3205
        %v3242 = vmul.f32 %v3238, %v3206
        %v3243 = vadd.f32 %v3187, %v3239
        %v3244 = vadd.f32 %v3188, %v3240
        %v3245 = vadd.f32 %v3189, %v3241
        %v3246 = vadd.f32 %v3190, %v3242
        %s3247 = sld [smem:[#allocation15 + $0x11]]
        %v3248 = vstv %s3247
        %v3249 = vmul.f32 %v3248, %v2301
        %v3250 = vmul.f32 %v3248, %v2302
        %v3251 = vmul.f32 %v3248, %v2303
        %v3252 = vmul.f32 %v3248, %v2304
        %v3253 = vadd.f32 %v3213, %v3249
        %v3254 = vadd.f32 %v3214, %v3250
        %v3255 = vadd.f32 %v3215, %v3251
        %v3256 = vadd.f32 %v3216, %v3252
        %s3257 = sld [smem:[#allocation15 + $0x29]]
        %v3258 = vstv %s3257
        %v3259 = vmul.f32 %v3258, %v2301
        %v3260 = vmul.f32 %v3258, %v2302
        %v3261 = vmul.f32 %v3258, %v2303
        %v3262 = vmul.f32 %v3258, %v2304
        %v3263 = vadd.f32 %v3223, %v3259
        %v3264 = vadd.f32 %v3224, %v3260
        %v3265 = vadd.f32 %v3225, %v3261
        %v3266 = vadd.f32 %v3226, %v3262
        %s3267 = sld [smem:[#allocation15 + $0x41]]
        %v3268 = vstv %s3267
        %v3269 = vmul.f32 %v3268, %v2301
        %v3270 = vmul.f32 %v3268, %v2302
        %v3271 = vmul.f32 %v3268, %v2303
        %v3272 = vmul.f32 %v3268, %v2304
        %v3273 = vadd.f32 %v3233, %v3269
        %v3274 = vadd.f32 %v3234, %v3270
        %v3275 = vadd.f32 %v3235, %v3271
        %v3276 = vadd.f32 %v3236, %v3272
        %s3277 = sld [smem:[#allocation15 + $0x59]]
        %v3278 = vstv %s3277
        %v3279 = vmul.f32 %v3278, %v2301
        %v3280 = vmul.f32 %v3278, %v2302
        %v3281 = vmul.f32 %v3278, %v2303
        %v3282 = vmul.f32 %v3278, %v2304
        %v3283 = vadd.f32 %v3243, %v3279
        %v3284 = vadd.f32 %v3244, %v3280
        %v3285 = vadd.f32 %v3245, %v3281
        %v3286 = vadd.f32 %v3246, %v3282
        %3291 = vrot.lane.b32.xlu0 %v2311, 45
        %v3292 = vpop.permute.xlu0 %3291
        %3293 = vrot.lane.b32.xlu0 %v2312, 45
        %v3294 = vpop.permute.xlu0 %3293
        %3295 = vrot.lane.b32.xlu0 %v2313, 45
        %v3296 = vpop.permute.xlu0 %3295
        %3297 = vrot.lane.b32.xlu0 %v2314, 45
        %v3298 = vpop.permute.xlu0 %3297
        %v3303 = vsel %vm990, 0.0, %v3292
        %v3304 = vsel %vm990, 0.0, %v3294
        %v3305 = vsel %vm990, 0.0, %v3296
        %v3306 = vsel %vm990, 0.0, %v3298
        %s3307 = sld [smem:[#allocation15 + $0x12]]
        %v3308 = vstv %s3307
        %v3309 = vmul.f32 %v3308, %v3303
        %v3310 = vmul.f32 %v3308, %v3304
        %v3311 = vmul.f32 %v3308, %v3305
        %v3312 = vmul.f32 %v3308, %v3306
        %v3313 = vadd.f32 %v3253, %v3309
        %v3314 = vadd.f32 %v3254, %v3310
        %v3315 = vadd.f32 %v3255, %v3311
        %v3316 = vadd.f32 %v3256, %v3312
        %s3317 = sld [smem:[#allocation15 + $0x2a]]
        %v3318 = vstv %s3317
        %v3319 = vmul.f32 %v3318, %v3303
        %v3320 = vmul.f32 %v3318, %v3304
        %v3321 = vmul.f32 %v3318, %v3305
        %v3322 = vmul.f32 %v3318, %v3306
        %v3323 = vadd.f32 %v3263, %v3319
        %v3324 = vadd.f32 %v3264, %v3320
        %v3325 = vadd.f32 %v3265, %v3321
        %v3326 = vadd.f32 %v3266, %v3322
        %s3327 = sld [smem:[#allocation15 + $0x42]]
        %v3328 = vstv %s3327
        %v3329 = vmul.f32 %v3328, %v3303
        %v3330 = vmul.f32 %v3328, %v3304
        %v3331 = vmul.f32 %v3328, %v3305
        %v3332 = vmul.f32 %v3328, %v3306
        %v3333 = vadd.f32 %v3273, %v3329
        %v3334 = vadd.f32 %v3274, %v3330
        %v3335 = vadd.f32 %v3275, %v3331
        %v3336 = vadd.f32 %v3276, %v3332
        %s3337 = sld [smem:[#allocation15 + $0x5a]]
        %v3338 = vstv %s3337
        %v3339 = vmul.f32 %v3338, %v3303
        %v3340 = vmul.f32 %v3338, %v3304
        %v3341 = vmul.f32 %v3338, %v3305
        %v3342 = vmul.f32 %v3338, %v3306
        %v3343 = vadd.f32 %v3283, %v3339
        %v3344 = vadd.f32 %v3284, %v3340
        %v3345 = vadd.f32 %v3285, %v3341
        %v3346 = vadd.f32 %v3286, %v3342
        %3347 = vrot.lane.b32.xlu0 %v2311, 36
        %v3348 = vpop.permute.xlu0 %3347
        %3349 = vrot.lane.b32.xlu0 %v2312, 36
        %v3350 = vpop.permute.xlu0 %3349
        %3351 = vrot.lane.b32.xlu0 %v2313, 36
        %v3352 = vpop.permute.xlu0 %3351
        %3353 = vrot.lane.b32.xlu0 %v2314, 36
        %v3354 = vpop.permute.xlu0 %3353
        %v3359 = vsel %vm1047, 0.0, %v3348
        %v3360 = vsel %vm1047, 0.0, %v3350
        %v3361 = vsel %vm1047, 0.0, %v3352
        %v3362 = vsel %vm1047, 0.0, %v3354
        %s3363 = sld [smem:[#allocation15 + $0x13]]
        %v3364 = vstv %s3363
        %v3365 = vmul.f32 %v3364, %v3359
        %v3366 = vmul.f32 %v3364, %v3360
        %v3367 = vmul.f32 %v3364, %v3361
        %v3368 = vmul.f32 %v3364, %v3362
        %v3369 = vadd.f32 %v3313, %v3365
        %v3370 = vadd.f32 %v3314, %v3366
        %v3371 = vadd.f32 %v3315, %v3367
        %v3372 = vadd.f32 %v3316, %v3368
        %s3373 = sld [smem:[#allocation15 + $0x2b]]
        %v3374 = vstv %s3373
        %v3375 = vmul.f32 %v3374, %v3359
        %v3376 = vmul.f32 %v3374, %v3360
        %v3377 = vmul.f32 %v3374, %v3361
        %v3378 = vmul.f32 %v3374, %v3362
        %v3379 = vadd.f32 %v3323, %v3375
        %v3380 = vadd.f32 %v3324, %v3376
        %v3381 = vadd.f32 %v3325, %v3377
        %v3382 = vadd.f32 %v3326, %v3378
        %s3383 = sld [smem:[#allocation15 + $0x43]]
        %v3384 = vstv %s3383
        %v3385 = vmul.f32 %v3384, %v3359
        %v3386 = vmul.f32 %v3384, %v3360
        %v3387 = vmul.f32 %v3384, %v3361
        %v3388 = vmul.f32 %v3384, %v3362
        %v3389 = vadd.f32 %v3333, %v3385
        %v3390 = vadd.f32 %v3334, %v3386
        %v3391 = vadd.f32 %v3335, %v3387
        %v3392 = vadd.f32 %v3336, %v3388
        %s3393 = sld [smem:[#allocation15 + $0x5b]]
        %v3394 = vstv %s3393
        %v3395 = vmul.f32 %v3394, %v3359
        %v3396 = vmul.f32 %v3394, %v3360
        %v3397 = vmul.f32 %v3394, %v3361
        %v3398 = vmul.f32 %v3394, %v3362
        %v3399 = vadd.f32 %v3343, %v3395
        %v3400 = vadd.f32 %v3344, %v3396
        %v3401 = vadd.f32 %v3345, %v3397
        %v3402 = vadd.f32 %v3346, %v3398
        %3403 = vrot.lane.b32.xlu0 %v2311, 27
        %v3404 = vpop.permute.xlu0 %3403
        %3405 = vrot.lane.b32.xlu0 %v2312, 27
        %v3406 = vpop.permute.xlu0 %3405
        %3407 = vrot.lane.b32.xlu0 %v2313, 27
        %v3408 = vpop.permute.xlu0 %3407
        %3409 = vrot.lane.b32.xlu0 %v2314, 27
        %v3410 = vpop.permute.xlu0 %3409
        %v3415 = vsel %vm1104, 0.0, %v3404
        %v3416 = vsel %vm1104, 0.0, %v3406
        %v3417 = vsel %vm1104, 0.0, %v3408
        %v3418 = vsel %vm1104, 0.0, %v3410
        %s3419 = sld [smem:[#allocation15 + $0x14]]
        %v3420 = vstv %s3419
        %v3421 = vmul.f32 %v3420, %v3415
        %v3422 = vmul.f32 %v3420, %v3416
        %v3423 = vmul.f32 %v3420, %v3417
        %v3424 = vmul.f32 %v3420, %v3418
        %v3425 = vadd.f32 %v3369, %v3421
        %v3426 = vadd.f32 %v3370, %v3422
        %v3427 = vadd.f32 %v3371, %v3423
        %v3428 = vadd.f32 %v3372, %v3424
        %s3429 = sld [smem:[#allocation15 + $0x2c]]
        %v3430 = vstv %s3429
        %v3431 = vmul.f32 %v3430, %v3415
        %v3432 = vmul.f32 %v3430, %v3416
        %v3433 = vmul.f32 %v3430, %v3417
        %v3434 = vmul.f32 %v3430, %v3418
        %v3435 = vadd.f32 %v3379, %v3431
        %v3436 = vadd.f32 %v3380, %v3432
        %v3437 = vadd.f32 %v3381, %v3433
        %v3438 = vadd.f32 %v3382, %v3434
        %s3439 = sld [smem:[#allocation15 + $0x44]]
        %v3440 = vstv %s3439
        %v3441 = vmul.f32 %v3440, %v3415
        %v3442 = vmul.f32 %v3440, %v3416
        %v3443 = vmul.f32 %v3440, %v3417
        %v3444 = vmul.f32 %v3440, %v3418
        %v3445 = vadd.f32 %v3389, %v3441
        %v3446 = vadd.f32 %v3390, %v3442
        %v3447 = vadd.f32 %v3391, %v3443
        %v3448 = vadd.f32 %v3392, %v3444
        %s3449 = sld [smem:[#allocation15 + $0x5c]]
        %v3450 = vstv %s3449
        %v3451 = vmul.f32 %v3450, %v3415
        %v3452 = vmul.f32 %v3450, %v3416
        %v3453 = vmul.f32 %v3450, %v3417
        %v3454 = vmul.f32 %v3450, %v3418
        %v3455 = vadd.f32 %v3399, %v3451
        %v3456 = vadd.f32 %v3400, %v3452
        %v3457 = vadd.f32 %v3401, %v3453
        %v3458 = vadd.f32 %v3402, %v3454
        %3459 = vrot.lane.b32.xlu0 %v2311, 18
        %v3460 = vpop.permute.xlu0 %3459
        %3461 = vrot.lane.b32.xlu0 %v2312, 18
        %v3462 = vpop.permute.xlu0 %3461
        %3463 = vrot.lane.b32.xlu0 %v2313, 18
        %v3464 = vpop.permute.xlu0 %3463
        %3465 = vrot.lane.b32.xlu0 %v2314, 18
        %v3466 = vpop.permute.xlu0 %3465
        %v3471 = vsel %vm1161, 0.0, %v3460
        %v3472 = vsel %vm1161, 0.0, %v3462
        %v3473 = vsel %vm1161, 0.0, %v3464
        %v3474 = vsel %vm1161, 0.0, %v3466
        %s3475 = sld [smem:[#allocation15 + $0x15]]
        %v3476 = vstv %s3475
        %v3477 = vmul.f32 %v3476, %v3471
        %v3478 = vmul.f32 %v3476, %v3472
        %v3479 = vmul.f32 %v3476, %v3473
        %v3480 = vmul.f32 %v3476, %v3474
        %v3481 = vadd.f32 %v3425, %v3477
        %v3482 = vadd.f32 %v3426, %v3478
        %v3483 = vadd.f32 %v3427, %v3479
        %v3484 = vadd.f32 %v3428, %v3480
        %s3485 = sld [smem:[#allocation15 + $0x2d]]
        %v3486 = vstv %s3485
        %v3487 = vmul.f32 %v3486, %v3471
        %v3488 = vmul.f32 %v3486, %v3472
        %v3489 = vmul.f32 %v3486, %v3473
        %v3490 = vmul.f32 %v3486, %v3474
        %v3491 = vadd.f32 %v3435, %v3487
        %v3492 = vadd.f32 %v3436, %v3488
        %v3493 = vadd.f32 %v3437, %v3489
        %v3494 = vadd.f32 %v3438, %v3490
        %s3495 = sld [smem:[#allocation15 + $0x45]]
        %v3496 = vstv %s3495
        %v3497 = vmul.f32 %v3496, %v3471
        %v3498 = vmul.f32 %v3496, %v3472
        %v3499 = vmul.f32 %v3496, %v3473
        %v3500 = vmul.f32 %v3496, %v3474
        %v3501 = vadd.f32 %v3445, %v3497
        %v3502 = vadd.f32 %v3446, %v3498
        %v3503 = vadd.f32 %v3447, %v3499
        %v3504 = vadd.f32 %v3448, %v3500
        %s3505 = sld [smem:[#allocation15 + $0x5d]]
        %v3506 = vstv %s3505
        %v3507 = vmul.f32 %v3506, %v3471
        %v3508 = vmul.f32 %v3506, %v3472
        %v3509 = vmul.f32 %v3506, %v3473
        %v3510 = vmul.f32 %v3506, %v3474
        %v3511 = vadd.f32 %v3455, %v3507
        %v3512 = vadd.f32 %v3456, %v3508
        %v3513 = vadd.f32 %v3457, %v3509
        %v3514 = vadd.f32 %v3458, %v3510
        %3515 = vrot.lane.b32.xlu0 %v2311, 9
        %v3516 = vpop.permute.xlu0 %3515
        %3517 = vrot.lane.b32.xlu0 %v2312, 9
        %v3518 = vpop.permute.xlu0 %3517
        %3519 = vrot.lane.b32.xlu0 %v2313, 9
        %v3520 = vpop.permute.xlu0 %3519
        %3521 = vrot.lane.b32.xlu0 %v2314, 9
        %v3522 = vpop.permute.xlu0 %3521
        %v3527 = vsel %vm1218, 0.0, %v3516
        %v3528 = vsel %vm1218, 0.0, %v3518
        %v3529 = vsel %vm1218, 0.0, %v3520
        %v3530 = vsel %vm1218, 0.0, %v3522
        %s3531 = sld [smem:[#allocation15 + $0x16]]
        %v3532 = vstv %s3531
        %v3533 = vmul.f32 %v3532, %v3527
        %v3534 = vmul.f32 %v3532, %v3528
        %v3535 = vmul.f32 %v3532, %v3529
        %v3536 = vmul.f32 %v3532, %v3530
        %v3537 = vadd.f32 %v3481, %v3533
        %v3538 = vadd.f32 %v3482, %v3534
        %v3539 = vadd.f32 %v3483, %v3535
        %v3540 = vadd.f32 %v3484, %v3536
        %s3541 = sld [smem:[#allocation15 + $0x2e]]
        %v3542 = vstv %s3541
        %v3543 = vmul.f32 %v3542, %v3527
        %v3544 = vmul.f32 %v3542, %v3528
        %v3545 = vmul.f32 %v3542, %v3529
        %v3546 = vmul.f32 %v3542, %v3530
        %v3547 = vadd.f32 %v3491, %v3543
        %v3548 = vadd.f32 %v3492, %v3544
        %v3549 = vadd.f32 %v3493, %v3545
        %v3550 = vadd.f32 %v3494, %v3546
        %s3551 = sld [smem:[#allocation15 + $0x46]]
        %v3552 = vstv %s3551
        %v3553 = vmul.f32 %v3552, %v3527
        %v3554 = vmul.f32 %v3552, %v3528
        %v3555 = vmul.f32 %v3552, %v3529
        %v3556 = vmul.f32 %v3552, %v3530
        %v3557 = vadd.f32 %v3501, %v3553
        %v3558 = vadd.f32 %v3502, %v3554
        %v3559 = vadd.f32 %v3503, %v3555
        %v3560 = vadd.f32 %v3504, %v3556
        %s3561 = sld [smem:[#allocation15 + $0x5e]]
        %v3562 = vstv %s3561
        %v3563 = vmul.f32 %v3562, %v3527
        %v3564 = vmul.f32 %v3562, %v3528
        %v3565 = vmul.f32 %v3562, %v3529
        %v3566 = vmul.f32 %v3562, %v3530
        %v3567 = vadd.f32 %v3511, %v3563
        %v3568 = vadd.f32 %v3512, %v3564
        %v3569 = vadd.f32 %v3513, %v3565
        %v3570 = vadd.f32 %v3514, %v3566
        %s3571 = sld [smem:[#allocation15 + $0x17]]
        %v3572 = vstv %s3571
        %v3573 = vmul.f32 %v3572, %v2311
        %v3574 = vmul.f32 %v3572, %v2312
        %v3575 = vmul.f32 %v3572, %v2313
        %v3576 = vmul.f32 %v3572, %v2314
        %v3577 = vadd.f32 %v3537, %v3573
        %v3578 = vadd.f32 %v3538, %v3574
        %v3579 = vadd.f32 %v3539, %v3575
        %v3580 = vadd.f32 %v3540, %v3576
        %s3581 = sld [smem:[#allocation15 + $0x2f]]
        %v3582 = vstv %s3581
        %v3583 = vmul.f32 %v3582, %v2311
        %v3584 = vmul.f32 %v3582, %v2312
        %v3585 = vmul.f32 %v3582, %v2313
        %v3586 = vmul.f32 %v3582, %v2314
        %v3587 = vadd.f32 %v3547, %v3583
        %v3588 = vadd.f32 %v3548, %v3584
        %v3589 = vadd.f32 %v3549, %v3585
        %v3590 = vadd.f32 %v3550, %v3586
        %s3591 = sld [smem:[#allocation15 + $0x47]]
        %v3592 = vstv %s3591
        %v3593 = vmul.f32 %v3592, %v2311
        %v3594 = vmul.f32 %v3592, %v2312
        %v3595 = vmul.f32 %v3592, %v2313
        %v3596 = vmul.f32 %v3592, %v2314
        %v3597 = vadd.f32 %v3557, %v3593
        %v3598 = vadd.f32 %v3558, %v3594
        %v3599 = vadd.f32 %v3559, %v3595
        %v3600 = vadd.f32 %v3560, %v3596
        %s3601 = sld [smem:[#allocation15 + $0x5f]]
        %v3602 = vstv %s3601
        %v3603 = vmul.f32 %v3602, %v2311
        %v3604 = vmul.f32 %v3602, %v2312
        %v3605 = vmul.f32 %v3602, %v2313
        %v3606 = vmul.f32 %v3602, %v2314
        %v3607 = vadd.f32 %v3567, %v3603
        %v3608 = vadd.f32 %v3568, %v3604
        %v3609 = vadd.f32 %v3569, %v3605
        %v3610 = vadd.f32 %v3570, %v3606
        %s3611 = sld [smem:[#allocation16]]
        %v3612 = vstv %s3611
        %v3613 = vadd.f32 %v3577, %v3612
        %v3614 = vadd.f32 %v3578, %v3612
        %v3615 = vadd.f32 %v3579, %v3612
        %v3616 = vadd.f32 %v3580, %v3612
        %v3617 = vmax.f32 %v3613, 0.0
        %v3618 = vmax.f32 %v3614, 0.0
        %v3619 = vmax.f32 %v3615, 0.0
        %v3620 = vmax.f32 %v3616, 0.0
        %s3621 = sld [smem:[#allocation16 + $0x1]]
        %v3622 = vstv %s3621
        %v3623 = vadd.f32 %v3587, %v3622
        %v3624 = vadd.f32 %v3588, %v3622
        %v3625 = vadd.f32 %v3589, %v3622
        %v3626 = vadd.f32 %v3590, %v3622
        %v3627 = vmax.f32 %v3623, 0.0
        %v3628 = vmax.f32 %v3624, 0.0
        %v3629 = vmax.f32 %v3625, 0.0
        %v3630 = vmax.f32 %v3626, 0.0
        %s3631 = sld [smem:[#allocation16 + $0x2]]
        %v3632 = vstv %s3631
        %v3633 = vadd.f32 %v3597, %v3632
        %v3634 = vadd.f32 %v3598, %v3632
        %v3635 = vadd.f32 %v3599, %v3632
        %v3636 = vadd.f32 %v3600, %v3632
        %v3637 = vmax.f32 %v3633, 0.0
        %v3638 = vmax.f32 %v3634, 0.0
        %v3639 = vmax.f32 %v3635, 0.0
        %v3640 = vmax.f32 %v3636, 0.0
        %s3641 = sld [smem:[#allocation16 + $0x3]]
        %v3642 = vstv %s3641
        %v3643 = vadd.f32 %v3607, %v3642
        %v3644 = vadd.f32 %v3608, %v3642
        %v3645 = vadd.f32 %v3609, %v3642
        %v3646 = vadd.f32 %v3610, %v3642
        %v3647 = vmax.f32 %v3643, 0.0
        %v3648 = vmax.f32 %v3644, 0.0
        %v3649 = vmax.f32 %v3645, 0.0
        %v3650 = vmax.f32 %v3646, 0.0
        %s3651 = sld [smem:[#allocation18]]
        %v3652 = vstv %s3651
        %v3653 = vmul.f32 %v3617, %v3652
        %v3654 = vmul.f32 %v3618, %v3652
        %v3655 = vmul.f32 %v3619, %v3652
        %v3656 = vmul.f32 %v3620, %v3652
        %s3657 = sld [smem:[#allocation19]]
        %v3658 = vstv %s3657
        %v3659 = vadd.f32 %v3653, %v3658
        %v3660 = vadd.f32 %v3654, %v3658
        %v3661 = vadd.f32 %v3655, %v3658
        %v3662 = vadd.f32 %v3656, %v3658
        %v3663 = vld [vmem:[%s532] sm:$0xff]
        %v3664 = vld [vmem:[%s532 + $0x20] sm:$0xff]
        %v3665 = vld [vmem:[%s532 + $0x40] sm:$0xff]
        %v3666 = vld [vmem:[%s532 + $0x60] sm:$0xff]
        %v3667 = vadd.f32 %v3663, %v3659
        %v3668 = vadd.f32 %v3664, %v3660
        %v3669 = vadd.f32 %v3665, %v3661
        %v3670 = vadd.f32 %v3666, %v3662
        %3671 = vst.msk [vmem:[%s532] sm:$0xff] %vm646, %v3667
        %3672 = vst.msk [vmem:[%s532 + $0x20] sm:$0xff] %vm646, %v3668
        %3673 = vst.msk [vmem:[%s532 + $0x40] sm:$0xff] %vm646, %v3669
        %3674 = vst.msk [vmem:[%s532 + $0x60] sm:$0xff] %vm646, %v3670
        %s3675 = sld [smem:[#allocation18 + $0x1]]
        %v3676 = vstv %s3675
        %v3677 = vmul.f32 %v3627, %v3676
        %v3678 = vmul.f32 %v3628, %v3676
        %v3679 = vmul.f32 %v3629, %v3676
        %v3680 = vmul.f32 %v3630, %v3676
        %s3681 = sld [smem:[#allocation19 + $0x1]]
        %v3682 = vstv %s3681
        %v3683 = vadd.f32 %v3677, %v3682
        %v3684 = vadd.f32 %v3678, %v3682
        %v3685 = vadd.f32 %v3679, %v3682
        %v3686 = vadd.f32 %v3680, %v3682
        %v3687 = vld [vmem:[%s751] sm:$0xff]
        %v3688 = vld [vmem:[%s751 + $0x20] sm:$0xff]
        %v3689 = vld [vmem:[%s751 + $0x40] sm:$0xff]
        %v3690 = vld [vmem:[%s751 + $0x60] sm:$0xff]
        %v3691 = vadd.f32 %v3687, %v3683
        %v3692 = vadd.f32 %v3688, %v3684
        %v3693 = vadd.f32 %v3689, %v3685
        %v3694 = vadd.f32 %v3690, %v3686
        %3695 = vst.msk [vmem:[%s751] sm:$0xff] %vm646, %v3691
        %3696 = vst.msk [vmem:[%s751 + $0x20] sm:$0xff] %vm646, %v3692
        %3697 = vst.msk [vmem:[%s751 + $0x40] sm:$0xff] %vm646, %v3693
        %3698 = vst.msk [vmem:[%s751 + $0x60] sm:$0xff] %vm646, %v3694
        %s3699 = sld [smem:[#allocation18 + $0x2]]
        %v3700 = vstv %s3699
        %v3701 = vmul.f32 %v3637, %v3700
        %v3702 = vmul.f32 %v3638, %v3700
        %v3703 = vmul.f32 %v3639, %v3700
        %v3704 = vmul.f32 %v3640, %v3700
        %s3705 = sld [smem:[#allocation19 + $0x2]]
        %v3706 = vstv %s3705
        %v3707 = vadd.f32 %v3701, %v3706
        %v3708 = vadd.f32 %v3702, %v3706
        %v3709 = vadd.f32 %v3703, %v3706
        %v3710 = vadd.f32 %v3704, %v3706
        %v3711 = vld [vmem:[%s856] sm:$0xff]
        %v3712 = vld [vmem:[%s856 + $0x20] sm:$0xff]
        %v3713 = vld [vmem:[%s856 + $0x40] sm:$0xff]
        %v3714 = vld [vmem:[%s856 + $0x60] sm:$0xff]
        %v3715 = vadd.f32 %v3711, %v3707
        %v3716 = vadd.f32 %v3712, %v3708
        %v3717 = vadd.f32 %v3713, %v3709
        %v3718 = vadd.f32 %v3714, %v3710
        %3719 = vst.msk [vmem:[%s856] sm:$0xff] %vm646, %v3715
        %3720 = vst.msk [vmem:[%s856 + $0x20] sm:$0xff] %vm646, %v3716
        %3721 = vst.msk [vmem:[%s856 + $0x40] sm:$0xff] %vm646, %v3717
        %3722 = vst.msk [vmem:[%s856 + $0x60] sm:$0xff] %vm646, %v3718
        %s3723 = sld [smem:[#allocation18 + $0x3]]
        %v3724 = vstv %s3723
        %v3725 = vmul.f32 %v3647, %v3724
        %v3726 = vmul.f32 %v3648, %v3724
        %v3727 = vmul.f32 %v3649, %v3724
        %v3728 = vmul.f32 %v3650, %v3724
        %s3729 = sld [smem:[#allocation19 + $0x3]]
        %v3730 = vstv %s3729
        %v3731 = vadd.f32 %v3725, %v3730
        %v3732 = vadd.f32 %v3726, %v3730
        %v3733 = vadd.f32 %v3727, %v3730
        %v3734 = vadd.f32 %v3728, %v3730
        %v3735 = vld [vmem:[%s961] sm:$0xff]
        %v3736 = vld [vmem:[%s961 + $0x20] sm:$0xff]
        %v3737 = vld [vmem:[%s961 + $0x40] sm:$0xff]
        %v3738 = vld [vmem:[%s961 + $0x60] sm:$0xff]
        %v3739 = vadd.f32 %v3735, %v3731
        %v3740 = vadd.f32 %v3736, %v3732
        %v3741 = vadd.f32 %v3737, %v3733
        %v3742 = vadd.f32 %v3738, %v3734
        %3743 = vst.msk [vmem:[%s961] sm:$0xff] %vm646, %v3739
        %3744 = vst.msk [vmem:[%s961 + $0x20] sm:$0xff] %vm646, %v3740
        %3745 = vst.msk [vmem:[%s961 + $0x40] sm:$0xff] %vm646, %v3741
        %3746 = vst.msk [vmem:[%s961 + $0x60] sm:$0xff] %vm646, %v3742
        %s3747 = sand.u32 %s278, 1
        %s3748 = scalar_lea.sflag [#allocation4], %s3747
        %s3749 = sand.u32 %s278, 1
        %s3750 = smul.addr %s3749, 128
        %s3751 = scalar_lea.vmem [#allocation21], %s3750
        // Predicated region
        $region109: #{stcb_forward.1} parent=63 // pred_check
          %p3752 = pneg %p288
        $region110: #{stcb_forward.1} parent=63 // pred_check_branch
          %3754 = sbr.rel (%p3752) target = $region112
        $region111: #{stcb_forward.1} parent=63 // pred_region
          %s3755 = smul.u32 4, %s34
          %s3757 = ssub.s32 2048, 2048
          %3758 = vsyncadd %s3748, %s3757
          %s3759 = smul.addr %s3755, 4
          %s3760 = smul.addr %s3759, 128
          %s3761 = scalar_lea.hbm %s11, %s3760
          %s3762 = sshll.u32 %s3751, 4
          %s3763 = int_to_ptr.vmem [resolvable:$true] %s3762
          %3768 = dma.vmem_to_hbm [thread:$0]  %s3763, 2048, %s3761, %s3748, 128, 128, 8
        $region112: #{stcb_forward.1} parent=63 // pred_fallthru
          _
      $region64: #{stcb_forward.1} parent=5 // pred_fallthru
        _
      %p3769 = scmp.le.s32.totalorder 2, %s29
      // Predicated region
      $region113: #{stcb_forward.1} parent=5 // pred_check
        %p3770 = pneg %p3769
      $region114: #{stcb_forward.1} parent=5 // pred_check_branch
        %3772 = sbr.rel (%p3770) target = $region116
      $region115: #{stcb_forward.1} parent=5 // pred_region
        %s3773 = ssub.s32 %s29, 2
        // Predicated region
        $region117: #{stcb_forward.1} parent=115 // pred_check
          %p3774 = pneg %p294
        $region118: #{stcb_forward.1} parent=115 // pred_check_branch
          %3776 = sbr.rel (%p3774) target = $region120
        $region119: #{stcb_forward.1} parent=115 // pred_region
          %s3777 = sand.u32 %s279, 1
          %s3778 = scalar_lea.sflag [#allocation4], %s3777
          %s3779 = sand.u32 %s279, 1
          %s3780 = smul.addr %s3779, 128
          %s3781 = scalar_lea.vmem [#allocation21], %s3780
          %3782 = dma.done %s3778, 2048
        $region120: #{stcb_forward.1} parent=115 // pred_fallthru
          _
      $region116: #{stcb_forward.1} parent=5 // pred_fallthru
        _
    $region6: #{stcb_forward.1} parent=1 // loop_footer
      %s33 = sadd.s32 1, %s29
    $region7: #{stcb_forward.1} parent=1 // loop_footer_branch
      %28 = sbr.rel target = $region3
    $region8: #{stcb_forward.1} parent=1 // loop_exit
      _
    %3783 = vsyncpa [#allocation3], 1
    %s3784 = scalar_lea.sflag [#allocation3], 1
    %3785 = vsyncpa %s3784, 1
    %3786 = vsyncpa [#allocation4], 1
    %s3787 = scalar_lea.sflag [#allocation4], 1
    %3788 = vsyncpa %s3787, 1
    %3789 = vsyncpa [#allocation5], 1
    %s3790 = scalar_lea.sflag [#allocation5], 1
    %3791 = vsyncpa %s3790, 1
    %3792 = vsyncpa [#allocation8], 1
    %3793 = vsyncpa [#allocation11], 1
    %3794 = vsyncpa [#allocation14], 1
    %3795 = vsyncpa [#allocation17], 1
    %3796 = vsyncpa [#allocation20], 1

</llo_original>
